<compile_context>
chip_gen: v5e
topology: v5e:2x2
jax: 0.10.0
libtpu: 0.0.40
codegen_flags: <defaults>
</compile_context>

<pallas_src>
import functools

import jax
import jax.numpy as jnp
from jax import lax
from jax.experimental import pallas as pl
from jax.experimental.pallas import tpu as pltpu


def _seq2seq_kernel(
    src_ref,        # (1, S*Bb, E)  time-major source embeddings for this batch block
    enc_wx_ref,     # (E, 3H)  encoder W_ih^T, gate order [r | z | n]
    enc_bx_ref,     # (1, 3H)
    enc_wh_ref,     # (H, 3H)  encoder W_hh^T
    enc_bh_ref,     # (1, 3H)
    wq_t_ref,       # (H, H)
    bq_ref,         # (1, H)
    wkv_t_ref,      # (H, 2H)  [Wk^T | Wv^T]
    bkv_ref,        # (1, 2H)
    attn_bias_ref,  # (Bb, S*Bb)  0 where col % Bb == row, else -1e30
    dec_m_ref,      # (VP, 3H)  emb_tgt_pad @ W_dec_ih^T  (embedding folded in)
    dec_bx_ref,     # (1, 3H)
    dec_wh_ref,     # (H, 3H)
    dec_bh_ref,     # (1, 3H)
    wl_t_ref,       # (H, VP)  zero-padded vocab columns
    bl_ref,         # (1, VP)  -1e30 on padded vocab lanes
    out_ref,        # (1, Bb, T*VP)
):
    _, SB, _E = src_ref.shape
    H = wq_t_ref.shape[0]
    Bb = attn_bias_ref.shape[0]
    S = SB // Bb
    VP = wl_t_ref.shape[1]
    T = out_ref.shape[2] // VP

    def gru_gates(gx, gh, h_prev):
        # PyTorch GRU/GRUCell gate order [r, z, n]
        r = jax.nn.sigmoid(gx[:, 0:H] + gh[:, 0:H])
        z = jax.nn.sigmoid(gx[:, H:2 * H] + gh[:, H:2 * H])
        n = jnp.tanh(gx[:, 2 * H:3 * H] + r * gh[:, 2 * H:3 * H])
        return (1.0 - z) * n + z * h_prev

    # ---- encoder: input projections for ALL timesteps in one matmul ---------
    gx_all = (jnp.dot(src_ref[0], enc_wx_ref[...],
                      preferred_element_type=jnp.float32) + enc_bx_ref[...])   # (S*Bb, 3H)

    h = jnp.zeros((Bb, H), jnp.float32)
    hs = []
    for t in range(S):                                      # fully unrolled (S small)
        gh = (jnp.dot(h, enc_wh_ref[...],
                      preferred_element_type=jnp.float32) + enc_bh_ref[...])
        h = gru_gates(gx_all[t * Bb:(t + 1) * Bb, :], gh, h)
        hs.append(h)
    enc2d = jnp.concatenate(hs, axis=0)                     # (S*Bb, H), row t*Bb + b
    # `h` now equals encoder_output[:, -1, :]  -> decoder initial hidden.

    # ---- attention K / V: one fused projection, K stored transposed once ----
    kv = (jnp.dot(enc2d, wkv_t_ref[...],
                  preferred_element_type=jnp.float32) + bkv_ref[...])          # (S*Bb, 2H)
    k_t = jnp.transpose(kv[:, 0:H])                                            # (H, S*Bb)
    v = kv[:, H:2 * H]                                                         # (S*Bb, H)

    inv_sqrt_h = float(H) ** -0.5
    iota_v = lax.broadcasted_iota(jnp.int32, (Bb, VP), 1)   # hoisted out of the loop
    x_oh = (iota_v == 1).astype(jnp.float32)                # start token id = 1
    attn_bias = attn_bias_ref[...]

    # ---- decoder loop (fully unrolled) ---------------------------------------
    for i in range(T):
        # attention: Q = WQ(h); score = Q K^T / sqrt(H); softmax; C = attn V
        q = (jnp.dot(h, wq_t_ref[...],
                     preferred_element_type=jnp.float32) + bq_ref[...])
        s = (jnp.dot(q, k_t, preferred_element_type=jnp.float32) * inv_sqrt_h
             + attn_bias)                                                      # (Bb, S*Bb)
        m = jnp.max(s, axis=-1, keepdims=True)
        e = jnp.exp(s - m)
        attn = e / jnp.sum(e, axis=-1, keepdims=True)        # exact softmax (argmax parity)
        ctx = jnp.dot(attn, v, preferred_element_type=jnp.float32)             # (Bb, H)

        # GRUCell(embed, hidden=C); embedding lookup folded into dec_m
        gx = (jnp.dot(x_oh, dec_m_ref[...],
                      preferred_element_type=jnp.float32) + dec_bx_ref[...])   # (Bb, 3H)
        gh = (jnp.dot(ctx, dec_wh_ref[...],
                      preferred_element_type=jnp.float32) + dec_bh_ref[...])
        h = gru_gates(gx, gh, ctx)

        logits = (jnp.dot(h, wl_t_ref[...],
                          preferred_element_type=jnp.float32) + bl_ref[...])   # (Bb, VP)
        out_ref[0, :, i * VP:(i + 1) * VP] = logits          # lane-dense static store

        # greedy argmax (first-occurrence tie break); padded lanes hold -1e30
        maxv = jnp.max(logits, axis=-1, keepdims=True)
        idx = jnp.min(jnp.where(logits == maxv, iota_v, VP), axis=-1, keepdims=True)
        x_oh = (iota_v == idx).astype(jnp.float32)


def init_params(key, src_vocab, tgt_vocab, emb_dim, h_dim):
    ks = jax.random.split(key, 20)
    scale = 0.1

    def w(k, shape):
        return (scale * jax.random.normal(k, shape)).astype(jnp.float32)

    params = dict(
        emb_src=w(ks[0], (src_vocab, emb_dim)),
        # encoder GRU (PyTorch layout: weight_ih (3H, E), weight_hh (3H, H))
        enc_w_ih=w(ks[1], (3 * h_dim, emb_dim)),
        enc_b_ih=w(ks[2], (3 * h_dim,)),
        enc_w_hh=w(ks[3], (3 * h_dim, h_dim)),
        enc_b_hh=w(ks[4], (3 * h_dim,)),
        # attention linears (out, in)
        wq=w(ks[5], (h_dim, h_dim)), bq=w(ks[6], (h_dim,)),
        wk=w(ks[7], (h_dim, h_dim)), bk=w(ks[8], (h_dim,)),
        wv=w(ks[9], (h_dim, h_dim)), bv=w(ks[10], (h_dim,)),
        # decoder
        emb_tgt=w(ks[11], (tgt_vocab, emb_dim)),
        dec_w_ih=w(ks[12], (3 * h_dim, emb_dim)),
        dec_b_ih=w(ks[13], (3 * h_dim,)),
        dec_w_hh=w(ks[14], (3 * h_dim, h_dim)),
        dec_b_hh=w(ks[15], (3 * h_dim,)),
        wl=w(ks[16], (tgt_vocab, h_dim)), bl=w(ks[17], (tgt_vocab,)),
    )
    return params


def _rep_spec(arr):
    """Full-array block replicated to every grid step (weights / biases)."""
    zeros = (0,) * arr.ndim
    return pl.BlockSpec(arr.shape, lambda i, _z=zeros: _z)


@functools.partial(jax.jit, static_argnames=("tgt_len", "batch_block"))
def seq2seq_forward(src_ids, params, tgt_len, batch_block=None):
    """Equivalent of Seq2Seq.forward(batch_src_tensor, target_seq=None).

    batch_block: size of the per-grid-step batch block.  Default (None) = full
    batch in one grid step (single TC).  Set e.g. B//2 on v7x to shard the
    independent per-example recurrences across its two TensorCores.
    """
    B, S = src_ids.shape
    E = params["emb_src"].shape[1]
    H = params["wq"].shape[0]
    Vt = params["wl"].shape[0]
    VP = ((Vt + 127) // 128) * 128            # lane-dense (padded) vocab width
    Bb = B if batch_block is None else batch_block
    assert B % Bb == 0
    nblk = B // Bb

    f32 = jnp.float32
    row = lambda x: x.reshape(1, -1).astype(f32)

    # glue: source embedding lookup, grouped per batch block, time-major in-block
    src_emb = jnp.take(params["emb_src"], src_ids, axis=0).astype(f32)       # (B, S, E)
    src_blk = (src_emb.reshape(nblk, Bb, S, E).transpose(0, 2, 1, 3)
               .reshape(nblk, S * Bb, E))

    # encoder GRU weights split into input / hidden halves (gate order r|z|n)
    enc_wx = params["enc_w_ih"].T.astype(f32)                                 # (E, 3H)
    enc_wh = params["enc_w_hh"].T.astype(f32)                                 # (H, 3H)
    enc_bx = row(params["enc_b_ih"])
    enc_bh = row(params["enc_b_hh"])

    # attention: Q separate; K and V fused into one projection
    wq_t = params["wq"].T.astype(f32)
    bq = row(params["bq"])
    wkv_t = jnp.concatenate([params["wk"].T, params["wv"].T], axis=1).astype(f32)  # (H, 2H)
    bkv = jnp.concatenate([row(params["bk"]), row(params["bv"])], axis=1)          # (1, 2H)

    # decoder: fold target embedding into the input projection  M = E_tgt @ W_ih^T
    emb_tgt_p = jnp.pad(params["emb_tgt"].astype(f32), ((0, VP - Vt), (0, 0)))     # (VP, E)
    dec_m = jnp.dot(emb_tgt_p, params["dec_w_ih"].T.astype(f32))                    # (VP, 3H)
    dec_bx = row(params["dec_b_ih"])
    dec_wh = params["dec_w_hh"].T.astype(f32)                                       # (H, 3H)
    dec_bh = row(params["dec_b_hh"])

    # classifier padded to lane-dense vocab; padded lanes can never win argmax
    wl_t_p = jnp.pad(params["wl"].T.astype(f32), ((0, 0), (0, VP - Vt)))
    bl_p = jnp.pad(row(params["bl"]), ((0, 0), (0, VP - Vt)), constant_values=-1e30)

    # cross-batch mask for the flattened (Bb, S*Bb) attention score
    j = jnp.arange(S * Bb, dtype=jnp.int32)
    bi = jnp.arange(Bb, dtype=jnp.int32)
    attn_bias = jnp.where((j[None, :] % Bb) == bi[:, None], 0.0, -1e30).astype(f32)

    inputs = (src_blk, enc_wx, enc_bx, enc_wh, enc_bh,
              wq_t, bq, wkv_t, bkv, attn_bias,
              dec_m, dec_bx, dec_wh, dec_bh, wl_t_p, bl_p)

    in_specs = [pl.BlockSpec((1, S * Bb, E), lambda i: (i, 0, 0))]
    in_specs += [_rep_spec(a) for a in inputs[1:]]

    out = pl.pallas_call(
        _seq2seq_kernel,
        out_shape=jax.ShapeDtypeStruct((nblk, Bb, tgt_len * VP), f32),
        grid=(nblk,),
        in_specs=in_specs,
        out_specs=pl.BlockSpec((1, Bb, tgt_len * VP), lambda i: (i, 0, 0)),
        compiler_params=pltpu.CompilerParams(dimension_semantics=("parallel",)),
    )(*inputs)

    # (nblk, Bb, T*VP) -> (B, T, VP) is a layout-free reshape; slice padded lanes.
    return out.reshape(B, tgt_len, VP)[:, :, :Vt]


if __name__ == "__main__":
    # small shapes consistent with the module
    B, S = 2, 8
    SRC_VOCAB, TGT_VOCAB = 16, 12
    EMB_DIM, H_DIM, TGT_LEN = 8, 16, 6

    key = jax.random.PRNGKey(0)
    k_param, k_data = jax.random.split(key)
    params = init_params(k_param, SRC_VOCAB, TGT_VOCAB, EMB_DIM, H_DIM)
    src_ids = jax.random.randint(k_data, (B, S), 0, SRC_VOCAB, dtype=jnp.int32)

    out = seq2seq_forward(src_ids, params, TGT_LEN)
    out = jax.block_until_ready(out)

    assert out.shape == (B, TGT_LEN, TGT_VOCAB), out.shape
    assert bool(jnp.all(jnp.isfinite(out)))
    print("KERNEL_OK")
</pallas_src>

<mosaic_0001>
module attributes {stable_mosaic.version = 11 : i64} {
  func.func @_seq2seq_kernel(%arg0: i32, %arg1: memref<1x16x8xf32, #tpu.memory_space<vmem>>, %arg2: memref<8x48xf32, #tpu.memory_space<vmem>>, %arg3: memref<1x48xf32, #tpu.memory_space<vmem>>, %arg4: memref<16x48xf32, #tpu.memory_space<vmem>>, %arg5: memref<1x48xf32, #tpu.memory_space<vmem>>, %arg6: memref<16x16xf32, #tpu.memory_space<vmem>>, %arg7: memref<1x16xf32, #tpu.memory_space<vmem>>, %arg8: memref<16x32xf32, #tpu.memory_space<vmem>>, %arg9: memref<1x32xf32, #tpu.memory_space<vmem>>, %arg10: memref<2x16xf32, #tpu.memory_space<vmem>>, %arg11: memref<128x48xf32, #tpu.memory_space<vmem>>, %arg12: memref<1x48xf32, #tpu.memory_space<vmem>>, %arg13: memref<16x48xf32, #tpu.memory_space<vmem>>, %arg14: memref<1x48xf32, #tpu.memory_space<vmem>>, %arg15: memref<16x128xf32, #tpu.memory_space<vmem>>, %arg16: memref<1x128xf32, #tpu.memory_space<vmem>>, %arg17: memref<1x2x768xf32, #tpu.memory_space<vmem>>) attributes {dimension_semantics = [#tpu.dimension_semantics<parallel>], iteration_bounds = array<i64: 1>, scalar_prefetch = 0 : i64, scratch_operands = 0 : i64, tpu.core_type = #tpu.core_type<tc>, window_params = [{transform_indices = @transform_0, window_bounds = array<i64: 1, 16, 8>}, {pipeline_mode = #tpu.pipeline_mode<synchronous>, transform_indices = @transform_1, window_bounds = array<i64: 8, 48>}, {pipeline_mode = #tpu.pipeline_mode<synchronous>, transform_indices = @transform_2, window_bounds = array<i64: 1, 48>}, {pipeline_mode = #tpu.pipeline_mode<synchronous>, transform_indices = @transform_3, window_bounds = array<i64: 16, 48>}, {pipeline_mode = #tpu.pipeline_mode<synchronous>, transform_indices = @transform_4, window_bounds = array<i64: 1, 48>}, {pipeline_mode = #tpu.pipeline_mode<synchronous>, transform_indices = @transform_5, window_bounds = array<i64: 16, 16>}, {pipeline_mode = #tpu.pipeline_mode<synchronous>, transform_indices = @transform_6, window_bounds = array<i64: 1, 16>}, {pipeline_mode = #tpu.pipeline_mode<synchronous>, transform_indices = @transform_7, window_bounds = array<i64: 16, 32>}, {pipeline_mode = #tpu.pipeline_mode<synchronous>, transform_indices = @transform_8, window_bounds = array<i64: 1, 32>}, {pipeline_mode = #tpu.pipeline_mode<synchronous>, transform_indices = @transform_9, window_bounds = array<i64: 2, 16>}, {pipeline_mode = #tpu.pipeline_mode<synchronous>, transform_indices = @transform_10, window_bounds = array<i64: 128, 48>}, {pipeline_mode = #tpu.pipeline_mode<synchronous>, transform_indices = @transform_11, window_bounds = array<i64: 1, 48>}, {pipeline_mode = #tpu.pipeline_mode<synchronous>, transform_indices = @transform_12, window_bounds = array<i64: 16, 48>}, {pipeline_mode = #tpu.pipeline_mode<synchronous>, transform_indices = @transform_13, window_bounds = array<i64: 1, 48>}, {pipeline_mode = #tpu.pipeline_mode<synchronous>, transform_indices = @transform_14, window_bounds = array<i64: 16, 128>}, {pipeline_mode = #tpu.pipeline_mode<synchronous>, transform_indices = @transform_15, window_bounds = array<i64: 1, 128>}, {transform_indices = @transform_16, window_bounds = array<i64: 1, 2, 768>}]} {
    %c0 = arith.constant 0 : index
    %c0_0 = arith.constant 0 : index
    %c0_1 = arith.constant 0 : index
    %0 = vector.load %arg1[%c0, %c0_0, %c0_1] : memref<1x16x8xf32, #tpu.memory_space<vmem>>, vector<1x16x8xf32>
    %1 = vector.shape_cast %0 : vector<1x16x8xf32> to vector<16x8xf32>
    %c0_2 = arith.constant 0 : index
    %c0_3 = arith.constant 0 : index
    %2 = vector.load %arg2[%c0_2, %c0_3] : memref<8x48xf32, #tpu.memory_space<vmem>>, vector<8x48xf32>
    %cst = arith.constant dense<0.000000e+00> : vector<16x48xf32>
    %3 = tpu.matmul %1, %2, %cst {dimension_numbers = #tpu.dot_dimension_numbers<[1], [0], [0], [1], [0, 0, 1, 1], [], []>} : vector<16x8xf32>, vector<8x48xf32>, vector<16x48xf32> -> vector<16x48xf32>
    %c0_4 = arith.constant 0 : index
    %c0_5 = arith.constant 0 : index
    %4 = vector.load %arg3[%c0_4, %c0_5] : memref<1x48xf32, #tpu.memory_space<vmem>>, vector<1x48xf32>
    %5 = vector.broadcast %4 : vector<1x48xf32> to vector<16x48xf32>
    %6 = arith.addf %3, %5 : vector<16x48xf32>
    %cst_6 = arith.constant 0.000000e+00 : f32
    %7 = vector.broadcast %cst_6 : f32 to vector<2x16xf32>
    %c0_7 = arith.constant 0 : index
    %c0_8 = arith.constant 0 : index
    %8 = vector.load %arg4[%c0_7, %c0_8] : memref<16x48xf32, #tpu.memory_space<vmem>>, vector<16x48xf32>
    %cst_9 = arith.constant dense<0.000000e+00> : vector<2x48xf32>
    %9 = tpu.matmul %7, %8, %cst_9 {dimension_numbers = #tpu.dot_dimension_numbers<[1], [0], [0], [1], [0, 0, 1, 1], [], []>} : vector<2x16xf32>, vector<16x48xf32>, vector<2x48xf32> -> vector<2x48xf32>
    %c0_10 = arith.constant 0 : index
    %c0_11 = arith.constant 0 : index
    %10 = vector.load %arg5[%c0_10, %c0_11] : memref<1x48xf32, #tpu.memory_space<vmem>>, vector<1x48xf32>
    %11 = vector.broadcast %10 : vector<1x48xf32> to vector<2x48xf32>
    %12 = arith.addf %9, %11 : vector<2x48xf32>
    %13 = vector.extract_strided_slice %6 {offsets = [0, 0], sizes = [2, 48], strides = [1, 1]} : vector<16x48xf32> to vector<2x48xf32>
    %14 = vector.extract_strided_slice %13 {offsets = [0, 0], sizes = [2, 16], strides = [1, 1]} : vector<2x48xf32> to vector<2x16xf32>
    %15 = vector.extract_strided_slice %12 {offsets = [0, 0], sizes = [2, 16], strides = [1, 1]} : vector<2x48xf32> to vector<2x16xf32>
    %16 = arith.addf %14, %15 : vector<2x16xf32>
    %17 = arith.negf %16 : vector<2x16xf32>
    %18 = math.exp %17 : vector<2x16xf32>
    %cst_12 = arith.constant 1.000000e+00 : f32
    %19 = vector.broadcast %cst_12 : f32 to vector<2x16xf32>
    %20 = arith.addf %19, %18 : vector<2x16xf32>
    %21 = arith.divf %19, %20 : vector<2x16xf32>
    %22 = vector.extract_strided_slice %13 {offsets = [0, 16], sizes = [2, 16], strides = [1, 1]} : vector<2x48xf32> to vector<2x16xf32>
    %23 = vector.extract_strided_slice %12 {offsets = [0, 16], sizes = [2, 16], strides = [1, 1]} : vector<2x48xf32> to vector<2x16xf32>
    %24 = arith.addf %22, %23 : vector<2x16xf32>
    %25 = arith.negf %24 : vector<2x16xf32>
    %26 = math.exp %25 : vector<2x16xf32>
    %cst_13 = arith.constant 1.000000e+00 : f32
    %27 = vector.broadcast %cst_13 : f32 to vector<2x16xf32>
    %28 = arith.addf %27, %26 : vector<2x16xf32>
    %29 = arith.divf %27, %28 : vector<2x16xf32>
    %30 = vector.extract_strided_slice %13 {offsets = [0, 32], sizes = [2, 16], strides = [1, 1]} : vector<2x48xf32> to vector<2x16xf32>
    %31 = vector.extract_strided_slice %12 {offsets = [0, 32], sizes = [2, 16], strides = [1, 1]} : vector<2x48xf32> to vector<2x16xf32>
    %32 = arith.mulf %21, %31 : vector<2x16xf32>
    %33 = arith.addf %30, %32 : vector<2x16xf32>
    %34 = math.tanh %33 : vector<2x16xf32>
    %cst_14 = arith.constant 1.000000e+00 : f32
    %35 = vector.broadcast %cst_14 : f32 to vector<2x16xf32>
    %36 = arith.subf %35, %29 : vector<2x16xf32>
    %37 = arith.mulf %36, %34 : vector<2x16xf32>
    %38 = arith.mulf %29, %7 : vector<2x16xf32>
    %39 = arith.addf %37, %38 : vector<2x16xf32>
    %c0_15 = arith.constant 0 : index
    %c0_16 = arith.constant 0 : index
    %40 = vector.load %arg4[%c0_15, %c0_16] : memref<16x48xf32, #tpu.memory_space<vmem>>, vector<16x48xf32>
    %cst_17 = arith.constant dense<0.000000e+00> : vector<2x48xf32>
    %41 = tpu.matmul %39, %40, %cst_17 {dimension_numbers = #tpu.dot_dimension_numbers<[1], [0], [0], [1], [0, 0, 1, 1], [], []>} : vector<2x16xf32>, vector<16x48xf32>, vector<2x48xf32> -> vector<2x48xf32>
    %c0_18 = arith.constant 0 : index
    %c0_19 = arith.constant 0 : index
    %42 = vector.load %arg5[%c0_18, %c0_19] : memref<1x48xf32, #tpu.memory_space<vmem>>, vector<1x48xf32>
    %43 = vector.broadcast %42 : vector<1x48xf32> to vector<2x48xf32>
    %44 = arith.addf %41, %43 : vector<2x48xf32>
    %45 = vector.extract_strided_slice %6 {offsets = [2, 0], sizes = [2, 48], strides = [1, 1]} : vector<16x48xf32> to vector<2x48xf32>
    %46 = vector.extract_strided_slice %45 {offsets = [0, 0], sizes = [2, 16], strides = [1, 1]} : vector<2x48xf32> to vector<2x16xf32>
    %47 = vector.extract_strided_slice %44 {offsets = [0, 0], sizes = [2, 16], strides = [1, 1]} : vector<2x48xf32> to vector<2x16xf32>
    %48 = arith.addf %46, %47 : vector<2x16xf32>
    %49 = arith.negf %48 : vector<2x16xf32>
    %50 = math.exp %49 : vector<2x16xf32>
    %cst_20 = arith.constant 1.000000e+00 : f32
    %51 = vector.broadcast %cst_20 : f32 to vector<2x16xf32>
    %52 = arith.addf %51, %50 : vector<2x16xf32>
    %53 = arith.divf %51, %52 : vector<2x16xf32>
    %54 = vector.extract_strided_slice %45 {offsets = [0, 16], sizes = [2, 16], strides = [1, 1]} : vector<2x48xf32> to vector<2x16xf32>
    %55 = vector.extract_strided_slice %44 {offsets = [0, 16], sizes = [2, 16], strides = [1, 1]} : vector<2x48xf32> to vector<2x16xf32>
    %56 = arith.addf %54, %55 : vector<2x16xf32>
    %57 = arith.negf %56 : vector<2x16xf32>
    %58 = math.exp %57 : vector<2x16xf32>
    %cst_21 = arith.constant 1.000000e+00 : f32
    %59 = vector.broadcast %cst_21 : f32 to vector<2x16xf32>
    %60 = arith.addf %59, %58 : vector<2x16xf32>
    %61 = arith.divf %59, %60 : vector<2x16xf32>
    %62 = vector.extract_strided_slice %45 {offsets = [0, 32], sizes = [2, 16], strides = [1, 1]} : vector<2x48xf32> to vector<2x16xf32>
    %63 = vector.extract_strided_slice %44 {offsets = [0, 32], sizes = [2, 16], strides = [1, 1]} : vector<2x48xf32> to vector<2x16xf32>
    %64 = arith.mulf %53, %63 : vector<2x16xf32>
    %65 = arith.addf %62, %64 : vector<2x16xf32>
    %66 = math.tanh %65 : vector<2x16xf32>
    %cst_22 = arith.constant 1.000000e+00 : f32
    %67 = vector.broadcast %cst_22 : f32 to vector<2x16xf32>
    %68 = arith.subf %67, %61 : vector<2x16xf32>
    %69 = arith.mulf %68, %66 : vector<2x16xf32>
    %70 = arith.mulf %61, %39 : vector<2x16xf32>
    %71 = arith.addf %69, %70 : vector<2x16xf32>
    %c0_23 = arith.constant 0 : index
    %c0_24 = arith.constant 0 : index
    %72 = vector.load %arg4[%c0_23, %c0_24] : memref<16x48xf32, #tpu.memory_space<vmem>>, vector<16x48xf32>
    %cst_25 = arith.constant dense<0.000000e+00> : vector<2x48xf32>
    %73 = tpu.matmul %71, %72, %cst_25 {dimension_numbers = #tpu.dot_dimension_numbers<[1], [0], [0], [1], [0, 0, 1, 1], [], []>} : vector<2x16xf32>, vector<16x48xf32>, vector<2x48xf32> -> vector<2x48xf32>
    %c0_26 = arith.constant 0 : index
    %c0_27 = arith.constant 0 : index
    %74 = vector.load %arg5[%c0_26, %c0_27] : memref<1x48xf32, #tpu.memory_space<vmem>>, vector<1x48xf32>
    %75 = vector.broadcast %74 : vector<1x48xf32> to vector<2x48xf32>
    %76 = arith.addf %73, %75 : vector<2x48xf32>
    %77 = vector.extract_strided_slice %6 {offsets = [4, 0], sizes = [2, 48], strides = [1, 1]} : vector<16x48xf32> to vector<2x48xf32>
    %78 = vector.extract_strided_slice %77 {offsets = [0, 0], sizes = [2, 16], strides = [1, 1]} : vector<2x48xf32> to vector<2x16xf32>
    %79 = vector.extract_strided_slice %76 {offsets = [0, 0], sizes = [2, 16], strides = [1, 1]} : vector<2x48xf32> to vector<2x16xf32>
    %80 = arith.addf %78, %79 : vector<2x16xf32>
    %81 = arith.negf %80 : vector<2x16xf32>
    %82 = math.exp %81 : vector<2x16xf32>
    %cst_28 = arith.constant 1.000000e+00 : f32
    %83 = vector.broadcast %cst_28 : f32 to vector<2x16xf32>
    %84 = arith.addf %83, %82 : vector<2x16xf32>
    %85 = arith.divf %83, %84 : vector<2x16xf32>
    %86 = vector.extract_strided_slice %77 {offsets = [0, 16], sizes = [2, 16], strides = [1, 1]} : vector<2x48xf32> to vector<2x16xf32>
    %87 = vector.extract_strided_slice %76 {offsets = [0, 16], sizes = [2, 16], strides = [1, 1]} : vector<2x48xf32> to vector<2x16xf32>
    %88 = arith.addf %86, %87 : vector<2x16xf32>
    %89 = arith.negf %88 : vector<2x16xf32>
    %90 = math.exp %89 : vector<2x16xf32>
    %cst_29 = arith.constant 1.000000e+00 : f32
    %91 = vector.broadcast %cst_29 : f32 to vector<2x16xf32>
    %92 = arith.addf %91, %90 : vector<2x16xf32>
    %93 = arith.divf %91, %92 : vector<2x16xf32>
    %94 = vector.extract_strided_slice %77 {offsets = [0, 32], sizes = [2, 16], strides = [1, 1]} : vector<2x48xf32> to vector<2x16xf32>
    %95 = vector.extract_strided_slice %76 {offsets = [0, 32], sizes = [2, 16], strides = [1, 1]} : vector<2x48xf32> to vector<2x16xf32>
    %96 = arith.mulf %85, %95 : vector<2x16xf32>
    %97 = arith.addf %94, %96 : vector<2x16xf32>
    %98 = math.tanh %97 : vector<2x16xf32>
    %cst_30 = arith.constant 1.000000e+00 : f32
    %99 = vector.broadcast %cst_30 : f32 to vector<2x16xf32>
    %100 = arith.subf %99, %93 : vector<2x16xf32>
    %101 = arith.mulf %100, %98 : vector<2x16xf32>
    %102 = arith.mulf %93, %71 : vector<2x16xf32>
    %103 = arith.addf %101, %102 : vector<2x16xf32>
    %c0_31 = arith.constant 0 : index
    %c0_32 = arith.constant 0 : index
    %104 = vector.load %arg4[%c0_31, %c0_32] : memref<16x48xf32, #tpu.memory_space<vmem>>, vector<16x48xf32>
    %cst_33 = arith.constant dense<0.000000e+00> : vector<2x48xf32>
    %105 = tpu.matmul %103, %104, %cst_33 {dimension_numbers = #tpu.dot_dimension_numbers<[1], [0], [0], [1], [0, 0, 1, 1], [], []>} : vector<2x16xf32>, vector<16x48xf32>, vector<2x48xf32> -> vector<2x48xf32>
    %c0_34 = arith.constant 0 : index
    %c0_35 = arith.constant 0 : index
    %106 = vector.load %arg5[%c0_34, %c0_35] : memref<1x48xf32, #tpu.memory_space<vmem>>, vector<1x48xf32>
    %107 = vector.broadcast %106 : vector<1x48xf32> to vector<2x48xf32>
    %108 = arith.addf %105, %107 : vector<2x48xf32>
    %109 = vector.extract_strided_slice %6 {offsets = [6, 0], sizes = [2, 48], strides = [1, 1]} : vector<16x48xf32> to vector<2x48xf32>
    %110 = vector.extract_strided_slice %109 {offsets = [0, 0], sizes = [2, 16], strides = [1, 1]} : vector<2x48xf32> to vector<2x16xf32>
    %111 = vector.extract_strided_slice %108 {offsets = [0, 0], sizes = [2, 16], strides = [1, 1]} : vector<2x48xf32> to vector<2x16xf32>
    %112 = arith.addf %110, %111 : vector<2x16xf32>
    %113 = arith.negf %112 : vector<2x16xf32>
    %114 = math.exp %113 : vector<2x16xf32>
    %cst_36 = arith.constant 1.000000e+00 : f32
    %115 = vector.broadcast %cst_36 : f32 to vector<2x16xf32>
    %116 = arith.addf %115, %114 : vector<2x16xf32>
    %117 = arith.divf %115, %116 : vector<2x16xf32>
    %118 = vector.extract_strided_slice %109 {offsets = [0, 16], sizes = [2, 16], strides = [1, 1]} : vector<2x48xf32> to vector<2x16xf32>
    %119 = vector.extract_strided_slice %108 {offsets = [0, 16], sizes = [2, 16], strides = [1, 1]} : vector<2x48xf32> to vector<2x16xf32>
    %120 = arith.addf %118, %119 : vector<2x16xf32>
    %121 = arith.negf %120 : vector<2x16xf32>
    %122 = math.exp %121 : vector<2x16xf32>
    %cst_37 = arith.constant 1.000000e+00 : f32
    %123 = vector.broadcast %cst_37 : f32 to vector<2x16xf32>
    %124 = arith.addf %123, %122 : vector<2x16xf32>
    %125 = arith.divf %123, %124 : vector<2x16xf32>
    %126 = vector.extract_strided_slice %109 {offsets = [0, 32], sizes = [2, 16], strides = [1, 1]} : vector<2x48xf32> to vector<2x16xf32>
    %127 = vector.extract_strided_slice %108 {offsets = [0, 32], sizes = [2, 16], strides = [1, 1]} : vector<2x48xf32> to vector<2x16xf32>
    %128 = arith.mulf %117, %127 : vector<2x16xf32>
    %129 = arith.addf %126, %128 : vector<2x16xf32>
    %130 = math.tanh %129 : vector<2x16xf32>
    %cst_38 = arith.constant 1.000000e+00 : f32
    %131 = vector.broadcast %cst_38 : f32 to vector<2x16xf32>
    %132 = arith.subf %131, %125 : vector<2x16xf32>
    %133 = arith.mulf %132, %130 : vector<2x16xf32>
    %134 = arith.mulf %125, %103 : vector<2x16xf32>
    %135 = arith.addf %133, %134 : vector<2x16xf32>
    %c0_39 = arith.constant 0 : index
    %c0_40 = arith.constant 0 : index
    %136 = vector.load %arg4[%c0_39, %c0_40] : memref<16x48xf32, #tpu.memory_space<vmem>>, vector<16x48xf32>
    %cst_41 = arith.constant dense<0.000000e+00> : vector<2x48xf32>
    %137 = tpu.matmul %135, %136, %cst_41 {dimension_numbers = #tpu.dot_dimension_numbers<[1], [0], [0], [1], [0, 0, 1, 1], [], []>} : vector<2x16xf32>, vector<16x48xf32>, vector<2x48xf32> -> vector<2x48xf32>
    %c0_42 = arith.constant 0 : index
    %c0_43 = arith.constant 0 : index
    %138 = vector.load %arg5[%c0_42, %c0_43] : memref<1x48xf32, #tpu.memory_space<vmem>>, vector<1x48xf32>
    %139 = vector.broadcast %138 : vector<1x48xf32> to vector<2x48xf32>
    %140 = arith.addf %137, %139 : vector<2x48xf32>
    %141 = vector.extract_strided_slice %6 {offsets = [8, 0], sizes = [2, 48], strides = [1, 1]} : vector<16x48xf32> to vector<2x48xf32>
    %142 = vector.extract_strided_slice %141 {offsets = [0, 0], sizes = [2, 16], strides = [1, 1]} : vector<2x48xf32> to vector<2x16xf32>
    %143 = vector.extract_strided_slice %140 {offsets = [0, 0], sizes = [2, 16], strides = [1, 1]} : vector<2x48xf32> to vector<2x16xf32>
    %144 = arith.addf %142, %143 : vector<2x16xf32>
    %145 = arith.negf %144 : vector<2x16xf32>
    %146 = math.exp %145 : vector<2x16xf32>
    %cst_44 = arith.constant 1.000000e+00 : f32
    %147 = vector.broadcast %cst_44 : f32 to vector<2x16xf32>
    %148 = arith.addf %147, %146 : vector<2x16xf32>
    %149 = arith.divf %147, %148 : vector<2x16xf32>
    %150 = vector.extract_strided_slice %141 {offsets = [0, 16], sizes = [2, 16], strides = [1, 1]} : vector<2x48xf32> to vector<2x16xf32>
    %151 = vector.extract_strided_slice %140 {offsets = [0, 16], sizes = [2, 16], strides = [1, 1]} : vector<2x48xf32> to vector<2x16xf32>
    %152 = arith.addf %150, %151 : vector<2x16xf32>
    %153 = arith.negf %152 : vector<2x16xf32>
    %154 = math.exp %153 : vector<2x16xf32>
    %cst_45 = arith.constant 1.000000e+00 : f32
    %155 = vector.broadcast %cst_45 : f32 to vector<2x16xf32>
    %156 = arith.addf %155, %154 : vector<2x16xf32>
    %157 = arith.divf %155, %156 : vector<2x16xf32>
    %158 = vector.extract_strided_slice %141 {offsets = [0, 32], sizes = [2, 16], strides = [1, 1]} : vector<2x48xf32> to vector<2x16xf32>
    %159 = vector.extract_strided_slice %140 {offsets = [0, 32], sizes = [2, 16], strides = [1, 1]} : vector<2x48xf32> to vector<2x16xf32>
    %160 = arith.mulf %149, %159 : vector<2x16xf32>
    %161 = arith.addf %158, %160 : vector<2x16xf32>
    %162 = math.tanh %161 : vector<2x16xf32>
    %cst_46 = arith.constant 1.000000e+00 : f32
    %163 = vector.broadcast %cst_46 : f32 to vector<2x16xf32>
    %164 = arith.subf %163, %157 : vector<2x16xf32>
    %165 = arith.mulf %164, %162 : vector<2x16xf32>
    %166 = arith.mulf %157, %135 : vector<2x16xf32>
    %167 = arith.addf %165, %166 : vector<2x16xf32>
    %c0_47 = arith.constant 0 : index
    %c0_48 = arith.constant 0 : index
    %168 = vector.load %arg4[%c0_47, %c0_48] : memref<16x48xf32, #tpu.memory_space<vmem>>, vector<16x48xf32>
    %cst_49 = arith.constant dense<0.000000e+00> : vector<2x48xf32>
    %169 = tpu.matmul %167, %168, %cst_49 {dimension_numbers = #tpu.dot_dimension_numbers<[1], [0], [0], [1], [0, 0, 1, 1], [], []>} : vector<2x16xf32>, vector<16x48xf32>, vector<2x48xf32> -> vector<2x48xf32>
    %c0_50 = arith.constant 0 : index
    %c0_51 = arith.constant 0 : index
    %170 = vector.load %arg5[%c0_50, %c0_51] : memref<1x48xf32, #tpu.memory_space<vmem>>, vector<1x48xf32>
    %171 = vector.broadcast %170 : vector<1x48xf32> to vector<2x48xf32>
    %172 = arith.addf %169, %171 : vector<2x48xf32>
    %173 = vector.extract_strided_slice %6 {offsets = [10, 0], sizes = [2, 48], strides = [1, 1]} : vector<16x48xf32> to vector<2x48xf32>
    %174 = vector.extract_strided_slice %173 {offsets = [0, 0], sizes = [2, 16], strides = [1, 1]} : vector<2x48xf32> to vector<2x16xf32>
    %175 = vector.extract_strided_slice %172 {offsets = [0, 0], sizes = [2, 16], strides = [1, 1]} : vector<2x48xf32> to vector<2x16xf32>
    %176 = arith.addf %174, %175 : vector<2x16xf32>
    %177 = arith.negf %176 : vector<2x16xf32>
    %178 = math.exp %177 : vector<2x16xf32>
    %cst_52 = arith.constant 1.000000e+00 : f32
    %179 = vector.broadcast %cst_52 : f32 to vector<2x16xf32>
    %180 = arith.addf %179, %178 : vector<2x16xf32>
    %181 = arith.divf %179, %180 : vector<2x16xf32>
    %182 = vector.extract_strided_slice %173 {offsets = [0, 16], sizes = [2, 16], strides = [1, 1]} : vector<2x48xf32> to vector<2x16xf32>
    %183 = vector.extract_strided_slice %172 {offsets = [0, 16], sizes = [2, 16], strides = [1, 1]} : vector<2x48xf32> to vector<2x16xf32>
    %184 = arith.addf %182, %183 : vector<2x16xf32>
    %185 = arith.negf %184 : vector<2x16xf32>
    %186 = math.exp %185 : vector<2x16xf32>
    %cst_53 = arith.constant 1.000000e+00 : f32
    %187 = vector.broadcast %cst_53 : f32 to vector<2x16xf32>
    %188 = arith.addf %187, %186 : vector<2x16xf32>
    %189 = arith.divf %187, %188 : vector<2x16xf32>
    %190 = vector.extract_strided_slice %173 {offsets = [0, 32], sizes = [2, 16], strides = [1, 1]} : vector<2x48xf32> to vector<2x16xf32>
    %191 = vector.extract_strided_slice %172 {offsets = [0, 32], sizes = [2, 16], strides = [1, 1]} : vector<2x48xf32> to vector<2x16xf32>
    %192 = arith.mulf %181, %191 : vector<2x16xf32>
    %193 = arith.addf %190, %192 : vector<2x16xf32>
    %194 = math.tanh %193 : vector<2x16xf32>
    %cst_54 = arith.constant 1.000000e+00 : f32
    %195 = vector.broadcast %cst_54 : f32 to vector<2x16xf32>
    %196 = arith.subf %195, %189 : vector<2x16xf32>
    %197 = arith.mulf %196, %194 : vector<2x16xf32>
    %198 = arith.mulf %189, %167 : vector<2x16xf32>
    %199 = arith.addf %197, %198 : vector<2x16xf32>
    %c0_55 = arith.constant 0 : index
    %c0_56 = arith.constant 0 : index
    %200 = vector.load %arg4[%c0_55, %c0_56] : memref<16x48xf32, #tpu.memory_space<vmem>>, vector<16x48xf32>
    %cst_57 = arith.constant dense<0.000000e+00> : vector<2x48xf32>
    %201 = tpu.matmul %199, %200, %cst_57 {dimension_numbers = #tpu.dot_dimension_numbers<[1], [0], [0], [1], [0, 0, 1, 1], [], []>} : vector<2x16xf32>, vector<16x48xf32>, vector<2x48xf32> -> vector<2x48xf32>
    %c0_58 = arith.constant 0 : index
    %c0_59 = arith.constant 0 : index
    %202 = vector.load %arg5[%c0_58, %c0_59] : memref<1x48xf32, #tpu.memory_space<vmem>>, vector<1x48xf32>
    %203 = vector.broadcast %202 : vector<1x48xf32> to vector<2x48xf32>
    %204 = arith.addf %201, %203 : vector<2x48xf32>
    %205 = vector.extract_strided_slice %6 {offsets = [12, 0], sizes = [2, 48], strides = [1, 1]} : vector<16x48xf32> to vector<2x48xf32>
    %206 = vector.extract_strided_slice %205 {offsets = [0, 0], sizes = [2, 16], strides = [1, 1]} : vector<2x48xf32> to vector<2x16xf32>
    %207 = vector.extract_strided_slice %204 {offsets = [0, 0], sizes = [2, 16], strides = [1, 1]} : vector<2x48xf32> to vector<2x16xf32>
    %208 = arith.addf %206, %207 : vector<2x16xf32>
    %209 = arith.negf %208 : vector<2x16xf32>
    %210 = math.exp %209 : vector<2x16xf32>
    %cst_60 = arith.constant 1.000000e+00 : f32
    %211 = vector.broadcast %cst_60 : f32 to vector<2x16xf32>
    %212 = arith.addf %211, %210 : vector<2x16xf32>
    %213 = arith.divf %211, %212 : vector<2x16xf32>
    %214 = vector.extract_strided_slice %205 {offsets = [0, 16], sizes = [2, 16], strides = [1, 1]} : vector<2x48xf32> to vector<2x16xf32>
    %215 = vector.extract_strided_slice %204 {offsets = [0, 16], sizes = [2, 16], strides = [1, 1]} : vector<2x48xf32> to vector<2x16xf32>
    %216 = arith.addf %214, %215 : vector<2x16xf32>
    %217 = arith.negf %216 : vector<2x16xf32>
    %218 = math.exp %217 : vector<2x16xf32>
    %cst_61 = arith.constant 1.000000e+00 : f32
    %219 = vector.broadcast %cst_61 : f32 to vector<2x16xf32>
    %220 = arith.addf %219, %218 : vector<2x16xf32>
    %221 = arith.divf %219, %220 : vector<2x16xf32>
    %222 = vector.extract_strided_slice %205 {offsets = [0, 32], sizes = [2, 16], strides = [1, 1]} : vector<2x48xf32> to vector<2x16xf32>
    %223 = vector.extract_strided_slice %204 {offsets = [0, 32], sizes = [2, 16], strides = [1, 1]} : vector<2x48xf32> to vector<2x16xf32>
    %224 = arith.mulf %213, %223 : vector<2x16xf32>
    %225 = arith.addf %222, %224 : vector<2x16xf32>
    %226 = math.tanh %225 : vector<2x16xf32>
    %cst_62 = arith.constant 1.000000e+00 : f32
    %227 = vector.broadcast %cst_62 : f32 to vector<2x16xf32>
    %228 = arith.subf %227, %221 : vector<2x16xf32>
    %229 = arith.mulf %228, %226 : vector<2x16xf32>
    %230 = arith.mulf %221, %199 : vector<2x16xf32>
    %231 = arith.addf %229, %230 : vector<2x16xf32>
    %c0_63 = arith.constant 0 : index
    %c0_64 = arith.constant 0 : index
    %232 = vector.load %arg4[%c0_63, %c0_64] : memref<16x48xf32, #tpu.memory_space<vmem>>, vector<16x48xf32>
    %cst_65 = arith.constant dense<0.000000e+00> : vector<2x48xf32>
    %233 = tpu.matmul %231, %232, %cst_65 {dimension_numbers = #tpu.dot_dimension_numbers<[1], [0], [0], [1], [0, 0, 1, 1], [], []>} : vector<2x16xf32>, vector<16x48xf32>, vector<2x48xf32> -> vector<2x48xf32>
    %c0_66 = arith.constant 0 : index
    %c0_67 = arith.constant 0 : index
    %234 = vector.load %arg5[%c0_66, %c0_67] : memref<1x48xf32, #tpu.memory_space<vmem>>, vector<1x48xf32>
    %235 = vector.broadcast %234 : vector<1x48xf32> to vector<2x48xf32>
    %236 = arith.addf %233, %235 : vector<2x48xf32>
    %237 = vector.extract_strided_slice %6 {offsets = [14, 0], sizes = [2, 48], strides = [1, 1]} : vector<16x48xf32> to vector<2x48xf32>
    %238 = vector.extract_strided_slice %237 {offsets = [0, 0], sizes = [2, 16], strides = [1, 1]} : vector<2x48xf32> to vector<2x16xf32>
    %239 = vector.extract_strided_slice %236 {offsets = [0, 0], sizes = [2, 16], strides = [1, 1]} : vector<2x48xf32> to vector<2x16xf32>
    %240 = arith.addf %238, %239 : vector<2x16xf32>
    %241 = arith.negf %240 : vector<2x16xf32>
    %242 = math.exp %241 : vector<2x16xf32>
    %cst_68 = arith.constant 1.000000e+00 : f32
    %243 = vector.broadcast %cst_68 : f32 to vector<2x16xf32>
    %244 = arith.addf %243, %242 : vector<2x16xf32>
    %245 = arith.divf %243, %244 : vector<2x16xf32>
    %246 = vector.extract_strided_slice %237 {offsets = [0, 16], sizes = [2, 16], strides = [1, 1]} : vector<2x48xf32> to vector<2x16xf32>
    %247 = vector.extract_strided_slice %236 {offsets = [0, 16], sizes = [2, 16], strides = [1, 1]} : vector<2x48xf32> to vector<2x16xf32>
    %248 = arith.addf %246, %247 : vector<2x16xf32>
    %249 = arith.negf %248 : vector<2x16xf32>
    %250 = math.exp %249 : vector<2x16xf32>
    %cst_69 = arith.constant 1.000000e+00 : f32
    %251 = vector.broadcast %cst_69 : f32 to vector<2x16xf32>
    %252 = arith.addf %251, %250 : vector<2x16xf32>
    %253 = arith.divf %251, %252 : vector<2x16xf32>
    %254 = vector.extract_strided_slice %237 {offsets = [0, 32], sizes = [2, 16], strides = [1, 1]} : vector<2x48xf32> to vector<2x16xf32>
    %255 = vector.extract_strided_slice %236 {offsets = [0, 32], sizes = [2, 16], strides = [1, 1]} : vector<2x48xf32> to vector<2x16xf32>
    %256 = arith.mulf %245, %255 : vector<2x16xf32>
    %257 = arith.addf %254, %256 : vector<2x16xf32>
    %258 = math.tanh %257 : vector<2x16xf32>
    %cst_70 = arith.constant 1.000000e+00 : f32
    %259 = vector.broadcast %cst_70 : f32 to vector<2x16xf32>
    %260 = arith.subf %259, %253 : vector<2x16xf32>
    %261 = arith.mulf %260, %258 : vector<2x16xf32>
    %262 = arith.mulf %253, %231 : vector<2x16xf32>
    %263 = arith.addf %261, %262 : vector<2x16xf32>
    %264 = tpu.concatenate %39, %71, %103, %135, %167, %199, %231, %263 in 0 : vector<2x16xf32>, vector<2x16xf32>, vector<2x16xf32>, vector<2x16xf32>, vector<2x16xf32>, vector<2x16xf32>, vector<2x16xf32>, vector<2x16xf32> -> vector<16x16xf32>
    %c0_71 = arith.constant 0 : index
    %c0_72 = arith.constant 0 : index
    %265 = vector.load %arg8[%c0_71, %c0_72] : memref<16x32xf32, #tpu.memory_space<vmem>>, vector<16x32xf32>
    %cst_73 = arith.constant dense<0.000000e+00> : vector<16x32xf32>
    %266 = tpu.matmul %264, %265, %cst_73 {dimension_numbers = #tpu.dot_dimension_numbers<[1], [0], [0], [1], [0, 0, 1, 1], [], []>} : vector<16x16xf32>, vector<16x32xf32>, vector<16x32xf32> -> vector<16x32xf32>
    %c0_74 = arith.constant 0 : index
    %c0_75 = arith.constant 0 : index
    %267 = vector.load %arg9[%c0_74, %c0_75] : memref<1x32xf32, #tpu.memory_space<vmem>>, vector<1x32xf32>
    %268 = vector.broadcast %267 : vector<1x32xf32> to vector<16x32xf32>
    %269 = arith.addf %266, %268 : vector<16x32xf32>
    %270 = vector.extract_strided_slice %269 {offsets = [0, 0], sizes = [16, 16], strides = [1, 1]} : vector<16x32xf32> to vector<16x16xf32>
    %271 = tpu.transpose %270, [1, 0] : vector<16x16xf32> -> vector<16x16xf32>
    %272 = vector.extract_strided_slice %269 {offsets = [0, 16], sizes = [16, 16], strides = [1, 1]} : vector<16x32xf32> to vector<16x16xf32>
    %273 = tpu.iota {dimensions = array<i32: 1>} : vector<2x128xi32>
    %c1_i32 = arith.constant 1 : i32
    %274 = vector.broadcast %c1_i32 : i32 to vector<2x128xi32>
    %275 = arith.cmpi eq, %273, %274 : vector<2x128xi32>
    %276 = arith.extui %275 : vector<2x128xi1> to vector<2x128xi32>
    %277 = arith.sitofp %276 : vector<2x128xi32> to vector<2x128xf32>
    %c0_76 = arith.constant 0 : index
    %c0_77 = arith.constant 0 : index
    %278 = vector.load %arg10[%c0_76, %c0_77] : memref<2x16xf32, #tpu.memory_space<vmem>>, vector<2x16xf32>
    %c0_78 = arith.constant 0 : index
    %c0_79 = arith.constant 0 : index
    %279 = vector.load %arg6[%c0_78, %c0_79] : memref<16x16xf32, #tpu.memory_space<vmem>>, vector<16x16xf32>
    %cst_80 = arith.constant dense<0.000000e+00> : vector<2x16xf32>
    %280 = tpu.matmul %263, %279, %cst_80 {dimension_numbers = #tpu.dot_dimension_numbers<[1], [0], [0], [1], [0, 0, 1, 1], [], []>} : vector<2x16xf32>, vector<16x16xf32>, vector<2x16xf32> -> vector<2x16xf32>
    %c0_81 = arith.constant 0 : index
    %c0_82 = arith.constant 0 : index
    %281 = vector.load %arg7[%c0_81, %c0_82] : memref<1x16xf32, #tpu.memory_space<vmem>>, vector<1x16xf32>
    %282 = vector.broadcast %281 : vector<1x16xf32> to vector<2x16xf32>
    %283 = arith.addf %280, %282 : vector<2x16xf32>
    %cst_83 = arith.constant dense<0.000000e+00> : vector<2x16xf32>
    %284 = tpu.matmul %283, %271, %cst_83 {dimension_numbers = #tpu.dot_dimension_numbers<[1], [0], [0], [1], [0, 0, 1, 1], [], []>} : vector<2x16xf32>, vector<16x16xf32>, vector<2x16xf32> -> vector<2x16xf32>
    %cst_84 = arith.constant 2.500000e-01 : f32
    %285 = vector.broadcast %cst_84 : f32 to vector<2x16xf32>
    %286 = arith.mulf %284, %285 : vector<2x16xf32>
    %287 = arith.addf %286, %278 : vector<2x16xf32>
    %cst_85 = arith.constant dense<0xFF800000> : vector<2xf32>
    %288 = vector.multi_reduction <maximumf>, %287, %cst_85 [1] : vector<2x16xf32> to vector<2xf32>
    %289 = vector.shape_cast %288 : vector<2xf32> to vector<2x1xf32>
    %290 = vector.broadcast %289 : vector<2x1xf32> to vector<2x16xf32>
    %291 = arith.subf %287, %290 : vector<2x16xf32>
    %292 = math.exp %291 : vector<2x16xf32>
    %cst_86 = arith.constant dense<0.000000e+00> : vector<2xf32>
    %293 = vector.multi_reduction <add>, %292, %cst_86 [1] : vector<2x16xf32> to vector<2xf32>
    %294 = vector.shape_cast %293 : vector<2xf32> to vector<2x1xf32>
    %295 = vector.broadcast %294 : vector<2x1xf32> to vector<2x16xf32>
    %296 = arith.divf %292, %295 : vector<2x16xf32>
    %cst_87 = arith.constant dense<0.000000e+00> : vector<2x16xf32>
    %297 = tpu.matmul %296, %272, %cst_87 {dimension_numbers = #tpu.dot_dimension_numbers<[1], [0], [0], [1], [0, 0, 1, 1], [], []>} : vector<2x16xf32>, vector<16x16xf32>, vector<2x16xf32> -> vector<2x16xf32>
    %c0_88 = arith.constant 0 : index
    %c0_89 = arith.constant 0 : index
    %298 = vector.load %arg11[%c0_88, %c0_89] : memref<128x48xf32, #tpu.memory_space<vmem>>, vector<128x48xf32>
    %cst_90 = arith.constant dense<0.000000e+00> : vector<2x48xf32>
    %299 = tpu.matmul %277, %298, %cst_90 {dimension_numbers = #tpu.dot_dimension_numbers<[1], [0], [0], [1], [0, 0, 1, 1], [], []>} : vector<2x128xf32>, vector<128x48xf32>, vector<2x48xf32> -> vector<2x48xf32>
    %c0_91 = arith.constant 0 : index
    %c0_92 = arith.constant 0 : index
    %300 = vector.load %arg12[%c0_91, %c0_92] : memref<1x48xf32, #tpu.memory_space<vmem>>, vector<1x48xf32>
    %301 = vector.broadcast %300 : vector<1x48xf32> to vector<2x48xf32>
    %302 = arith.addf %299, %301 : vector<2x48xf32>
    %c0_93 = arith.constant 0 : index
    %c0_94 = arith.constant 0 : index
    %303 = vector.load %arg13[%c0_93, %c0_94] : memref<16x48xf32, #tpu.memory_space<vmem>>, vector<16x48xf32>
    %cst_95 = arith.constant dense<0.000000e+00> : vector<2x48xf32>
    %304 = tpu.matmul %297, %303, %cst_95 {dimension_numbers = #tpu.dot_dimension_numbers<[1], [0], [0], [1], [0, 0, 1, 1], [], []>} : vector<2x16xf32>, vector<16x48xf32>, vector<2x48xf32> -> vector<2x48xf32>
    %c0_96 = arith.constant 0 : index
    %c0_97 = arith.constant 0 : index
    %305 = vector.load %arg14[%c0_96, %c0_97] : memref<1x48xf32, #tpu.memory_space<vmem>>, vector<1x48xf32>
    %306 = vector.broadcast %305 : vector<1x48xf32> to vector<2x48xf32>
    %307 = arith.addf %304, %306 : vector<2x48xf32>
    %308 = vector.extract_strided_slice %302 {offsets = [0, 0], sizes = [2, 16], strides = [1, 1]} : vector<2x48xf32> to vector<2x16xf32>
    %309 = vector.extract_strided_slice %307 {offsets = [0, 0], sizes = [2, 16], strides = [1, 1]} : vector<2x48xf32> to vector<2x16xf32>
    %310 = arith.addf %308, %309 : vector<2x16xf32>
    %311 = arith.negf %310 : vector<2x16xf32>
    %312 = math.exp %311 : vector<2x16xf32>
    %cst_98 = arith.constant 1.000000e+00 : f32
    %313 = vector.broadcast %cst_98 : f32 to vector<2x16xf32>
    %314 = arith.addf %313, %312 : vector<2x16xf32>
    %315 = arith.divf %313, %314 : vector<2x16xf32>
    %316 = vector.extract_strided_slice %302 {offsets = [0, 16], sizes = [2, 16], strides = [1, 1]} : vector<2x48xf32> to vector<2x16xf32>
    %317 = vector.extract_strided_slice %307 {offsets = [0, 16], sizes = [2, 16], strides = [1, 1]} : vector<2x48xf32> to vector<2x16xf32>
    %318 = arith.addf %316, %317 : vector<2x16xf32>
    %319 = arith.negf %318 : vector<2x16xf32>
    %320 = math.exp %319 : vector<2x16xf32>
    %cst_99 = arith.constant 1.000000e+00 : f32
    %321 = vector.broadcast %cst_99 : f32 to vector<2x16xf32>
    %322 = arith.addf %321, %320 : vector<2x16xf32>
    %323 = arith.divf %321, %322 : vector<2x16xf32>
    %324 = vector.extract_strided_slice %302 {offsets = [0, 32], sizes = [2, 16], strides = [1, 1]} : vector<2x48xf32> to vector<2x16xf32>
    %325 = vector.extract_strided_slice %307 {offsets = [0, 32], sizes = [2, 16], strides = [1, 1]} : vector<2x48xf32> to vector<2x16xf32>
    %326 = arith.mulf %315, %325 : vector<2x16xf32>
    %327 = arith.addf %324, %326 : vector<2x16xf32>
    %328 = math.tanh %327 : vector<2x16xf32>
    %cst_100 = arith.constant 1.000000e+00 : f32
    %329 = vector.broadcast %cst_100 : f32 to vector<2x16xf32>
    %330 = arith.subf %329, %323 : vector<2x16xf32>
    %331 = arith.mulf %330, %328 : vector<2x16xf32>
    %332 = arith.mulf %323, %297 : vector<2x16xf32>
    %333 = arith.addf %331, %332 : vector<2x16xf32>
    %c0_101 = arith.constant 0 : index
    %c0_102 = arith.constant 0 : index
    %334 = vector.load %arg15[%c0_101, %c0_102] : memref<16x128xf32, #tpu.memory_space<vmem>>, vector<16x128xf32>
    %cst_103 = arith.constant dense<0.000000e+00> : vector<2x128xf32>
    %335 = tpu.matmul %333, %334, %cst_103 {dimension_numbers = #tpu.dot_dimension_numbers<[1], [0], [0], [1], [0, 0, 1, 1], [], []>} : vector<2x16xf32>, vector<16x128xf32>, vector<2x128xf32> -> vector<2x128xf32>
    %c0_104 = arith.constant 0 : index
    %c0_105 = arith.constant 0 : index
    %336 = vector.load %arg16[%c0_104, %c0_105] : memref<1x128xf32, #tpu.memory_space<vmem>>, vector<1x128xf32>
    %337 = vector.broadcast %336 : vector<1x128xf32> to vector<2x128xf32>
    %338 = arith.addf %335, %337 : vector<2x128xf32>
    %c0_106 = arith.constant 0 : index
    %c0_107 = arith.constant 0 : index
    %c0_108 = arith.constant 0 : index
    %339 = vector.load %arg17[%c0_106, %c0_107, %c0_108] : memref<1x2x768xf32, #tpu.memory_space<vmem>>, vector<1x2x128xf32>
    %340 = vector.shape_cast %339 : vector<1x2x128xf32> to vector<2x128xf32>
    %341 = vector.shape_cast %338 : vector<2x128xf32> to vector<1x2x128xf32>
    tpu.vector_store %arg17[%c0_106, %c0_107, %c0_108], %341 {strides = array<i32>} : memref<1x2x768xf32, #tpu.memory_space<vmem>>, vector<1x2x128xf32>,
    %cst_109 = arith.constant dense<0xFF800000> : vector<2xf32>
    %342 = vector.multi_reduction <maximumf>, %338, %cst_109 [1] : vector<2x128xf32> to vector<2xf32>
    %343 = vector.shape_cast %342 : vector<2xf32> to vector<2x1xf32>
    %344 = vector.broadcast %343 : vector<2x1xf32> to vector<2x128xf32>
    %345 = arith.cmpf oeq, %338, %344 : vector<2x128xf32>
    %c128_i32 = arith.constant 128 : i32
    %346 = vector.broadcast %c128_i32 : i32 to vector<2x128xi32>
    %347 = arith.select %345, %273, %346 : vector<2x128xi1>, vector<2x128xi32>
    %cst_110 = arith.constant dense<2147483647> : vector<2xi32>
    %348 = vector.multi_reduction <minsi>, %347, %cst_110 [1] : vector<2x128xi32> to vector<2xi32>
    %349 = vector.shape_cast %348 : vector<2xi32> to vector<2x1xi32>
    %350 = vector.broadcast %349 : vector<2x1xi32> to vector<2x128xi32>
    %351 = arith.cmpi eq, %273, %350 : vector<2x128xi32>
    %352 = arith.extui %351 : vector<2x128xi1> to vector<2x128xi32>
    %353 = arith.sitofp %352 : vector<2x128xi32> to vector<2x128xf32>
    %c0_111 = arith.constant 0 : index
    %c0_112 = arith.constant 0 : index
    %354 = vector.load %arg6[%c0_111, %c0_112] : memref<16x16xf32, #tpu.memory_space<vmem>>, vector<16x16xf32>
    %cst_113 = arith.constant dense<0.000000e+00> : vector<2x16xf32>
    %355 = tpu.matmul %333, %354, %cst_113 {dimension_numbers = #tpu.dot_dimension_numbers<[1], [0], [0], [1], [0, 0, 1, 1], [], []>} : vector<2x16xf32>, vector<16x16xf32>, vector<2x16xf32> -> vector<2x16xf32>
    %c0_114 = arith.constant 0 : index
    %c0_115 = arith.constant 0 : index
    %356 = vector.load %arg7[%c0_114, %c0_115] : memref<1x16xf32, #tpu.memory_space<vmem>>, vector<1x16xf32>
    %357 = vector.broadcast %356 : vector<1x16xf32> to vector<2x16xf32>
    %358 = arith.addf %355, %357 : vector<2x16xf32>
    %cst_116 = arith.constant dense<0.000000e+00> : vector<2x16xf32>
    %359 = tpu.matmul %358, %271, %cst_116 {dimension_numbers = #tpu.dot_dimension_numbers<[1], [0], [0], [1], [0, 0, 1, 1], [], []>} : vector<2x16xf32>, vector<16x16xf32>, vector<2x16xf32> -> vector<2x16xf32>
    %cst_117 = arith.constant 2.500000e-01 : f32
    %360 = vector.broadcast %cst_117 : f32 to vector<2x16xf32>
    %361 = arith.mulf %359, %360 : vector<2x16xf32>
    %362 = arith.addf %361, %278 : vector<2x16xf32>
    %cst_118 = arith.constant dense<0xFF800000> : vector<2xf32>
    %363 = vector.multi_reduction <maximumf>, %362, %cst_118 [1] : vector<2x16xf32> to vector<2xf32>
    %364 = vector.shape_cast %363 : vector<2xf32> to vector<2x1xf32>
    %365 = vector.broadcast %364 : vector<2x1xf32> to vector<2x16xf32>
    %366 = arith.subf %362, %365 : vector<2x16xf32>
    %367 = math.exp %366 : vector<2x16xf32>
    %cst_119 = arith.constant dense<0.000000e+00> : vector<2xf32>
    %368 = vector.multi_reduction <add>, %367, %cst_119 [1] : vector<2x16xf32> to vector<2xf32>
    %369 = vector.shape_cast %368 : vector<2xf32> to vector<2x1xf32>
    %370 = vector.broadcast %369 : vector<2x1xf32> to vector<2x16xf32>
    %371 = arith.divf %367, %370 : vector<2x16xf32>
    %cst_120 = arith.constant dense<0.000000e+00> : vector<2x16xf32>
    %372 = tpu.matmul %371, %272, %cst_120 {dimension_numbers = #tpu.dot_dimension_numbers<[1], [0], [0], [1], [0, 0, 1, 1], [], []>} : vector<2x16xf32>, vector<16x16xf32>, vector<2x16xf32> -> vector<2x16xf32>
    %c0_121 = arith.constant 0 : index
    %c0_122 = arith.constant 0 : index
    %373 = vector.load %arg11[%c0_121, %c0_122] : memref<128x48xf32, #tpu.memory_space<vmem>>, vector<128x48xf32>
    %cst_123 = arith.constant dense<0.000000e+00> : vector<2x48xf32>
    %374 = tpu.matmul %353, %373, %cst_123 {dimension_numbers = #tpu.dot_dimension_numbers<[1], [0], [0], [1], [0, 0, 1, 1], [], []>} : vector<2x128xf32>, vector<128x48xf32>, vector<2x48xf32> -> vector<2x48xf32>
    %c0_124 = arith.constant 0 : index
    %c0_125 = arith.constant 0 : index
    %375 = vector.load %arg12[%c0_124, %c0_125] : memref<1x48xf32, #tpu.memory_space<vmem>>, vector<1x48xf32>
    %376 = vector.broadcast %375 : vector<1x48xf32> to vector<2x48xf32>
    %377 = arith.addf %374, %376 : vector<2x48xf32>
    %c0_126 = arith.constant 0 : index
    %c0_127 = arith.constant 0 : index
    %378 = vector.load %arg13[%c0_126, %c0_127] : memref<16x48xf32, #tpu.memory_space<vmem>>, vector<16x48xf32>
    %cst_128 = arith.constant dense<0.000000e+00> : vector<2x48xf32>
    %379 = tpu.matmul %372, %378, %cst_128 {dimension_numbers = #tpu.dot_dimension_numbers<[1], [0], [0], [1], [0, 0, 1, 1], [], []>} : vector<2x16xf32>, vector<16x48xf32>, vector<2x48xf32> -> vector<2x48xf32>
    %c0_129 = arith.constant 0 : index
    %c0_130 = arith.constant 0 : index
    %380 = vector.load %arg14[%c0_129, %c0_130] : memref<1x48xf32, #tpu.memory_space<vmem>>, vector<1x48xf32>
    %381 = vector.broadcast %380 : vector<1x48xf32> to vector<2x48xf32>
    %382 = arith.addf %379, %381 : vector<2x48xf32>
    %383 = vector.extract_strided_slice %377 {offsets = [0, 0], sizes = [2, 16], strides = [1, 1]} : vector<2x48xf32> to vector<2x16xf32>
    %384 = vector.extract_strided_slice %382 {offsets = [0, 0], sizes = [2, 16], strides = [1, 1]} : vector<2x48xf32> to vector<2x16xf32>
    %385 = arith.addf %383, %384 : vector<2x16xf32>
    %386 = arith.negf %385 : vector<2x16xf32>
    %387 = math.exp %386 : vector<2x16xf32>
    %cst_131 = arith.constant 1.000000e+00 : f32
    %388 = vector.broadcast %cst_131 : f32 to vector<2x16xf32>
    %389 = arith.addf %388, %387 : vector<2x16xf32>
    %390 = arith.divf %388, %389 : vector<2x16xf32>
    %391 = vector.extract_strided_slice %377 {offsets = [0, 16], sizes = [2, 16], strides = [1, 1]} : vector<2x48xf32> to vector<2x16xf32>
    %392 = vector.extract_strided_slice %382 {offsets = [0, 16], sizes = [2, 16], strides = [1, 1]} : vector<2x48xf32> to vector<2x16xf32>
    %393 = arith.addf %391, %392 : vector<2x16xf32>
    %394 = arith.negf %393 : vector<2x16xf32>
    %395 = math.exp %394 : vector<2x16xf32>
    %cst_132 = arith.constant 1.000000e+00 : f32
    %396 = vector.broadcast %cst_132 : f32 to vector<2x16xf32>
    %397 = arith.addf %396, %395 : vector<2x16xf32>
    %398 = arith.divf %396, %397 : vector<2x16xf32>
    %399 = vector.extract_strided_slice %377 {offsets = [0, 32], sizes = [2, 16], strides = [1, 1]} : vector<2x48xf32> to vector<2x16xf32>
    %400 = vector.extract_strided_slice %382 {offsets = [0, 32], sizes = [2, 16], strides = [1, 1]} : vector<2x48xf32> to vector<2x16xf32>
    %401 = arith.mulf %390, %400 : vector<2x16xf32>
    %402 = arith.addf %399, %401 : vector<2x16xf32>
    %403 = math.tanh %402 : vector<2x16xf32>
    %cst_133 = arith.constant 1.000000e+00 : f32
    %404 = vector.broadcast %cst_133 : f32 to vector<2x16xf32>
    %405 = arith.subf %404, %398 : vector<2x16xf32>
    %406 = arith.mulf %405, %403 : vector<2x16xf32>
    %407 = arith.mulf %398, %372 : vector<2x16xf32>
    %408 = arith.addf %406, %407 : vector<2x16xf32>
    %c0_134 = arith.constant 0 : index
    %c0_135 = arith.constant 0 : index
    %409 = vector.load %arg15[%c0_134, %c0_135] : memref<16x128xf32, #tpu.memory_space<vmem>>, vector<16x128xf32>
    %cst_136 = arith.constant dense<0.000000e+00> : vector<2x128xf32>
    %410 = tpu.matmul %408, %409, %cst_136 {dimension_numbers = #tpu.dot_dimension_numbers<[1], [0], [0], [1], [0, 0, 1, 1], [], []>} : vector<2x16xf32>, vector<16x128xf32>, vector<2x128xf32> -> vector<2x128xf32>
    %c0_137 = arith.constant 0 : index
    %c0_138 = arith.constant 0 : index
    %411 = vector.load %arg16[%c0_137, %c0_138] : memref<1x128xf32, #tpu.memory_space<vmem>>, vector<1x128xf32>
    %412 = vector.broadcast %411 : vector<1x128xf32> to vector<2x128xf32>
    %413 = arith.addf %410, %412 : vector<2x128xf32>
    %c0_139 = arith.constant 0 : index
    %c0_140 = arith.constant 0 : index
    %c128 = arith.constant 128 : index
    %414 = vector.load %arg17[%c0_139, %c0_140, %c128] : memref<1x2x768xf32, #tpu.memory_space<vmem>>, vector<1x2x128xf32>
    %415 = vector.shape_cast %414 : vector<1x2x128xf32> to vector<2x128xf32>
    %416 = vector.shape_cast %413 : vector<2x128xf32> to vector<1x2x128xf32>
    tpu.vector_store %arg17[%c0_139, %c0_140, %c128], %416 {strides = array<i32>} : memref<1x2x768xf32, #tpu.memory_space<vmem>>, vector<1x2x128xf32>,
    %cst_141 = arith.constant dense<0xFF800000> : vector<2xf32>
    %417 = vector.multi_reduction <maximumf>, %413, %cst_141 [1] : vector<2x128xf32> to vector<2xf32>
    %418 = vector.shape_cast %417 : vector<2xf32> to vector<2x1xf32>
    %419 = vector.broadcast %418 : vector<2x1xf32> to vector<2x128xf32>
    %420 = arith.cmpf oeq, %413, %419 : vector<2x128xf32>
    %c128_i32_142 = arith.constant 128 : i32
    %421 = vector.broadcast %c128_i32_142 : i32 to vector<2x128xi32>
    %422 = arith.select %420, %273, %421 : vector<2x128xi1>, vector<2x128xi32>
    %cst_143 = arith.constant dense<2147483647> : vector<2xi32>
    %423 = vector.multi_reduction <minsi>, %422, %cst_143 [1] : vector<2x128xi32> to vector<2xi32>
    %424 = vector.shape_cast %423 : vector<2xi32> to vector<2x1xi32>
    %425 = vector.broadcast %424 : vector<2x1xi32> to vector<2x128xi32>
    %426 = arith.cmpi eq, %273, %425 : vector<2x128xi32>
    %427 = arith.extui %426 : vector<2x128xi1> to vector<2x128xi32>
    %428 = arith.sitofp %427 : vector<2x128xi32> to vector<2x128xf32>
    %c0_144 = arith.constant 0 : index
    %c0_145 = arith.constant 0 : index
    %429 = vector.load %arg6[%c0_144, %c0_145] : memref<16x16xf32, #tpu.memory_space<vmem>>, vector<16x16xf32>
    %cst_146 = arith.constant dense<0.000000e+00> : vector<2x16xf32>
    %430 = tpu.matmul %408, %429, %cst_146 {dimension_numbers = #tpu.dot_dimension_numbers<[1], [0], [0], [1], [0, 0, 1, 1], [], []>} : vector<2x16xf32>, vector<16x16xf32>, vector<2x16xf32> -> vector<2x16xf32>
    %c0_147 = arith.constant 0 : index
    %c0_148 = arith.constant 0 : index
    %431 = vector.load %arg7[%c0_147, %c0_148] : memref<1x16xf32, #tpu.memory_space<vmem>>, vector<1x16xf32>
    %432 = vector.broadcast %431 : vector<1x16xf32> to vector<2x16xf32>
    %433 = arith.addf %430, %432 : vector<2x16xf32>
    %cst_149 = arith.constant dense<0.000000e+00> : vector<2x16xf32>
    %434 = tpu.matmul %433, %271, %cst_149 {dimension_numbers = #tpu.dot_dimension_numbers<[1], [0], [0], [1], [0, 0, 1, 1], [], []>} : vector<2x16xf32>, vector<16x16xf32>, vector<2x16xf32> -> vector<2x16xf32>
    %cst_150 = arith.constant 2.500000e-01 : f32
    %435 = vector.broadcast %cst_150 : f32 to vector<2x16xf32>
    %436 = arith.mulf %434, %435 : vector<2x16xf32>
    %437 = arith.addf %436, %278 : vector<2x16xf32>
    %cst_151 = arith.constant dense<0xFF800000> : vector<2xf32>
    %438 = vector.multi_reduction <maximumf>, %437, %cst_151 [1] : vector<2x16xf32> to vector<2xf32>
    %439 = vector.shape_cast %438 : vector<2xf32> to vector<2x1xf32>
    %440 = vector.broadcast %439 : vector<2x1xf32> to vector<2x16xf32>
    %441 = arith.subf %437, %440 : vector<2x16xf32>
    %442 = math.exp %441 : vector<2x16xf32>
    %cst_152 = arith.constant dense<0.000000e+00> : vector<2xf32>
    %443 = vector.multi_reduction <add>, %442, %cst_152 [1] : vector<2x16xf32> to vector<2xf32>
    %444 = vector.shape_cast %443 : vector<2xf32> to vector<2x1xf32>
    %445 = vector.broadcast %444 : vector<2x1xf32> to vector<2x16xf32>
    %446 = arith.divf %442, %445 : vector<2x16xf32>
    %cst_153 = arith.constant dense<0.000000e+00> : vector<2x16xf32>
    %447 = tpu.matmul %446, %272, %cst_153 {dimension_numbers = #tpu.dot_dimension_numbers<[1], [0], [0], [1], [0, 0, 1, 1], [], []>} : vector<2x16xf32>, vector<16x16xf32>, vector<2x16xf32> -> vector<2x16xf32>
    %c0_154 = arith.constant 0 : index
    %c0_155 = arith.constant 0 : index
    %448 = vector.load %arg11[%c0_154, %c0_155] : memref<128x48xf32, #tpu.memory_space<vmem>>, vector<128x48xf32>
    %cst_156 = arith.constant dense<0.000000e+00> : vector<2x48xf32>
    %449 = tpu.matmul %428, %448, %cst_156 {dimension_numbers = #tpu.dot_dimension_numbers<[1], [0], [0], [1], [0, 0, 1, 1], [], []>} : vector<2x128xf32>, vector<128x48xf32>, vector<2x48xf32> -> vector<2x48xf32>
    %c0_157 = arith.constant 0 : index
    %c0_158 = arith.constant 0 : index
    %450 = vector.load %arg12[%c0_157, %c0_158] : memref<1x48xf32, #tpu.memory_space<vmem>>, vector<1x48xf32>
    %451 = vector.broadcast %450 : vector<1x48xf32> to vector<2x48xf32>
    %452 = arith.addf %449, %451 : vector<2x48xf32>
    %c0_159 = arith.constant 0 : index
    %c0_160 = arith.constant 0 : index
    %453 = vector.load %arg13[%c0_159, %c0_160] : memref<16x48xf32, #tpu.memory_space<vmem>>, vector<16x48xf32>
    %cst_161 = arith.constant dense<0.000000e+00> : vector<2x48xf32>
    %454 = tpu.matmul %447, %453, %cst_161 {dimension_numbers = #tpu.dot_dimension_numbers<[1], [0], [0], [1], [0, 0, 1, 1], [], []>} : vector<2x16xf32>, vector<16x48xf32>, vector<2x48xf32> -> vector<2x48xf32>
    %c0_162 = arith.constant 0 : index
    %c0_163 = arith.constant 0 : index
    %455 = vector.load %arg14[%c0_162, %c0_163] : memref<1x48xf32, #tpu.memory_space<vmem>>, vector<1x48xf32>
    %456 = vector.broadcast %455 : vector<1x48xf32> to vector<2x48xf32>
    %457 = arith.addf %454, %456 : vector<2x48xf32>
    %458 = vector.extract_strided_slice %452 {offsets = [0, 0], sizes = [2, 16], strides = [1, 1]} : vector<2x48xf32> to vector<2x16xf32>
    %459 = vector.extract_strided_slice %457 {offsets = [0, 0], sizes = [2, 16], strides = [1, 1]} : vector<2x48xf32> to vector<2x16xf32>
    %460 = arith.addf %458, %459 : vector<2x16xf32>
    %461 = arith.negf %460 : vector<2x16xf32>
    %462 = math.exp %461 : vector<2x16xf32>
    %cst_164 = arith.constant 1.000000e+00 : f32
    %463 = vector.broadcast %cst_164 : f32 to vector<2x16xf32>
    %464 = arith.addf %463, %462 : vector<2x16xf32>
    %465 = arith.divf %463, %464 : vector<2x16xf32>
    %466 = vector.extract_strided_slice %452 {offsets = [0, 16], sizes = [2, 16], strides = [1, 1]} : vector<2x48xf32> to vector<2x16xf32>
    %467 = vector.extract_strided_slice %457 {offsets = [0, 16], sizes = [2, 16], strides = [1, 1]} : vector<2x48xf32> to vector<2x16xf32>
    %468 = arith.addf %466, %467 : vector<2x16xf32>
    %469 = arith.negf %468 : vector<2x16xf32>
    %470 = math.exp %469 : vector<2x16xf32>
    %cst_165 = arith.constant 1.000000e+00 : f32
    %471 = vector.broadcast %cst_165 : f32 to vector<2x16xf32>
    %472 = arith.addf %471, %470 : vector<2x16xf32>
    %473 = arith.divf %471, %472 : vector<2x16xf32>
    %474 = vector.extract_strided_slice %452 {offsets = [0, 32], sizes = [2, 16], strides = [1, 1]} : vector<2x48xf32> to vector<2x16xf32>
    %475 = vector.extract_strided_slice %457 {offsets = [0, 32], sizes = [2, 16], strides = [1, 1]} : vector<2x48xf32> to vector<2x16xf32>
    %476 = arith.mulf %465, %475 : vector<2x16xf32>
    %477 = arith.addf %474, %476 : vector<2x16xf32>
    %478 = math.tanh %477 : vector<2x16xf32>
    %cst_166 = arith.constant 1.000000e+00 : f32
    %479 = vector.broadcast %cst_166 : f32 to vector<2x16xf32>
    %480 = arith.subf %479, %473 : vector<2x16xf32>
    %481 = arith.mulf %480, %478 : vector<2x16xf32>
    %482 = arith.mulf %473, %447 : vector<2x16xf32>
    %483 = arith.addf %481, %482 : vector<2x16xf32>
    %c0_167 = arith.constant 0 : index
    %c0_168 = arith.constant 0 : index
    %484 = vector.load %arg15[%c0_167, %c0_168] : memref<16x128xf32, #tpu.memory_space<vmem>>, vector<16x128xf32>
    %cst_169 = arith.constant dense<0.000000e+00> : vector<2x128xf32>
    %485 = tpu.matmul %483, %484, %cst_169 {dimension_numbers = #tpu.dot_dimension_numbers<[1], [0], [0], [1], [0, 0, 1, 1], [], []>} : vector<2x16xf32>, vector<16x128xf32>, vector<2x128xf32> -> vector<2x128xf32>
    %c0_170 = arith.constant 0 : index
    %c0_171 = arith.constant 0 : index
    %486 = vector.load %arg16[%c0_170, %c0_171] : memref<1x128xf32, #tpu.memory_space<vmem>>, vector<1x128xf32>
    %487 = vector.broadcast %486 : vector<1x128xf32> to vector<2x128xf32>
    %488 = arith.addf %485, %487 : vector<2x128xf32>
    %c0_172 = arith.constant 0 : index
    %c0_173 = arith.constant 0 : index
    %c256 = arith.constant 256 : index
    %489 = vector.load %arg17[%c0_172, %c0_173, %c256] : memref<1x2x768xf32, #tpu.memory_space<vmem>>, vector<1x2x128xf32>
    %490 = vector.shape_cast %489 : vector<1x2x128xf32> to vector<2x128xf32>
    %491 = vector.shape_cast %488 : vector<2x128xf32> to vector<1x2x128xf32>
    tpu.vector_store %arg17[%c0_172, %c0_173, %c256], %491 {strides = array<i32>} : memref<1x2x768xf32, #tpu.memory_space<vmem>>, vector<1x2x128xf32>,
    %cst_174 = arith.constant dense<0xFF800000> : vector<2xf32>
    %492 = vector.multi_reduction <maximumf>, %488, %cst_174 [1] : vector<2x128xf32> to vector<2xf32>
    %493 = vector.shape_cast %492 : vector<2xf32> to vector<2x1xf32>
    %494 = vector.broadcast %493 : vector<2x1xf32> to vector<2x128xf32>
    %495 = arith.cmpf oeq, %488, %494 : vector<2x128xf32>
    %c128_i32_175 = arith.constant 128 : i32
    %496 = vector.broadcast %c128_i32_175 : i32 to vector<2x128xi32>
    %497 = arith.select %495, %273, %496 : vector<2x128xi1>, vector<2x128xi32>
    %cst_176 = arith.constant dense<2147483647> : vector<2xi32>
    %498 = vector.multi_reduction <minsi>, %497, %cst_176 [1] : vector<2x128xi32> to vector<2xi32>
    %499 = vector.shape_cast %498 : vector<2xi32> to vector<2x1xi32>
    %500 = vector.broadcast %499 : vector<2x1xi32> to vector<2x128xi32>
    %501 = arith.cmpi eq, %273, %500 : vector<2x128xi32>
    %502 = arith.extui %501 : vector<2x128xi1> to vector<2x128xi32>
    %503 = arith.sitofp %502 : vector<2x128xi32> to vector<2x128xf32>
    %c0_177 = arith.constant 0 : index
    %c0_178 = arith.constant 0 : index
    %504 = vector.load %arg6[%c0_177, %c0_178] : memref<16x16xf32, #tpu.memory_space<vmem>>, vector<16x16xf32>
    %cst_179 = arith.constant dense<0.000000e+00> : vector<2x16xf32>
    %505 = tpu.matmul %483, %504, %cst_179 {dimension_numbers = #tpu.dot_dimension_numbers<[1], [0], [0], [1], [0, 0, 1, 1], [], []>} : vector<2x16xf32>, vector<16x16xf32>, vector<2x16xf32> -> vector<2x16xf32>
    %c0_180 = arith.constant 0 : index
    %c0_181 = arith.constant 0 : index
    %506 = vector.load %arg7[%c0_180, %c0_181] : memref<1x16xf32, #tpu.memory_space<vmem>>, vector<1x16xf32>
    %507 = vector.broadcast %506 : vector<1x16xf32> to vector<2x16xf32>
    %508 = arith.addf %505, %507 : vector<2x16xf32>
    %cst_182 = arith.constant dense<0.000000e+00> : vector<2x16xf32>
    %509 = tpu.matmul %508, %271, %cst_182 {dimension_numbers = #tpu.dot_dimension_numbers<[1], [0], [0], [1], [0, 0, 1, 1], [], []>} : vector<2x16xf32>, vector<16x16xf32>, vector<2x16xf32> -> vector<2x16xf32>
    %cst_183 = arith.constant 2.500000e-01 : f32
    %510 = vector.broadcast %cst_183 : f32 to vector<2x16xf32>
    %511 = arith.mulf %509, %510 : vector<2x16xf32>
    %512 = arith.addf %511, %278 : vector<2x16xf32>
    %cst_184 = arith.constant dense<0xFF800000> : vector<2xf32>
    %513 = vector.multi_reduction <maximumf>, %512, %cst_184 [1] : vector<2x16xf32> to vector<2xf32>
    %514 = vector.shape_cast %513 : vector<2xf32> to vector<2x1xf32>
    %515 = vector.broadcast %514 : vector<2x1xf32> to vector<2x16xf32>
    %516 = arith.subf %512, %515 : vector<2x16xf32>
    %517 = math.exp %516 : vector<2x16xf32>
    %cst_185 = arith.constant dense<0.000000e+00> : vector<2xf32>
    %518 = vector.multi_reduction <add>, %517, %cst_185 [1] : vector<2x16xf32> to vector<2xf32>
    %519 = vector.shape_cast %518 : vector<2xf32> to vector<2x1xf32>
    %520 = vector.broadcast %519 : vector<2x1xf32> to vector<2x16xf32>
    %521 = arith.divf %517, %520 : vector<2x16xf32>
    %cst_186 = arith.constant dense<0.000000e+00> : vector<2x16xf32>
    %522 = tpu.matmul %521, %272, %cst_186 {dimension_numbers = #tpu.dot_dimension_numbers<[1], [0], [0], [1], [0, 0, 1, 1], [], []>} : vector<2x16xf32>, vector<16x16xf32>, vector<2x16xf32> -> vector<2x16xf32>
    %c0_187 = arith.constant 0 : index
    %c0_188 = arith.constant 0 : index
    %523 = vector.load %arg11[%c0_187, %c0_188] : memref<128x48xf32, #tpu.memory_space<vmem>>, vector<128x48xf32>
    %cst_189 = arith.constant dense<0.000000e+00> : vector<2x48xf32>
    %524 = tpu.matmul %503, %523, %cst_189 {dimension_numbers = #tpu.dot_dimension_numbers<[1], [0], [0], [1], [0, 0, 1, 1], [], []>} : vector<2x128xf32>, vector<128x48xf32>, vector<2x48xf32> -> vector<2x48xf32>
    %c0_190 = arith.constant 0 : index
    %c0_191 = arith.constant 0 : index
    %525 = vector.load %arg12[%c0_190, %c0_191] : memref<1x48xf32, #tpu.memory_space<vmem>>, vector<1x48xf32>
    %526 = vector.broadcast %525 : vector<1x48xf32> to vector<2x48xf32>
    %527 = arith.addf %524, %526 : vector<2x48xf32>
    %c0_192 = arith.constant 0 : index
    %c0_193 = arith.constant 0 : index
    %528 = vector.load %arg13[%c0_192, %c0_193] : memref<16x48xf32, #tpu.memory_space<vmem>>, vector<16x48xf32>
    %cst_194 = arith.constant dense<0.000000e+00> : vector<2x48xf32>
    %529 = tpu.matmul %522, %528, %cst_194 {dimension_numbers = #tpu.dot_dimension_numbers<[1], [0], [0], [1], [0, 0, 1, 1], [], []>} : vector<2x16xf32>, vector<16x48xf32>, vector<2x48xf32> -> vector<2x48xf32>
    %c0_195 = arith.constant 0 : index
    %c0_196 = arith.constant 0 : index
    %530 = vector.load %arg14[%c0_195, %c0_196] : memref<1x48xf32, #tpu.memory_space<vmem>>, vector<1x48xf32>
    %531 = vector.broadcast %530 : vector<1x48xf32> to vector<2x48xf32>
    %532 = arith.addf %529, %531 : vector<2x48xf32>
    %533 = vector.extract_strided_slice %527 {offsets = [0, 0], sizes = [2, 16], strides = [1, 1]} : vector<2x48xf32> to vector<2x16xf32>
    %534 = vector.extract_strided_slice %532 {offsets = [0, 0], sizes = [2, 16], strides = [1, 1]} : vector<2x48xf32> to vector<2x16xf32>
    %535 = arith.addf %533, %534 : vector<2x16xf32>
    %536 = arith.negf %535 : vector<2x16xf32>
    %537 = math.exp %536 : vector<2x16xf32>
    %cst_197 = arith.constant 1.000000e+00 : f32
    %538 = vector.broadcast %cst_197 : f32 to vector<2x16xf32>
    %539 = arith.addf %538, %537 : vector<2x16xf32>
    %540 = arith.divf %538, %539 : vector<2x16xf32>
    %541 = vector.extract_strided_slice %527 {offsets = [0, 16], sizes = [2, 16], strides = [1, 1]} : vector<2x48xf32> to vector<2x16xf32>
    %542 = vector.extract_strided_slice %532 {offsets = [0, 16], sizes = [2, 16], strides = [1, 1]} : vector<2x48xf32> to vector<2x16xf32>
    %543 = arith.addf %541, %542 : vector<2x16xf32>
    %544 = arith.negf %543 : vector<2x16xf32>
    %545 = math.exp %544 : vector<2x16xf32>
    %cst_198 = arith.constant 1.000000e+00 : f32
    %546 = vector.broadcast %cst_198 : f32 to vector<2x16xf32>
    %547 = arith.addf %546, %545 : vector<2x16xf32>
    %548 = arith.divf %546, %547 : vector<2x16xf32>
    %549 = vector.extract_strided_slice %527 {offsets = [0, 32], sizes = [2, 16], strides = [1, 1]} : vector<2x48xf32> to vector<2x16xf32>
    %550 = vector.extract_strided_slice %532 {offsets = [0, 32], sizes = [2, 16], strides = [1, 1]} : vector<2x48xf32> to vector<2x16xf32>
    %551 = arith.mulf %540, %550 : vector<2x16xf32>
    %552 = arith.addf %549, %551 : vector<2x16xf32>
    %553 = math.tanh %552 : vector<2x16xf32>
    %cst_199 = arith.constant 1.000000e+00 : f32
    %554 = vector.broadcast %cst_199 : f32 to vector<2x16xf32>
    %555 = arith.subf %554, %548 : vector<2x16xf32>
    %556 = arith.mulf %555, %553 : vector<2x16xf32>
    %557 = arith.mulf %548, %522 : vector<2x16xf32>
    %558 = arith.addf %556, %557 : vector<2x16xf32>
    %c0_200 = arith.constant 0 : index
    %c0_201 = arith.constant 0 : index
    %559 = vector.load %arg15[%c0_200, %c0_201] : memref<16x128xf32, #tpu.memory_space<vmem>>, vector<16x128xf32>
    %cst_202 = arith.constant dense<0.000000e+00> : vector<2x128xf32>
    %560 = tpu.matmul %558, %559, %cst_202 {dimension_numbers = #tpu.dot_dimension_numbers<[1], [0], [0], [1], [0, 0, 1, 1], [], []>} : vector<2x16xf32>, vector<16x128xf32>, vector<2x128xf32> -> vector<2x128xf32>
    %c0_203 = arith.constant 0 : index
    %c0_204 = arith.constant 0 : index
    %561 = vector.load %arg16[%c0_203, %c0_204] : memref<1x128xf32, #tpu.memory_space<vmem>>, vector<1x128xf32>
    %562 = vector.broadcast %561 : vector<1x128xf32> to vector<2x128xf32>
    %563 = arith.addf %560, %562 : vector<2x128xf32>
    %c0_205 = arith.constant 0 : index
    %c0_206 = arith.constant 0 : index
    %c384 = arith.constant 384 : index
    %564 = vector.load %arg17[%c0_205, %c0_206, %c384] : memref<1x2x768xf32, #tpu.memory_space<vmem>>, vector<1x2x128xf32>
    %565 = vector.shape_cast %564 : vector<1x2x128xf32> to vector<2x128xf32>
    %566 = vector.shape_cast %563 : vector<2x128xf32> to vector<1x2x128xf32>
    tpu.vector_store %arg17[%c0_205, %c0_206, %c384], %566 {strides = array<i32>} : memref<1x2x768xf32, #tpu.memory_space<vmem>>, vector<1x2x128xf32>,
    %cst_207 = arith.constant dense<0xFF800000> : vector<2xf32>
    %567 = vector.multi_reduction <maximumf>, %563, %cst_207 [1] : vector<2x128xf32> to vector<2xf32>
    %568 = vector.shape_cast %567 : vector<2xf32> to vector<2x1xf32>
    %569 = vector.broadcast %568 : vector<2x1xf32> to vector<2x128xf32>
    %570 = arith.cmpf oeq, %563, %569 : vector<2x128xf32>
    %c128_i32_208 = arith.constant 128 : i32
    %571 = vector.broadcast %c128_i32_208 : i32 to vector<2x128xi32>
    %572 = arith.select %570, %273, %571 : vector<2x128xi1>, vector<2x128xi32>
    %cst_209 = arith.constant dense<2147483647> : vector<2xi32>
    %573 = vector.multi_reduction <minsi>, %572, %cst_209 [1] : vector<2x128xi32> to vector<2xi32>
    %574 = vector.shape_cast %573 : vector<2xi32> to vector<2x1xi32>
    %575 = vector.broadcast %574 : vector<2x1xi32> to vector<2x128xi32>
    %576 = arith.cmpi eq, %273, %575 : vector<2x128xi32>
    %577 = arith.extui %576 : vector<2x128xi1> to vector<2x128xi32>
    %578 = arith.sitofp %577 : vector<2x128xi32> to vector<2x128xf32>
    %c0_210 = arith.constant 0 : index
    %c0_211 = arith.constant 0 : index
    %579 = vector.load %arg6[%c0_210, %c0_211] : memref<16x16xf32, #tpu.memory_space<vmem>>, vector<16x16xf32>
    %cst_212 = arith.constant dense<0.000000e+00> : vector<2x16xf32>
    %580 = tpu.matmul %558, %579, %cst_212 {dimension_numbers = #tpu.dot_dimension_numbers<[1], [0], [0], [1], [0, 0, 1, 1], [], []>} : vector<2x16xf32>, vector<16x16xf32>, vector<2x16xf32> -> vector<2x16xf32>
    %c0_213 = arith.constant 0 : index
    %c0_214 = arith.constant 0 : index
    %581 = vector.load %arg7[%c0_213, %c0_214] : memref<1x16xf32, #tpu.memory_space<vmem>>, vector<1x16xf32>
    %582 = vector.broadcast %581 : vector<1x16xf32> to vector<2x16xf32>
    %583 = arith.addf %580, %582 : vector<2x16xf32>
    %cst_215 = arith.constant dense<0.000000e+00> : vector<2x16xf32>
    %584 = tpu.matmul %583, %271, %cst_215 {dimension_numbers = #tpu.dot_dimension_numbers<[1], [0], [0], [1], [0, 0, 1, 1], [], []>} : vector<2x16xf32>, vector<16x16xf32>, vector<2x16xf32> -> vector<2x16xf32>
    %cst_216 = arith.constant 2.500000e-01 : f32
    %585 = vector.broadcast %cst_216 : f32 to vector<2x16xf32>
    %586 = arith.mulf %584, %585 : vector<2x16xf32>
    %587 = arith.addf %586, %278 : vector<2x16xf32>
    %cst_217 = arith.constant dense<0xFF800000> : vector<2xf32>
    %588 = vector.multi_reduction <maximumf>, %587, %cst_217 [1] : vector<2x16xf32> to vector<2xf32>
    %589 = vector.shape_cast %588 : vector<2xf32> to vector<2x1xf32>
    %590 = vector.broadcast %589 : vector<2x1xf32> to vector<2x16xf32>
    %591 = arith.subf %587, %590 : vector<2x16xf32>
    %592 = math.exp %591 : vector<2x16xf32>
    %cst_218 = arith.constant dense<0.000000e+00> : vector<2xf32>
    %593 = vector.multi_reduction <add>, %592, %cst_218 [1] : vector<2x16xf32> to vector<2xf32>
    %594 = vector.shape_cast %593 : vector<2xf32> to vector<2x1xf32>
    %595 = vector.broadcast %594 : vector<2x1xf32> to vector<2x16xf32>
    %596 = arith.divf %592, %595 : vector<2x16xf32>
    %cst_219 = arith.constant dense<0.000000e+00> : vector<2x16xf32>
    %597 = tpu.matmul %596, %272, %cst_219 {dimension_numbers = #tpu.dot_dimension_numbers<[1], [0], [0], [1], [0, 0, 1, 1], [], []>} : vector<2x16xf32>, vector<16x16xf32>, vector<2x16xf32> -> vector<2x16xf32>
    %c0_220 = arith.constant 0 : index
    %c0_221 = arith.constant 0 : index
    %598 = vector.load %arg11[%c0_220, %c0_221] : memref<128x48xf32, #tpu.memory_space<vmem>>, vector<128x48xf32>
    %cst_222 = arith.constant dense<0.000000e+00> : vector<2x48xf32>
    %599 = tpu.matmul %578, %598, %cst_222 {dimension_numbers = #tpu.dot_dimension_numbers<[1], [0], [0], [1], [0, 0, 1, 1], [], []>} : vector<2x128xf32>, vector<128x48xf32>, vector<2x48xf32> -> vector<2x48xf32>
    %c0_223 = arith.constant 0 : index
    %c0_224 = arith.constant 0 : index
    %600 = vector.load %arg12[%c0_223, %c0_224] : memref<1x48xf32, #tpu.memory_space<vmem>>, vector<1x48xf32>
    %601 = vector.broadcast %600 : vector<1x48xf32> to vector<2x48xf32>
    %602 = arith.addf %599, %601 : vector<2x48xf32>
    %c0_225 = arith.constant 0 : index
    %c0_226 = arith.constant 0 : index
    %603 = vector.load %arg13[%c0_225, %c0_226] : memref<16x48xf32, #tpu.memory_space<vmem>>, vector<16x48xf32>
    %cst_227 = arith.constant dense<0.000000e+00> : vector<2x48xf32>
    %604 = tpu.matmul %597, %603, %cst_227 {dimension_numbers = #tpu.dot_dimension_numbers<[1], [0], [0], [1], [0, 0, 1, 1], [], []>} : vector<2x16xf32>, vector<16x48xf32>, vector<2x48xf32> -> vector<2x48xf32>
    %c0_228 = arith.constant 0 : index
    %c0_229 = arith.constant 0 : index
    %605 = vector.load %arg14[%c0_228, %c0_229] : memref<1x48xf32, #tpu.memory_space<vmem>>, vector<1x48xf32>
    %606 = vector.broadcast %605 : vector<1x48xf32> to vector<2x48xf32>
    %607 = arith.addf %604, %606 : vector<2x48xf32>
    %608 = vector.extract_strided_slice %602 {offsets = [0, 0], sizes = [2, 16], strides = [1, 1]} : vector<2x48xf32> to vector<2x16xf32>
    %609 = vector.extract_strided_slice %607 {offsets = [0, 0], sizes = [2, 16], strides = [1, 1]} : vector<2x48xf32> to vector<2x16xf32>
    %610 = arith.addf %608, %609 : vector<2x16xf32>
    %611 = arith.negf %610 : vector<2x16xf32>
    %612 = math.exp %611 : vector<2x16xf32>
    %cst_230 = arith.constant 1.000000e+00 : f32
    %613 = vector.broadcast %cst_230 : f32 to vector<2x16xf32>
    %614 = arith.addf %613, %612 : vector<2x16xf32>
    %615 = arith.divf %613, %614 : vector<2x16xf32>
    %616 = vector.extract_strided_slice %602 {offsets = [0, 16], sizes = [2, 16], strides = [1, 1]} : vector<2x48xf32> to vector<2x16xf32>
    %617 = vector.extract_strided_slice %607 {offsets = [0, 16], sizes = [2, 16], strides = [1, 1]} : vector<2x48xf32> to vector<2x16xf32>
    %618 = arith.addf %616, %617 : vector<2x16xf32>
    %619 = arith.negf %618 : vector<2x16xf32>
    %620 = math.exp %619 : vector<2x16xf32>
    %cst_231 = arith.constant 1.000000e+00 : f32
    %621 = vector.broadcast %cst_231 : f32 to vector<2x16xf32>
    %622 = arith.addf %621, %620 : vector<2x16xf32>
    %623 = arith.divf %621, %622 : vector<2x16xf32>
    %624 = vector.extract_strided_slice %602 {offsets = [0, 32], sizes = [2, 16], strides = [1, 1]} : vector<2x48xf32> to vector<2x16xf32>
    %625 = vector.extract_strided_slice %607 {offsets = [0, 32], sizes = [2, 16], strides = [1, 1]} : vector<2x48xf32> to vector<2x16xf32>
    %626 = arith.mulf %615, %625 : vector<2x16xf32>
    %627 = arith.addf %624, %626 : vector<2x16xf32>
    %628 = math.tanh %627 : vector<2x16xf32>
    %cst_232 = arith.constant 1.000000e+00 : f32
    %629 = vector.broadcast %cst_232 : f32 to vector<2x16xf32>
    %630 = arith.subf %629, %623 : vector<2x16xf32>
    %631 = arith.mulf %630, %628 : vector<2x16xf32>
    %632 = arith.mulf %623, %597 : vector<2x16xf32>
    %633 = arith.addf %631, %632 : vector<2x16xf32>
    %c0_233 = arith.constant 0 : index
    %c0_234 = arith.constant 0 : index
    %634 = vector.load %arg15[%c0_233, %c0_234] : memref<16x128xf32, #tpu.memory_space<vmem>>, vector<16x128xf32>
    %cst_235 = arith.constant dense<0.000000e+00> : vector<2x128xf32>
    %635 = tpu.matmul %633, %634, %cst_235 {dimension_numbers = #tpu.dot_dimension_numbers<[1], [0], [0], [1], [0, 0, 1, 1], [], []>} : vector<2x16xf32>, vector<16x128xf32>, vector<2x128xf32> -> vector<2x128xf32>
    %c0_236 = arith.constant 0 : index
    %c0_237 = arith.constant 0 : index
    %636 = vector.load %arg16[%c0_236, %c0_237] : memref<1x128xf32, #tpu.memory_space<vmem>>, vector<1x128xf32>
    %637 = vector.broadcast %636 : vector<1x128xf32> to vector<2x128xf32>
    %638 = arith.addf %635, %637 : vector<2x128xf32>
    %c0_238 = arith.constant 0 : index
    %c0_239 = arith.constant 0 : index
    %c512 = arith.constant 512 : index
    %639 = vector.load %arg17[%c0_238, %c0_239, %c512] : memref<1x2x768xf32, #tpu.memory_space<vmem>>, vector<1x2x128xf32>
    %640 = vector.shape_cast %639 : vector<1x2x128xf32> to vector<2x128xf32>
    %641 = vector.shape_cast %638 : vector<2x128xf32> to vector<1x2x128xf32>
    tpu.vector_store %arg17[%c0_238, %c0_239, %c512], %641 {strides = array<i32>} : memref<1x2x768xf32, #tpu.memory_space<vmem>>, vector<1x2x128xf32>,
    %cst_240 = arith.constant dense<0xFF800000> : vector<2xf32>
    %642 = vector.multi_reduction <maximumf>, %638, %cst_240 [1] : vector<2x128xf32> to vector<2xf32>
    %643 = vector.shape_cast %642 : vector<2xf32> to vector<2x1xf32>
    %644 = vector.broadcast %643 : vector<2x1xf32> to vector<2x128xf32>
    %645 = arith.cmpf oeq, %638, %644 : vector<2x128xf32>
    %c128_i32_241 = arith.constant 128 : i32
    %646 = vector.broadcast %c128_i32_241 : i32 to vector<2x128xi32>
    %647 = arith.select %645, %273, %646 : vector<2x128xi1>, vector<2x128xi32>
    %cst_242 = arith.constant dense<2147483647> : vector<2xi32>
    %648 = vector.multi_reduction <minsi>, %647, %cst_242 [1] : vector<2x128xi32> to vector<2xi32>
    %649 = vector.shape_cast %648 : vector<2xi32> to vector<2x1xi32>
    %650 = vector.broadcast %649 : vector<2x1xi32> to vector<2x128xi32>
    %651 = arith.cmpi eq, %273, %650 : vector<2x128xi32>
    %652 = arith.extui %651 : vector<2x128xi1> to vector<2x128xi32>
    %653 = arith.sitofp %652 : vector<2x128xi32> to vector<2x128xf32>
    %c0_243 = arith.constant 0 : index
    %c0_244 = arith.constant 0 : index
    %654 = vector.load %arg6[%c0_243, %c0_244] : memref<16x16xf32, #tpu.memory_space<vmem>>, vector<16x16xf32>
    %cst_245 = arith.constant dense<0.000000e+00> : vector<2x16xf32>
    %655 = tpu.matmul %633, %654, %cst_245 {dimension_numbers = #tpu.dot_dimension_numbers<[1], [0], [0], [1], [0, 0, 1, 1], [], []>} : vector<2x16xf32>, vector<16x16xf32>, vector<2x16xf32> -> vector<2x16xf32>
    %c0_246 = arith.constant 0 : index
    %c0_247 = arith.constant 0 : index
    %656 = vector.load %arg7[%c0_246, %c0_247] : memref<1x16xf32, #tpu.memory_space<vmem>>, vector<1x16xf32>
    %657 = vector.broadcast %656 : vector<1x16xf32> to vector<2x16xf32>
    %658 = arith.addf %655, %657 : vector<2x16xf32>
    %cst_248 = arith.constant dense<0.000000e+00> : vector<2x16xf32>
    %659 = tpu.matmul %658, %271, %cst_248 {dimension_numbers = #tpu.dot_dimension_numbers<[1], [0], [0], [1], [0, 0, 1, 1], [], []>} : vector<2x16xf32>, vector<16x16xf32>, vector<2x16xf32> -> vector<2x16xf32>
    %cst_249 = arith.constant 2.500000e-01 : f32
    %660 = vector.broadcast %cst_249 : f32 to vector<2x16xf32>
    %661 = arith.mulf %659, %660 : vector<2x16xf32>
    %662 = arith.addf %661, %278 : vector<2x16xf32>
    %cst_250 = arith.constant dense<0xFF800000> : vector<2xf32>
    %663 = vector.multi_reduction <maximumf>, %662, %cst_250 [1] : vector<2x16xf32> to vector<2xf32>
    %664 = vector.shape_cast %663 : vector<2xf32> to vector<2x1xf32>
    %665 = vector.broadcast %664 : vector<2x1xf32> to vector<2x16xf32>
    %666 = arith.subf %662, %665 : vector<2x16xf32>
    %667 = math.exp %666 : vector<2x16xf32>
    %cst_251 = arith.constant dense<0.000000e+00> : vector<2xf32>
    %668 = vector.multi_reduction <add>, %667, %cst_251 [1] : vector<2x16xf32> to vector<2xf32>
    %669 = vector.shape_cast %668 : vector<2xf32> to vector<2x1xf32>
    %670 = vector.broadcast %669 : vector<2x1xf32> to vector<2x16xf32>
    %671 = arith.divf %667, %670 : vector<2x16xf32>
    %cst_252 = arith.constant dense<0.000000e+00> : vector<2x16xf32>
    %672 = tpu.matmul %671, %272, %cst_252 {dimension_numbers = #tpu.dot_dimension_numbers<[1], [0], [0], [1], [0, 0, 1, 1], [], []>} : vector<2x16xf32>, vector<16x16xf32>, vector<2x16xf32> -> vector<2x16xf32>
    %c0_253 = arith.constant 0 : index
    %c0_254 = arith.constant 0 : index
    %673 = vector.load %arg11[%c0_253, %c0_254] : memref<128x48xf32, #tpu.memory_space<vmem>>, vector<128x48xf32>
    %cst_255 = arith.constant dense<0.000000e+00> : vector<2x48xf32>
    %674 = tpu.matmul %653, %673, %cst_255 {dimension_numbers = #tpu.dot_dimension_numbers<[1], [0], [0], [1], [0, 0, 1, 1], [], []>} : vector<2x128xf32>, vector<128x48xf32>, vector<2x48xf32> -> vector<2x48xf32>
    %c0_256 = arith.constant 0 : index
    %c0_257 = arith.constant 0 : index
    %675 = vector.load %arg12[%c0_256, %c0_257] : memref<1x48xf32, #tpu.memory_space<vmem>>, vector<1x48xf32>
    %676 = vector.broadcast %675 : vector<1x48xf32> to vector<2x48xf32>
    %677 = arith.addf %674, %676 : vector<2x48xf32>
    %c0_258 = arith.constant 0 : index
    %c0_259 = arith.constant 0 : index
    %678 = vector.load %arg13[%c0_258, %c0_259] : memref<16x48xf32, #tpu.memory_space<vmem>>, vector<16x48xf32>
    %cst_260 = arith.constant dense<0.000000e+00> : vector<2x48xf32>
    %679 = tpu.matmul %672, %678, %cst_260 {dimension_numbers = #tpu.dot_dimension_numbers<[1], [0], [0], [1], [0, 0, 1, 1], [], []>} : vector<2x16xf32>, vector<16x48xf32>, vector<2x48xf32> -> vector<2x48xf32>
    %c0_261 = arith.constant 0 : index
    %c0_262 = arith.constant 0 : index
    %680 = vector.load %arg14[%c0_261, %c0_262] : memref<1x48xf32, #tpu.memory_space<vmem>>, vector<1x48xf32>
    %681 = vector.broadcast %680 : vector<1x48xf32> to vector<2x48xf32>
    %682 = arith.addf %679, %681 : vector<2x48xf32>
    %683 = vector.extract_strided_slice %677 {offsets = [0, 0], sizes = [2, 16], strides = [1, 1]} : vector<2x48xf32> to vector<2x16xf32>
    %684 = vector.extract_strided_slice %682 {offsets = [0, 0], sizes = [2, 16], strides = [1, 1]} : vector<2x48xf32> to vector<2x16xf32>
    %685 = arith.addf %683, %684 : vector<2x16xf32>
    %686 = arith.negf %685 : vector<2x16xf32>
    %687 = math.exp %686 : vector<2x16xf32>
    %cst_263 = arith.constant 1.000000e+00 : f32
    %688 = vector.broadcast %cst_263 : f32 to vector<2x16xf32>
    %689 = arith.addf %688, %687 : vector<2x16xf32>
    %690 = arith.divf %688, %689 : vector<2x16xf32>
    %691 = vector.extract_strided_slice %677 {offsets = [0, 16], sizes = [2, 16], strides = [1, 1]} : vector<2x48xf32> to vector<2x16xf32>
    %692 = vector.extract_strided_slice %682 {offsets = [0, 16], sizes = [2, 16], strides = [1, 1]} : vector<2x48xf32> to vector<2x16xf32>
    %693 = arith.addf %691, %692 : vector<2x16xf32>
    %694 = arith.negf %693 : vector<2x16xf32>
    %695 = math.exp %694 : vector<2x16xf32>
    %cst_264 = arith.constant 1.000000e+00 : f32
    %696 = vector.broadcast %cst_264 : f32 to vector<2x16xf32>
    %697 = arith.addf %696, %695 : vector<2x16xf32>
    %698 = arith.divf %696, %697 : vector<2x16xf32>
    %699 = vector.extract_strided_slice %677 {offsets = [0, 32], sizes = [2, 16], strides = [1, 1]} : vector<2x48xf32> to vector<2x16xf32>
    %700 = vector.extract_strided_slice %682 {offsets = [0, 32], sizes = [2, 16], strides = [1, 1]} : vector<2x48xf32> to vector<2x16xf32>
    %701 = arith.mulf %690, %700 : vector<2x16xf32>
    %702 = arith.addf %699, %701 : vector<2x16xf32>
    %703 = math.tanh %702 : vector<2x16xf32>
    %cst_265 = arith.constant 1.000000e+00 : f32
    %704 = vector.broadcast %cst_265 : f32 to vector<2x16xf32>
    %705 = arith.subf %704, %698 : vector<2x16xf32>
    %706 = arith.mulf %705, %703 : vector<2x16xf32>
    %707 = arith.mulf %698, %672 : vector<2x16xf32>
    %708 = arith.addf %706, %707 : vector<2x16xf32>
    %c0_266 = arith.constant 0 : index
    %c0_267 = arith.constant 0 : index
    %709 = vector.load %arg15[%c0_266, %c0_267] : memref<16x128xf32, #tpu.memory_space<vmem>>, vector<16x128xf32>
    %cst_268 = arith.constant dense<0.000000e+00> : vector<2x128xf32>
    %710 = tpu.matmul %708, %709, %cst_268 {dimension_numbers = #tpu.dot_dimension_numbers<[1], [0], [0], [1], [0, 0, 1, 1], [], []>} : vector<2x16xf32>, vector<16x128xf32>, vector<2x128xf32> -> vector<2x128xf32>
    %c0_269 = arith.constant 0 : index
    %c0_270 = arith.constant 0 : index
    %711 = vector.load %arg16[%c0_269, %c0_270] : memref<1x128xf32, #tpu.memory_space<vmem>>, vector<1x128xf32>
    %712 = vector.broadcast %711 : vector<1x128xf32> to vector<2x128xf32>
    %713 = arith.addf %710, %712 : vector<2x128xf32>
    %c0_271 = arith.constant 0 : index
    %c0_272 = arith.constant 0 : index
    %c640 = arith.constant 640 : index
    %714 = vector.load %arg17[%c0_271, %c0_272, %c640] : memref<1x2x768xf32, #tpu.memory_space<vmem>>, vector<1x2x128xf32>
    %715 = vector.shape_cast %714 : vector<1x2x128xf32> to vector<2x128xf32>
    %716 = vector.shape_cast %713 : vector<2x128xf32> to vector<1x2x128xf32>
    tpu.vector_store %arg17[%c0_271, %c0_272, %c640], %716 {strides = array<i32>} : memref<1x2x768xf32, #tpu.memory_space<vmem>>, vector<1x2x128xf32>,
    return
  }
  func.func @transform_0(%arg0: i32) -> (i32, i32, i32) {
    %c0_i32 = arith.constant 0 : i32
    %c0_i32_0 = arith.constant 0 : i32
    %c0_i32_1 = arith.constant 0 : i32
    return %arg0, %c0_i32, %c0_i32_0 : i32, i32, i32
  }
  func.func @transform_1(%arg0: i32) -> (i32, i32) {
    %c0_i32 = arith.constant 0 : i32
    %c0_i32_0 = arith.constant 0 : i32
    %c0_i32_1 = arith.constant 0 : i32
    return %c0_i32, %c0_i32_0 : i32, i32
  }
  func.func @transform_2(%arg0: i32) -> (i32, i32) {
    %c0_i32 = arith.constant 0 : i32
    %c0_i32_0 = arith.constant 0 : i32
    %c0_i32_1 = arith.constant 0 : i32
    return %c0_i32, %c0_i32_0 : i32, i32
  }
  func.func @transform_3(%arg0: i32) -> (i32, i32) {
    %c0_i32 = arith.constant 0 : i32
    %c0_i32_0 = arith.constant 0 : i32
    %c0_i32_1 = arith.constant 0 : i32
    return %c0_i32, %c0_i32_0 : i32, i32
  }
  func.func @transform_4(%arg0: i32) -> (i32, i32) {
    %c0_i32 = arith.constant 0 : i32
    %c0_i32_0 = arith.constant 0 : i32
    %c0_i32_1 = arith.constant 0 : i32
    return %c0_i32, %c0_i32_0 : i32, i32
  }
  func.func @transform_5(%arg0: i32) -> (i32, i32) {
    %c0_i32 = arith.constant 0 : i32
    %c0_i32_0 = arith.constant 0 : i32
    %c0_i32_1 = arith.constant 0 : i32
    return %c0_i32, %c0_i32_0 : i32, i32
  }
  func.func @transform_6(%arg0: i32) -> (i32, i32) {
    %c0_i32 = arith.constant 0 : i32
    %c0_i32_0 = arith.constant 0 : i32
    %c0_i32_1 = arith.constant 0 : i32
    return %c0_i32, %c0_i32_0 : i32, i32
  }
  func.func @transform_7(%arg0: i32) -> (i32, i32) {
    %c0_i32 = arith.constant 0 : i32
    %c0_i32_0 = arith.constant 0 : i32
    %c0_i32_1 = arith.constant 0 : i32
    return %c0_i32, %c0_i32_0 : i32, i32
  }
  func.func @transform_8(%arg0: i32) -> (i32, i32) {
    %c0_i32 = arith.constant 0 : i32
    %c0_i32_0 = arith.constant 0 : i32
    %c0_i32_1 = arith.constant 0 : i32
    return %c0_i32, %c0_i32_0 : i32, i32
  }
  func.func @transform_9(%arg0: i32) -> (i32, i32) {
    %c0_i32 = arith.constant 0 : i32
    %c0_i32_0 = arith.constant 0 : i32
    %c0_i32_1 = arith.constant 0 : i32
    return %c0_i32, %c0_i32_0 : i32, i32
  }
  func.func @transform_10(%arg0: i32) -> (i32, i32) {
    %c0_i32 = arith.constant 0 : i32
    %c0_i32_0 = arith.constant 0 : i32
    %c0_i32_1 = arith.constant 0 : i32
    return %c0_i32, %c0_i32_0 : i32, i32
  }
  func.func @transform_11(%arg0: i32) -> (i32, i32) {
    %c0_i32 = arith.constant 0 : i32
    %c0_i32_0 = arith.constant 0 : i32
    %c0_i32_1 = arith.constant 0 : i32
    return %c0_i32, %c0_i32_0 : i32, i32
  }
  func.func @transform_12(%arg0: i32) -> (i32, i32) {
    %c0_i32 = arith.constant 0 : i32
    %c0_i32_0 = arith.constant 0 : i32
    %c0_i32_1 = arith.constant 0 : i32
    return %c0_i32, %c0_i32_0 : i32, i32
  }
  func.func @transform_13(%arg0: i32) -> (i32, i32) {
    %c0_i32 = arith.constant 0 : i32
    %c0_i32_0 = arith.constant 0 : i32
    %c0_i32_1 = arith.constant 0 : i32
    return %c0_i32, %c0_i32_0 : i32, i32
  }
  func.func @transform_14(%arg0: i32) -> (i32, i32) {
    %c0_i32 = arith.constant 0 : i32
    %c0_i32_0 = arith.constant 0 : i32
    %c0_i32_1 = arith.constant 0 : i32
    return %c0_i32, %c0_i32_0 : i32, i32
  }
  func.func @transform_15(%arg0: i32) -> (i32, i32) {
    %c0_i32 = arith.constant 0 : i32
    %c0_i32_0 = arith.constant 0 : i32
    %c0_i32_1 = arith.constant 0 : i32
    return %c0_i32, %c0_i32_0 : i32, i32
  }
  func.func @transform_16(%arg0: i32) -> (i32, i32, i32) {
    %c0_i32 = arith.constant 0 : i32
    %c0_i32_0 = arith.constant 0 : i32
    %c0_i32_1 = arith.constant 0 : i32
    return %arg0, %c0_i32, %c0_i32_0 : i32, i32, i32
  }
}

</mosaic_0001>

<llo_original>
// kernel: seq2seq_forward.1
$region0: #{seq2seq_forward.1}
  #allocation0 [shape = 'u32[]', space=smem, size = 0x4, offset = 0x4, fixed_abs, tag = 'smem constant byte address 0x4 - core index']
  #allocation1 [shape = 'u32[72,128]{1,0:T(1,128)}', space=vmem, size = 0x9000, scoped, tag = 'internal scratch']
  %s0 = inlined_call_operand.vmem [shape: f32[1,16,8], index: 0, kind: input, shape index: {}]
  %s1 = inlined_call_operand.vmem [shape: f32[8,48], index: 1, kind: input, shape index: {}]
  %s2 = inlined_call_operand.vmem [shape: f32[1,48], index: 2, kind: input, shape index: {}]
  %s3 = inlined_call_operand.vmem [shape: f32[16,48], index: 3, kind: input, shape index: {}]
  %s4 = inlined_call_operand.vmem [shape: f32[1,48], index: 4, kind: input, shape index: {}]
  %s5 = inlined_call_operand.vmem [shape: f32[16,16], index: 5, kind: input, shape index: {}]
  %s6 = inlined_call_operand.vmem [shape: f32[1,16], index: 6, kind: input, shape index: {}]
  %s7 = inlined_call_operand.vmem [shape: f32[16,32], index: 7, kind: input, shape index: {}]
  %s8 = inlined_call_operand.vmem [shape: f32[1,32], index: 8, kind: input, shape index: {}]
  %s9 = inlined_call_operand.vmem [shape: f32[2,16], index: 9, kind: input, shape index: {}]
  %s10 = inlined_call_operand.vmem [shape: f32[128,48], index: 10, kind: input, shape index: {}]
  %s11 = inlined_call_operand.vmem [shape: f32[1,48], index: 11, kind: input, shape index: {}]
  %s12 = inlined_call_operand.vmem [shape: f32[16,48], index: 12, kind: input, shape index: {}]
  %s13 = inlined_call_operand.vmem [shape: f32[1,48], index: 13, kind: input, shape index: {}]
  %s14 = inlined_call_operand.vmem [shape: f32[16,128], index: 14, kind: input, shape index: {}]
  %s15 = inlined_call_operand.vmem [shape: f32[1,128], index: 15, kind: input, shape index: {}]
  %s16 = inlined_call_operand.vmem [shape: f32[1,2,768], index: 16, kind: output, shape index: {}]
  %s17 = sld [smem:[#allocation0]]
  $region74: #{seq2seq_forward.1} parent=0
    _
  %s19 = ssub.s32 1, %s17
  %s20 = scalar_select 0, %s19, %s17
  // Predicated region
  $region2: #{seq2seq_forward.1} parent=0 // pred_check
    _
  $region3: #{seq2seq_forward.1} parent=0 // pred_check_branch
    %22 = sbr.rel (0) target = $region5
  $region4: #{seq2seq_forward.1} parent=0 // pred_region
    _
  $region5: #{seq2seq_forward.1} parent=0 // pred_fallthru
    _
  // Predicated region
  $region6: #{seq2seq_forward.1} parent=0 // pred_check
    _
  $region7: #{seq2seq_forward.1} parent=0 // pred_check_branch
    %24 = sbr.rel (0) target = $region9
  $region8: #{seq2seq_forward.1} parent=0 // pred_region
    _
  $region9: #{seq2seq_forward.1} parent=0 // pred_fallthru
    _
  // Predicated region
  $region10: #{seq2seq_forward.1} parent=0 // pred_check
    _
  $region11: #{seq2seq_forward.1} parent=0 // pred_check_branch
    %26 = sbr.rel (0) target = $region13
  $region12: #{seq2seq_forward.1} parent=0 // pred_region
    _
  $region13: #{seq2seq_forward.1} parent=0 // pred_fallthru
    _
  // Predicated region
  $region14: #{seq2seq_forward.1} parent=0 // pred_check
    _
  $region15: #{seq2seq_forward.1} parent=0 // pred_check_branch
    %28 = sbr.rel (0) target = $region17
  $region16: #{seq2seq_forward.1} parent=0 // pred_region
    _
  $region17: #{seq2seq_forward.1} parent=0 // pred_fallthru
    _
  // Predicated region
  $region18: #{seq2seq_forward.1} parent=0 // pred_check
    _
  $region19: #{seq2seq_forward.1} parent=0 // pred_check_branch
    %30 = sbr.rel (0) target = $region21
  $region20: #{seq2seq_forward.1} parent=0 // pred_region
    _
  $region21: #{seq2seq_forward.1} parent=0 // pred_fallthru
    _
  // Predicated region
  $region22: #{seq2seq_forward.1} parent=0 // pred_check
    _
  $region23: #{seq2seq_forward.1} parent=0 // pred_check_branch
    %32 = sbr.rel (0) target = $region25
  $region24: #{seq2seq_forward.1} parent=0 // pred_region
    _
  $region25: #{seq2seq_forward.1} parent=0 // pred_fallthru
    _
  // Predicated region
  $region26: #{seq2seq_forward.1} parent=0 // pred_check
    _
  $region27: #{seq2seq_forward.1} parent=0 // pred_check_branch
    %34 = sbr.rel (0) target = $region29
  $region28: #{seq2seq_forward.1} parent=0 // pred_region
    _
  $region29: #{seq2seq_forward.1} parent=0 // pred_fallthru
    _
  // Predicated region
  $region30: #{seq2seq_forward.1} parent=0 // pred_check
    _
  $region31: #{seq2seq_forward.1} parent=0 // pred_check_branch
    %36 = sbr.rel (0) target = $region33
  $region32: #{seq2seq_forward.1} parent=0 // pred_region
    _
  $region33: #{seq2seq_forward.1} parent=0 // pred_fallthru
    _
  // Predicated region
  $region34: #{seq2seq_forward.1} parent=0 // pred_check
    _
  $region35: #{seq2seq_forward.1} parent=0 // pred_check_branch
    %38 = sbr.rel (0) target = $region37
  $region36: #{seq2seq_forward.1} parent=0 // pred_region
    _
  $region37: #{seq2seq_forward.1} parent=0 // pred_fallthru
    _
  // Predicated region
  $region38: #{seq2seq_forward.1} parent=0 // pred_check
    _
  $region39: #{seq2seq_forward.1} parent=0 // pred_check_branch
    %40 = sbr.rel (0) target = $region41
  $region40: #{seq2seq_forward.1} parent=0 // pred_region
    _
  $region41: #{seq2seq_forward.1} parent=0 // pred_fallthru
    _
  // Predicated region
  $region42: #{seq2seq_forward.1} parent=0 // pred_check
    _
  $region43: #{seq2seq_forward.1} parent=0 // pred_check_branch
    %42 = sbr.rel (0) target = $region45
  $region44: #{seq2seq_forward.1} parent=0 // pred_region
    _
  $region45: #{seq2seq_forward.1} parent=0 // pred_fallthru
    _
  // Predicated region
  $region46: #{seq2seq_forward.1} parent=0 // pred_check
    _
  $region47: #{seq2seq_forward.1} parent=0 // pred_check_branch
    %44 = sbr.rel (0) target = $region49
  $region48: #{seq2seq_forward.1} parent=0 // pred_region
    _
  $region49: #{seq2seq_forward.1} parent=0 // pred_fallthru
    _
  // Predicated region
  $region50: #{seq2seq_forward.1} parent=0 // pred_check
    _
  $region51: #{seq2seq_forward.1} parent=0 // pred_check_branch
    %46 = sbr.rel (0) target = $region53
  $region52: #{seq2seq_forward.1} parent=0 // pred_region
    _
  $region53: #{seq2seq_forward.1} parent=0 // pred_fallthru
    _
  // Predicated region
  $region54: #{seq2seq_forward.1} parent=0 // pred_check
    _
  $region55: #{seq2seq_forward.1} parent=0 // pred_check_branch
    %48 = sbr.rel (0) target = $region57
  $region56: #{seq2seq_forward.1} parent=0 // pred_region
    _
  $region57: #{seq2seq_forward.1} parent=0 // pred_fallthru
    _
  // Predicated region
  $region58: #{seq2seq_forward.1} parent=0 // pred_check
    _
  $region59: #{seq2seq_forward.1} parent=0 // pred_check_branch
    %50 = sbr.rel (0) target = $region61
  $region60: #{seq2seq_forward.1} parent=0 // pred_region
    _
  $region61: #{seq2seq_forward.1} parent=0 // pred_fallthru
    _
  // Predicated region
  $region62: #{seq2seq_forward.1} parent=0 // pred_check
    _
  $region63: #{seq2seq_forward.1} parent=0 // pred_check_branch
    %52 = sbr.rel (0) target = $region65
  $region64: #{seq2seq_forward.1} parent=0 // pred_region
    _
  $region65: #{seq2seq_forward.1} parent=0 // pred_fallthru
    _
  %v53 = vld [vmem:[%s0] sm:$0xff]
  %v54 = vld [vmem:[%s0 + $0x8] sm:$0xff]
  %v55 = vld [vmem:[%s1] sm:$0xff]
  %v56 = vld [vmem:[%s2] sm:$0x1]
  %v58 = vperm.slane %v56, 0
  %vm60 = vcmask 64512
  %v62 = vsel %vm60, %v53, 0
  %v65 = vsel %vm60, %v54, 0
  %67 = vmatpush.msra.mxu0 0.0
  %68 = vmatpush.msra.mxu0 0.0
  %69 = vmatpush.msra.mxu0 0.0
  %70 = vmatpush.msra.mxu0 0.0
  %71 = vmatpush.msra.mxu0 0.0
  %72 = vmatpush.msra.mxu0 0.0
  %73 = vmatpush.msra.mxu0 0.0
  %74 = vmatpush.msra.mxu0 0.0
  %75 = vmatpush.msra.mxu0 0.0
  %76 = vmatpush.msra.mxu0 0.0
  %77 = vmatpush.msra.mxu0 0.0
  %78 = vmatpush.msra.mxu0 0.0
  %79 = vmatpush.msra.mxu0 0.0
  %80 = vmatpush.msra.mxu0 0.0
  %81 = vmatpush.msra.mxu0 0.0
  %82 = vmatpush.msra.mxu0 %v55
  %83 = vmatmul.f32.gmra.mxu0 %v62
  %v84 = vpop.f32.mrf.mxu0
  %v85 = vadd.f32 %v58, %v84
  %86 = vmatmul.f32.gmra.mxu0 %v65
  %v87 = vpop.f32.mrf.mxu0
  %v88 = vadd.f32 %v58, %v87
  %89 = vdwg.mxu0
  %v90 = vld [vmem:[%s3] sm:$0xff]
  %v91 = vld [vmem:[%s3 + $0x8] sm:$0xff]
  %v92 = vld [vmem:[%s4] sm:$0x1]
  %v94 = vperm.slane %v92, 0
  %vm96 = vcmask 130048
  %v98 = vsel %vm96, 0.0, 0
  %100 = vmatpush.msra.mxu0 0.0
  %101 = vmatpush.msra.mxu0 0.0
  %102 = vmatpush.msra.mxu0 0.0
  %103 = vmatpush.msra.mxu0 0.0
  %104 = vmatpush.msra.mxu0 0.0
  %105 = vmatpush.msra.mxu0 0.0
  %106 = vmatpush.msra.mxu0 0.0
  %107 = vmatpush.msra.mxu0 0.0
  %108 = vmatpush.msra.mxu0 0.0
  %109 = vmatpush.msra.mxu0 0.0
  %110 = vmatpush.msra.mxu0 0.0
  %111 = vmatpush.msra.mxu0 0.0
  %112 = vmatpush.msra.mxu0 0.0
  %113 = vmatpush.msra.mxu0 0.0
  %114 = vmatpush.msra.mxu0 %v91
  %115 = vmatpush.msra.mxu0 %v90
  %116 = vmatmul.f32.gmra.mxu0 %v98
  %v117 = vpop.f32.mrf.mxu0
  %v118 = vadd.f32 %v94, %v117
  %119 = vdwg.mxu0
  %v120 = vadd.f32 %v85, %v118
  %v121 = vxor.u32 %v120, 2147483648
  %v122 = vmul.f32 %v121, 1.442695
  %v123 = vpow.pop %v122
  %v124 = vadd.f32 %v123, 1.0
  %v125 = vrcp.pop %v124
  %v126 = vmul.f32 %v124, %v125
  %v127 = vsub.f32 1.0, %v126
  %v128 = vmul.f32 %v125, %v127
  %v129 = vadd.f32 %v125, %v128
  %vm130 = vweird.f32 %v124
  %vm131 = vweird.f32 %v125
  %vm132 = vmor %vm130, %vm131
  %v133 = vsel %vm132, %v125, %v129
  %v134 = vand.u32 2147483647, %v124
  %vm135 = vcmp.eq.f32.partialorder %v134, 8.507059e+37
  %v136 = vand.u32 %v124, 2147483648
  %v137 = vor.u32 1.1754944e-38, %v136
  %v138 = vsel %vm135, %v137, %v133
  %v139 = vmul.f32 1.0, %v138
  %141 = vrot.lane.b32.xlu0 %v118, 96
  %v142 = vpop.permute.xlu0 %141
  %v144 = vmul.f32 %v139, %v142
  %146 = vrot.lane.b32.xlu0 %v144, 32
  %v147 = vpop.permute.xlu0 %146
  %v149 = vadd.f32 %v85, %v147
  %v150 = vtanh.pop %v149
  %v151 = vsub.f32 1.0, %v139
  %153 = vrot.lane.b32.xlu0 %v150, 112
  %v154 = vpop.permute.xlu0 %153
  %v156 = vmul.f32 %v151, %v154
  %v157 = vmul.f32 %v139, 0.0
  %v158 = vadd.f32 %v156, %v157
  %160 = vrot.lane.b32.xlu0 %v158, 112
  %v161 = vpop.permute.xlu0 %160
  %v162 = vsel %vm96, %v161, 0
  %164 = vmatpush.msra.mxu0 0.0
  %165 = vmatpush.msra.mxu0 0.0
  %166 = vmatpush.msra.mxu0 0.0
  %167 = vmatpush.msra.mxu0 0.0
  %168 = vmatpush.msra.mxu0 0.0
  %169 = vmatpush.msra.mxu0 0.0
  %170 = vmatpush.msra.mxu0 0.0
  %171 = vmatpush.msra.mxu0 0.0
  %172 = vmatpush.msra.mxu0 0.0
  %173 = vmatpush.msra.mxu0 0.0
  %174 = vmatpush.msra.mxu0 0.0
  %175 = vmatpush.msra.mxu0 0.0
  %176 = vmatpush.msra.mxu0 0.0
  %177 = vmatpush.msra.mxu0 0.0
  %178 = vmatpush.msra.mxu0 %v91
  %179 = vmatpush.msra.mxu0 %v90
  %180 = vmatmul.f32.gmra.mxu0 %v162
  %v181 = vpop.f32.mrf.mxu0
  %v182 = vadd.f32 %v94, %v181
  %183 = vdwg.mxu0
  %v185 = vrot.slane %v182, 6
  %v187 = vadd.f32 %v85, %v185
  %v188 = vxor.u32 %v187, 2147483648
  %v189 = vmul.f32 %v188, 1.442695
  %v190 = vpow.pop %v189
  %v191 = vadd.f32 %v190, 1.0
  %v192 = vrcp.pop %v191
  %v193 = vmul.f32 %v191, %v192
  %v194 = vsub.f32 1.0, %v193
  %v195 = vmul.f32 %v192, %v194
  %v196 = vadd.f32 %v192, %v195
  %vm197 = vweird.f32 %v191
  %vm198 = vweird.f32 %v192
  %vm199 = vmor %vm197, %vm198
  %v200 = vsel %vm199, %v192, %v196
  %v201 = vand.u32 2147483647, %v191
  %vm202 = vcmp.eq.f32.partialorder %v201, 8.507059e+37
  %v203 = vand.u32 %v191, 2147483648
  %v204 = vor.u32 1.1754944e-38, %v203
  %v205 = vsel %vm202, %v204, %v200
  %v206 = vmul.f32 1.0, %v205
  %207 = vrot.lane.b32.xlu0 %v185, 96
  %v208 = vpop.permute.xlu0 %207
  %v210 = vmul.f32 %v206, %v208
  %212 = vrot.lane.b32.xlu0 %v210, 32
  %v213 = vpop.permute.xlu0 %212
  %v215 = vadd.f32 %v85, %v213
  %v216 = vtanh.pop %v215
  %v217 = vsub.f32 1.0, %v206
  %219 = vrot.lane.b32.xlu0 %v216, 112
  %v220 = vpop.permute.xlu0 %219
  %v222 = vmul.f32 %v217, %v220
  %v223 = vrot.slane %v158, 6
  %v225 = vmul.f32 %v206, %v223
  %v226 = vadd.f32 %v222, %v225
  %v228 = vrot.slane %v226, 2
  %229 = vrot.lane.b32.xlu0 %v228, 112
  %v230 = vpop.permute.xlu0 %229
  %v231 = vsel %vm96, %v230, 0
  %233 = vmatpush.msra.mxu0 0.0
  %234 = vmatpush.msra.mxu0 0.0
  %235 = vmatpush.msra.mxu0 0.0
  %236 = vmatpush.msra.mxu0 0.0
  %237 = vmatpush.msra.mxu0 0.0
  %238 = vmatpush.msra.mxu0 0.0
  %239 = vmatpush.msra.mxu0 0.0
  %240 = vmatpush.msra.mxu0 0.0
  %241 = vmatpush.msra.mxu0 0.0
  %242 = vmatpush.msra.mxu0 0.0
  %243 = vmatpush.msra.mxu0 0.0
  %244 = vmatpush.msra.mxu0 0.0
  %245 = vmatpush.msra.mxu0 0.0
  %246 = vmatpush.msra.mxu0 0.0
  %247 = vmatpush.msra.mxu0 %v91
  %248 = vmatpush.msra.mxu0 %v90
  %249 = vmatmul.f32.gmra.mxu0 %v231
  %v250 = vpop.f32.mrf.mxu0
  %v251 = vadd.f32 %v94, %v250
  %252 = vdwg.mxu0
  %v254 = vrot.slane %v251, 4
  %v256 = vadd.f32 %v85, %v254
  %v257 = vxor.u32 %v256, 2147483648
  %v258 = vmul.f32 %v257, 1.442695
  %v259 = vpow.pop %v258
  %v260 = vadd.f32 %v259, 1.0
  %v261 = vrcp.pop %v260
  %v262 = vmul.f32 %v260, %v261
  %v263 = vsub.f32 1.0, %v262
  %v264 = vmul.f32 %v261, %v263
  %v265 = vadd.f32 %v261, %v264
  %vm266 = vweird.f32 %v260
  %vm267 = vweird.f32 %v261
  %vm268 = vmor %vm266, %vm267
  %v269 = vsel %vm268, %v261, %v265
  %v270 = vand.u32 2147483647, %v260
  %vm271 = vcmp.eq.f32.partialorder %v270, 8.507059e+37
  %v272 = vand.u32 %v260, 2147483648
  %v273 = vor.u32 1.1754944e-38, %v272
  %v274 = vsel %vm271, %v273, %v269
  %v275 = vmul.f32 1.0, %v274
  %276 = vrot.lane.b32.xlu0 %v254, 96
  %v277 = vpop.permute.xlu0 %276
  %v279 = vmul.f32 %v275, %v277
  %281 = vrot.lane.b32.xlu0 %v279, 32
  %v282 = vpop.permute.xlu0 %281
  %v284 = vadd.f32 %v85, %v282
  %v285 = vtanh.pop %v284
  %v286 = vsub.f32 1.0, %v275
  %288 = vrot.lane.b32.xlu0 %v285, 112
  %v289 = vpop.permute.xlu0 %288
  %v291 = vmul.f32 %v286, %v289
  %v292 = vrot.slane %v226, 6
  %v294 = vmul.f32 %v275, %v292
  %v295 = vadd.f32 %v291, %v294
  %v297 = vrot.slane %v295, 4
  %298 = vrot.lane.b32.xlu0 %v297, 112
  %v299 = vpop.permute.xlu0 %298
  %v300 = vsel %vm96, %v299, 0
  %302 = vmatpush.msra.mxu0 0.0
  %303 = vmatpush.msra.mxu0 0.0
  %304 = vmatpush.msra.mxu0 0.0
  %305 = vmatpush.msra.mxu0 0.0
  %306 = vmatpush.msra.mxu0 0.0
  %307 = vmatpush.msra.mxu0 0.0
  %308 = vmatpush.msra.mxu0 0.0
  %309 = vmatpush.msra.mxu0 0.0
  %310 = vmatpush.msra.mxu0 0.0
  %311 = vmatpush.msra.mxu0 0.0
  %312 = vmatpush.msra.mxu0 0.0
  %313 = vmatpush.msra.mxu0 0.0
  %314 = vmatpush.msra.mxu0 0.0
  %315 = vmatpush.msra.mxu0 0.0
  %316 = vmatpush.msra.mxu0 %v91
  %317 = vmatpush.msra.mxu0 %v90
  %318 = vmatmul.f32.gmra.mxu0 %v300
  %v319 = vpop.f32.mrf.mxu0
  %v320 = vadd.f32 %v94, %v319
  %321 = vdwg.mxu0
  %v323 = vrot.slane %v320, 2
  %v325 = vadd.f32 %v85, %v323
  %v326 = vxor.u32 %v325, 2147483648
  %v327 = vmul.f32 %v326, 1.442695
  %v328 = vpow.pop %v327
  %v329 = vadd.f32 %v328, 1.0
  %v330 = vrcp.pop %v329
  %v331 = vmul.f32 %v329, %v330
  %v332 = vsub.f32 1.0, %v331
  %v333 = vmul.f32 %v330, %v332
  %v334 = vadd.f32 %v330, %v333
  %vm335 = vweird.f32 %v329
  %vm336 = vweird.f32 %v330
  %vm337 = vmor %vm335, %vm336
  %v338 = vsel %vm337, %v330, %v334
  %v339 = vand.u32 2147483647, %v329
  %vm340 = vcmp.eq.f32.partialorder %v339, 8.507059e+37
  %v341 = vand.u32 %v329, 2147483648
  %v342 = vor.u32 1.1754944e-38, %v341
  %v343 = vsel %vm340, %v342, %v338
  %v344 = vmul.f32 1.0, %v343
  %345 = vrot.lane.b32.xlu0 %v323, 96
  %v346 = vpop.permute.xlu0 %345
  %v348 = vmul.f32 %v344, %v346
  %350 = vrot.lane.b32.xlu0 %v348, 32
  %v351 = vpop.permute.xlu0 %350
  %v353 = vadd.f32 %v85, %v351
  %v354 = vtanh.pop %v353
  %v355 = vsub.f32 1.0, %v344
  %357 = vrot.lane.b32.xlu0 %v354, 112
  %v358 = vpop.permute.xlu0 %357
  %v360 = vmul.f32 %v355, %v358
  %v361 = vrot.slane %v295, 6
  %v363 = vmul.f32 %v344, %v361
  %v364 = vadd.f32 %v360, %v363
  %v366 = vrot.slane %v364, 6
  %367 = vrot.lane.b32.xlu0 %v366, 112
  %v368 = vpop.permute.xlu0 %367
  %v369 = vsel %vm96, %v368, 0
  %371 = vmatpush.msra.mxu0 0.0
  %372 = vmatpush.msra.mxu0 0.0
  %373 = vmatpush.msra.mxu0 0.0
  %374 = vmatpush.msra.mxu0 0.0
  %375 = vmatpush.msra.mxu0 0.0
  %376 = vmatpush.msra.mxu0 0.0
  %377 = vmatpush.msra.mxu0 0.0
  %378 = vmatpush.msra.mxu0 0.0
  %379 = vmatpush.msra.mxu0 0.0
  %380 = vmatpush.msra.mxu0 0.0
  %381 = vmatpush.msra.mxu0 0.0
  %382 = vmatpush.msra.mxu0 0.0
  %383 = vmatpush.msra.mxu0 0.0
  %384 = vmatpush.msra.mxu0 0.0
  %385 = vmatpush.msra.mxu0 %v91
  %386 = vmatpush.msra.mxu0 %v90
  %387 = vmatmul.f32.gmra.mxu0 %v369
  %v388 = vpop.f32.mrf.mxu0
  %v389 = vadd.f32 %v94, %v388
  %390 = vdwg.mxu0
  %v391 = vadd.f32 %v88, %v389
  %v392 = vxor.u32 %v391, 2147483648
  %v393 = vmul.f32 %v392, 1.442695
  %v394 = vpow.pop %v393
  %v395 = vadd.f32 %v394, 1.0
  %v396 = vrcp.pop %v395
  %v397 = vmul.f32 %v395, %v396
  %v398 = vsub.f32 1.0, %v397
  %v399 = vmul.f32 %v396, %v398
  %v400 = vadd.f32 %v396, %v399
  %vm401 = vweird.f32 %v395
  %vm402 = vweird.f32 %v396
  %vm403 = vmor %vm401, %vm402
  %v404 = vsel %vm403, %v396, %v400
  %v405 = vand.u32 2147483647, %v395
  %vm406 = vcmp.eq.f32.partialorder %v405, 8.507059e+37
  %v407 = vand.u32 %v395, 2147483648
  %v408 = vor.u32 1.1754944e-38, %v407
  %v409 = vsel %vm406, %v408, %v404
  %v410 = vmul.f32 1.0, %v409
  %412 = vrot.lane.b32.xlu0 %v389, 96
  %v413 = vpop.permute.xlu0 %412
  %v415 = vmul.f32 %v410, %v413
  %417 = vrot.lane.b32.xlu0 %v415, 32
  %v418 = vpop.permute.xlu0 %417
  %v420 = vadd.f32 %v88, %v418
  %v421 = vtanh.pop %v420
  %v422 = vsub.f32 1.0, %v410
  %424 = vrot.lane.b32.xlu0 %v421, 112
  %v425 = vpop.permute.xlu0 %424
  %v427 = vmul.f32 %v422, %v425
  %v429 = vmul.f32 %v410, %v366
  %v430 = vadd.f32 %v427, %v429
  %432 = vrot.lane.b32.xlu0 %v430, 112
  %v433 = vpop.permute.xlu0 %432
  %v434 = vsel %vm96, %v433, 0
  %436 = vmatpush.msra.mxu0 0.0
  %437 = vmatpush.msra.mxu0 0.0
  %438 = vmatpush.msra.mxu0 0.0
  %439 = vmatpush.msra.mxu0 0.0
  %440 = vmatpush.msra.mxu0 0.0
  %441 = vmatpush.msra.mxu0 0.0
  %442 = vmatpush.msra.mxu0 0.0
  %443 = vmatpush.msra.mxu0 0.0
  %444 = vmatpush.msra.mxu0 0.0
  %445 = vmatpush.msra.mxu0 0.0
  %446 = vmatpush.msra.mxu0 0.0
  %447 = vmatpush.msra.mxu0 0.0
  %448 = vmatpush.msra.mxu0 0.0
  %449 = vmatpush.msra.mxu0 0.0
  %450 = vmatpush.msra.mxu0 %v91
  %451 = vmatpush.msra.mxu0 %v90
  %452 = vmatmul.f32.gmra.mxu0 %v434
  %v453 = vpop.f32.mrf.mxu0
  %v454 = vadd.f32 %v94, %v453
  %455 = vdwg.mxu0
  %v457 = vrot.slane %v454, 6
  %v459 = vadd.f32 %v88, %v457
  %v460 = vxor.u32 %v459, 2147483648
  %v461 = vmul.f32 %v460, 1.442695
  %v462 = vpow.pop %v461
  %v463 = vadd.f32 %v462, 1.0
  %v464 = vrcp.pop %v463
  %v465 = vmul.f32 %v463, %v464
  %v466 = vsub.f32 1.0, %v465
  %v467 = vmul.f32 %v464, %v466
  %v468 = vadd.f32 %v464, %v467
  %vm469 = vweird.f32 %v463
  %vm470 = vweird.f32 %v464
  %vm471 = vmor %vm469, %vm470
  %v472 = vsel %vm471, %v464, %v468
  %v473 = vand.u32 2147483647, %v463
  %vm474 = vcmp.eq.f32.partialorder %v473, 8.507059e+37
  %v475 = vand.u32 %v463, 2147483648
  %v476 = vor.u32 1.1754944e-38, %v475
  %v477 = vsel %vm474, %v476, %v472
  %v478 = vmul.f32 1.0, %v477
  %479 = vrot.lane.b32.xlu0 %v457, 96
  %v480 = vpop.permute.xlu0 %479
  %v482 = vmul.f32 %v478, %v480
  %484 = vrot.lane.b32.xlu0 %v482, 32
  %v485 = vpop.permute.xlu0 %484
  %v487 = vadd.f32 %v88, %v485
  %v488 = vtanh.pop %v487
  %v489 = vsub.f32 1.0, %v478
  %491 = vrot.lane.b32.xlu0 %v488, 112
  %v492 = vpop.permute.xlu0 %491
  %v494 = vmul.f32 %v489, %v492
  %v495 = vrot.slane %v430, 6
  %v497 = vmul.f32 %v478, %v495
  %v498 = vadd.f32 %v494, %v497
  %v500 = vrot.slane %v498, 2
  %501 = vrot.lane.b32.xlu0 %v500, 112
  %v502 = vpop.permute.xlu0 %501
  %v503 = vsel %vm96, %v502, 0
  %505 = vmatpush.msra.mxu0 0.0
  %506 = vmatpush.msra.mxu0 0.0
  %507 = vmatpush.msra.mxu0 0.0
  %508 = vmatpush.msra.mxu0 0.0
  %509 = vmatpush.msra.mxu0 0.0
  %510 = vmatpush.msra.mxu0 0.0
  %511 = vmatpush.msra.mxu0 0.0
  %512 = vmatpush.msra.mxu0 0.0
  %513 = vmatpush.msra.mxu0 0.0
  %514 = vmatpush.msra.mxu0 0.0
  %515 = vmatpush.msra.mxu0 0.0
  %516 = vmatpush.msra.mxu0 0.0
  %517 = vmatpush.msra.mxu0 0.0
  %518 = vmatpush.msra.mxu0 0.0
  %519 = vmatpush.msra.mxu0 %v91
  %520 = vmatpush.msra.mxu0 %v90
  %521 = vmatmul.f32.gmra.mxu0 %v503
  %v522 = vpop.f32.mrf.mxu0
  %v523 = vadd.f32 %v94, %v522
  %524 = vdwg.mxu0
  %v526 = vrot.slane %v523, 4
  %v528 = vadd.f32 %v88, %v526
  %v529 = vxor.u32 %v528, 2147483648
  %v530 = vmul.f32 %v529, 1.442695
  %v531 = vpow.pop %v530
  %v532 = vadd.f32 %v531, 1.0
  %v533 = vrcp.pop %v532
  %v534 = vmul.f32 %v532, %v533
  %v535 = vsub.f32 1.0, %v534
  %v536 = vmul.f32 %v533, %v535
  %v537 = vadd.f32 %v533, %v536
  %vm538 = vweird.f32 %v532
  %vm539 = vweird.f32 %v533
  %vm540 = vmor %vm538, %vm539
  %v541 = vsel %vm540, %v533, %v537
  %v542 = vand.u32 2147483647, %v532
  %vm543 = vcmp.eq.f32.partialorder %v542, 8.507059e+37
  %v544 = vand.u32 %v532, 2147483648
  %v545 = vor.u32 1.1754944e-38, %v544
  %v546 = vsel %vm543, %v545, %v541
  %v547 = vmul.f32 1.0, %v546
  %548 = vrot.lane.b32.xlu0 %v526, 96
  %v549 = vpop.permute.xlu0 %548
  %v551 = vmul.f32 %v547, %v549
  %553 = vrot.lane.b32.xlu0 %v551, 32
  %v554 = vpop.permute.xlu0 %553
  %v556 = vadd.f32 %v88, %v554
  %v557 = vtanh.pop %v556
  %v558 = vsub.f32 1.0, %v547
  %560 = vrot.lane.b32.xlu0 %v557, 112
  %v561 = vpop.permute.xlu0 %560
  %v563 = vmul.f32 %v558, %v561
  %v564 = vrot.slane %v498, 6
  %v566 = vmul.f32 %v547, %v564
  %v567 = vadd.f32 %v563, %v566
  %v569 = vrot.slane %v567, 4
  %570 = vrot.lane.b32.xlu0 %v569, 112
  %v571 = vpop.permute.xlu0 %570
  %v572 = vsel %vm96, %v571, 0
  %574 = vmatpush.msra.mxu0 0.0
  %575 = vmatpush.msra.mxu0 0.0
  %576 = vmatpush.msra.mxu0 0.0
  %577 = vmatpush.msra.mxu0 0.0
  %578 = vmatpush.msra.mxu0 0.0
  %579 = vmatpush.msra.mxu0 0.0
  %580 = vmatpush.msra.mxu0 0.0
  %581 = vmatpush.msra.mxu0 0.0
  %582 = vmatpush.msra.mxu0 0.0
  %583 = vmatpush.msra.mxu0 0.0
  %584 = vmatpush.msra.mxu0 0.0
  %585 = vmatpush.msra.mxu0 0.0
  %586 = vmatpush.msra.mxu0 0.0
  %587 = vmatpush.msra.mxu0 0.0
  %588 = vmatpush.msra.mxu0 %v91
  %589 = vmatpush.msra.mxu0 %v90
  %590 = vmatmul.f32.gmra.mxu0 %v572
  %v591 = vpop.f32.mrf.mxu0
  %v592 = vadd.f32 %v94, %v591
  %593 = vdwg.mxu0
  %v595 = vrot.slane %v592, 2
  %v597 = vadd.f32 %v88, %v595
  %v598 = vxor.u32 %v597, 2147483648
  %v599 = vmul.f32 %v598, 1.442695
  %v600 = vpow.pop %v599
  %v601 = vadd.f32 %v600, 1.0
  %v602 = vrcp.pop %v601
  %v603 = vmul.f32 %v601, %v602
  %v604 = vsub.f32 1.0, %v603
  %v605 = vmul.f32 %v602, %v604
  %v606 = vadd.f32 %v602, %v605
  %vm607 = vweird.f32 %v601
  %vm608 = vweird.f32 %v602
  %vm609 = vmor %vm607, %vm608
  %v610 = vsel %vm609, %v602, %v606
  %v611 = vand.u32 2147483647, %v601
  %vm612 = vcmp.eq.f32.partialorder %v611, 8.507059e+37
  %v613 = vand.u32 %v601, 2147483648
  %v614 = vor.u32 1.1754944e-38, %v613
  %v615 = vsel %vm612, %v614, %v610
  %v616 = vmul.f32 1.0, %v615
  %617 = vrot.lane.b32.xlu0 %v595, 96
  %v618 = vpop.permute.xlu0 %617
  %v620 = vmul.f32 %v616, %v618
  %622 = vrot.lane.b32.xlu0 %v620, 32
  %v623 = vpop.permute.xlu0 %622
  %v625 = vadd.f32 %v88, %v623
  %v626 = vtanh.pop %v625
  %v627 = vsub.f32 1.0, %v616
  %629 = vrot.lane.b32.xlu0 %v626, 112
  %v630 = vpop.permute.xlu0 %629
  %v632 = vmul.f32 %v627, %v630
  %v633 = vrot.slane %v567, 6
  %v635 = vmul.f32 %v616, %v633
  %v636 = vadd.f32 %v632, %v635
  %vm637 = vcmask 1041408
  %v638 = vsel %vm637, %v158, %v226
  %vm639 = vcmask 1043456
  %v640 = vsel %vm639, %v638, %v295
  %vm641 = vcmask 1045504
  %v642 = vsel %vm641, %v640, %v364
  %v643 = vsel %vm637, %v430, %v498
  %v644 = vsel %vm639, %v643, %v567
  %v645 = vsel %vm641, %v644, %v636
  %v646 = vld [vmem:[%s7] sm:$0xff]
  %v647 = vld [vmem:[%s7 + $0x8] sm:$0xff]
  %v648 = vld [vmem:[%s8] sm:$0x1]
  %v650 = vperm.slane %v648, 0
  %654 = vrot.lane.b32.xlu0 %v642, 112
  %v655 = vpop.permute.xlu0 %654
  %656 = vrot.lane.b32.xlu0 %v645, 112
  %v657 = vpop.permute.xlu0 %656
  %v658 = vsel %vm96, %v655, 0
  %v660 = vsel %vm96, %v657, 0
  %662 = vmatpush.msra.mxu0 0.0
  %663 = vmatpush.msra.mxu0 0.0
  %664 = vmatpush.msra.mxu0 0.0
  %665 = vmatpush.msra.mxu0 0.0
  %666 = vmatpush.msra.mxu0 0.0
  %667 = vmatpush.msra.mxu0 0.0
  %668 = vmatpush.msra.mxu0 0.0
  %669 = vmatpush.msra.mxu0 0.0
  %670 = vmatpush.msra.mxu0 0.0
  %671 = vmatpush.msra.mxu0 0.0
  %672 = vmatpush.msra.mxu0 0.0
  %673 = vmatpush.msra.mxu0 0.0
  %674 = vmatpush.msra.mxu0 0.0
  %675 = vmatpush.msra.mxu0 0.0
  %676 = vmatpush.msra.mxu0 %v647
  %677 = vmatpush.msra.mxu0 %v646
  %678 = vmatmul.f32.gmra.mxu0 %v658
  %v679 = vpop.f32.mrf.mxu0
  %v680 = vadd.f32 %v650, %v679
  %681 = vmatmul.f32.gmra.mxu0 %v660
  %v682 = vpop.f32.mrf.mxu0
  %v683 = vadd.f32 %v650, %v682
  %684 = vdwg.mxu0
  %v685 = vlaneseq
  %v686 = vand.u32 %v685, 127
  %vm687 = vcmp.eq.s32.totalorder %v686, 1
  %v688 = vsel %vm687, 1, 0
  %v689 = vcvt.s32.f32 %v688
  %v690 = vld [vmem:[%s9] sm:$0x3]
  %v691 = vld [vmem:[%s5] sm:$0xff]
  %v692 = vld [vmem:[%s5 + $0x8] sm:$0xff]
  %v693 = vld [vmem:[%s6] sm:$0x1]
  %v695 = vperm.slane %v693, 0
  %v698 = vrot.slane %v636, 6
  %699 = vrot.lane.b32.xlu0 %v698, 112
  %v700 = vpop.permute.xlu0 %699
  %v701 = vsel %vm96, %v700, 0
  %703 = vmatpush.msra.mxu0 0.0
  %704 = vmatpush.msra.mxu0 0.0
  %705 = vmatpush.msra.mxu0 0.0
  %706 = vmatpush.msra.mxu0 0.0
  %707 = vmatpush.msra.mxu0 0.0
  %708 = vmatpush.msra.mxu0 0.0
  %709 = vmatpush.msra.mxu0 0.0
  %710 = vmatpush.msra.mxu0 0.0
  %711 = vmatpush.msra.mxu0 0.0
  %712 = vmatpush.msra.mxu0 0.0
  %713 = vmatpush.msra.mxu0 0.0
  %714 = vmatpush.msra.mxu0 0.0
  %715 = vmatpush.msra.mxu0 0.0
  %716 = vmatpush.msra.mxu0 0.0
  %717 = vmatpush.msra.mxu0 %v692
  %718 = vmatpush.msra.mxu0 %v691
  %719 = vmatmul.f32.gmra.mxu0 %v701
  %v720 = vpop.f32.mrf.mxu0
  %v721 = vadd.f32 %v695, %v720
  %722 = vdwg.mxu0
  %v724 = vsel %vm96, %v721, 0
  %v727 = vsel %vm96, %v680, 0
  %v730 = vsel %vm96, %v683, 0
  %732 = vmatpush.xpose.msra.mxu0 0.0
  %733 = vmatpush.xpose.msra.mxu0 0.0
  %734 = vmatpush.xpose.msra.mxu0 0.0
  %735 = vmatpush.xpose.msra.mxu0 0.0
  %736 = vmatpush.xpose.msra.mxu0 0.0
  %737 = vmatpush.xpose.msra.mxu0 0.0
  %738 = vmatpush.xpose.msra.mxu0 0.0
  %739 = vmatpush.xpose.msra.mxu0 0.0
  %740 = vmatpush.xpose.msra.mxu0 0.0
  %741 = vmatpush.xpose.msra.mxu0 0.0
  %742 = vmatpush.xpose.msra.mxu0 0.0
  %743 = vmatpush.xpose.msra.mxu0 0.0
  %744 = vmatpush.xpose.msra.mxu0 0.0
  %745 = vmatpush.xpose.msra.mxu0 0.0
  %746 = vmatpush.xpose.msra.mxu0 %v730
  %747 = vmatpush.xpose.msra.mxu0 %v727
  %748 = vmatmul.f32.gmra.mxu0 %v724
  %v749 = vpop.f32.mrf.mxu0
  %v750 = vadd.f32 0.0, %v749
  %751 = vdwg.mxu0
  %v752 = vmul.f32 %v750, 0.25
  %v753 = vadd.f32 %v752, %v690
  %vm754 = vcmask 123904
  %v755 = vsel %vm754, %v753, -inf
  %756 = vmax.xlane.f32.xlu0 %v755
  %v757 = vpop.xlane.xlu0 %756
  %v758 = vsub.f32 %v753, %v757
  %v759 = vmul.f32 %v758, 1.442695
  %v760 = vpow.pop %v759
  %v761 = vsel %vm754, %v760, 0.0
  %762 = vadd.xlane.f32.xlu0 %v761
  %v763 = vpop.xlane.xlu0 %762
  %v764 = vrcp.pop %v763
  %v765 = vmul.f32 %v763, %v764
  %v766 = vsub.f32 1.0, %v765
  %v767 = vmul.f32 %v764, %v766
  %v768 = vadd.f32 %v764, %v767
  %vm769 = vweird.f32 %v763
  %vm770 = vweird.f32 %v764
  %vm771 = vmor %vm769, %vm770
  %v772 = vsel %vm771, %v764, %v768
  %v773 = vand.u32 2147483647, %v763
  %vm774 = vcmp.eq.f32.partialorder %v773, 8.507059e+37
  %v775 = vand.u32 %v763, 2147483648
  %v776 = vor.u32 1.1754944e-38, %v775
  %v777 = vsel %vm774, %v776, %v772
  %v778 = vmul.f32 %v760, %v777
  %779 = vrot.lane.b32.xlu0 %v680, 112
  %v780 = vpop.permute.xlu0 %779
  %781 = vrot.lane.b32.xlu0 %v683, 112
  %v782 = vpop.permute.xlu0 %781
  %v786 = vsel %vm96, %v778, 0
  %788 = vmatpush.msra.mxu0 0.0
  %789 = vmatpush.msra.mxu0 0.0
  %790 = vmatpush.msra.mxu0 0.0
  %791 = vmatpush.msra.mxu0 0.0
  %792 = vmatpush.msra.mxu0 0.0
  %793 = vmatpush.msra.mxu0 0.0
  %794 = vmatpush.msra.mxu0 0.0
  %795 = vmatpush.msra.mxu0 0.0
  %796 = vmatpush.msra.mxu0 0.0
  %797 = vmatpush.msra.mxu0 0.0
  %798 = vmatpush.msra.mxu0 0.0
  %799 = vmatpush.msra.mxu0 0.0
  %800 = vmatpush.msra.mxu0 0.0
  %801 = vmatpush.msra.mxu0 0.0
  %802 = vmatpush.msra.mxu0 %v782
  %803 = vmatpush.msra.mxu0 %v780
  %804 = vmatmul.f32.gmra.mxu0 %v786
  %v805 = vpop.f32.mrf.mxu0
  %v806 = vadd.f32 0.0, %v805
  %807 = vdwg.mxu0
  %v808 = vld [vmem:[%s10] sm:$0xff]
  %v809 = vld [vmem:[%s10 + $0x8] sm:$0xff]
  %v810 = vld [vmem:[%s10 + $0x10] sm:$0xff]
  %v811 = vld [vmem:[%s10 + $0x18] sm:$0xff]
  %v812 = vld [vmem:[%s10 + $0x20] sm:$0xff]
  %v813 = vld [vmem:[%s10 + $0x28] sm:$0xff]
  %v814 = vld [vmem:[%s10 + $0x30] sm:$0xff]
  %v815 = vld [vmem:[%s10 + $0x38] sm:$0xff]
  %v816 = vld [vmem:[%s10 + $0x40] sm:$0xff]
  %v817 = vld [vmem:[%s10 + $0x48] sm:$0xff]
  %v818 = vld [vmem:[%s10 + $0x50] sm:$0xff]
  %v819 = vld [vmem:[%s10 + $0x58] sm:$0xff]
  %v820 = vld [vmem:[%s10 + $0x60] sm:$0xff]
  %v821 = vld [vmem:[%s10 + $0x68] sm:$0xff]
  %v822 = vld [vmem:[%s10 + $0x70] sm:$0xff]
  %v823 = vld [vmem:[%s10 + $0x78] sm:$0xff]
  %v824 = vld [vmem:[%s11] sm:$0x1]
  %v826 = vperm.slane %v824, 0
  %828 = vmatpush.msra.mxu0 %v823
  %829 = vmatpush.msra.mxu0 %v822
  %830 = vmatpush.msra.mxu0 %v821
  %831 = vmatpush.msra.mxu0 %v820
  %832 = vmatpush.msra.mxu0 %v819
  %833 = vmatpush.msra.mxu0 %v818
  %834 = vmatpush.msra.mxu0 %v817
  %835 = vmatpush.msra.mxu0 %v816
  %836 = vmatpush.msra.mxu0 %v815
  %837 = vmatpush.msra.mxu0 %v814
  %838 = vmatpush.msra.mxu0 %v813
  %839 = vmatpush.msra.mxu0 %v812
  %840 = vmatpush.msra.mxu0 %v811
  %841 = vmatpush.msra.mxu0 %v810
  %842 = vmatpush.msra.mxu0 %v809
  %843 = vmatpush.msra.mxu0 %v808
  %844 = vmatmul.f32.gmra.mxu0 %v689
  %v845 = vpop.f32.mrf.mxu0
  %v846 = vadd.f32 %v826, %v845
  %847 = vdwg.mxu0
  %v848 = vld [vmem:[%s12] sm:$0xff]
  %v849 = vld [vmem:[%s12 + $0x8] sm:$0xff]
  %v850 = vld [vmem:[%s13] sm:$0x1]
  %v852 = vperm.slane %v850, 0
  %v855 = vsel %vm96, %v806, 0
  %857 = vmatpush.msra.mxu0 0.0
  %858 = vmatpush.msra.mxu0 0.0
  %859 = vmatpush.msra.mxu0 0.0
  %860 = vmatpush.msra.mxu0 0.0
  %861 = vmatpush.msra.mxu0 0.0
  %862 = vmatpush.msra.mxu0 0.0
  %863 = vmatpush.msra.mxu0 0.0
  %864 = vmatpush.msra.mxu0 0.0
  %865 = vmatpush.msra.mxu0 0.0
  %866 = vmatpush.msra.mxu0 0.0
  %867 = vmatpush.msra.mxu0 0.0
  %868 = vmatpush.msra.mxu0 0.0
  %869 = vmatpush.msra.mxu0 0.0
  %870 = vmatpush.msra.mxu0 0.0
  %871 = vmatpush.msra.mxu0 %v849
  %872 = vmatpush.msra.mxu0 %v848
  %873 = vmatmul.f32.gmra.mxu0 %v855
  %v874 = vpop.f32.mrf.mxu0
  %v875 = vadd.f32 %v852, %v874
  %876 = vdwg.mxu0
  %v877 = vadd.f32 %v846, %v875
  %v878 = vxor.u32 %v877, 2147483648
  %v879 = vmul.f32 %v878, 1.442695
  %v880 = vpow.pop %v879
  %v881 = vadd.f32 %v880, 1.0
  %v882 = vrcp.pop %v881
  %v883 = vmul.f32 %v881, %v882
  %v884 = vsub.f32 1.0, %v883
  %v885 = vmul.f32 %v882, %v884
  %v886 = vadd.f32 %v882, %v885
  %vm887 = vweird.f32 %v881
  %vm888 = vweird.f32 %v882
  %vm889 = vmor %vm887, %vm888
  %v890 = vsel %vm889, %v882, %v886
  %v891 = vand.u32 2147483647, %v881
  %vm892 = vcmp.eq.f32.partialorder %v891, 8.507059e+37
  %v893 = vand.u32 %v881, 2147483648
  %v894 = vor.u32 1.1754944e-38, %v893
  %v895 = vsel %vm892, %v894, %v890
  %v896 = vmul.f32 1.0, %v895
  %898 = vrot.lane.b32.xlu0 %v875, 96
  %v899 = vpop.permute.xlu0 %898
  %v901 = vmul.f32 %v896, %v899
  %903 = vrot.lane.b32.xlu0 %v901, 32
  %v904 = vpop.permute.xlu0 %903
  %v906 = vadd.f32 %v846, %v904
  %v907 = vtanh.pop %v906
  %v908 = vsub.f32 1.0, %v896
  %910 = vrot.lane.b32.xlu0 %v907, 112
  %v911 = vpop.permute.xlu0 %910
  %v913 = vmul.f32 %v908, %v911
  %914 = vrot.lane.b32.xlu0 %v806, 16
  %v915 = vpop.permute.xlu0 %914
  %v917 = vmul.f32 %v896, %v915
  %v918 = vadd.f32 %v913, %v917
  %v919 = vld [vmem:[%s14] sm:$0xff]
  %v920 = vld [vmem:[%s14 + $0x8] sm:$0xff]
  %v921 = vld [vmem:[%s15] sm:$0x1]
  %v923 = vperm.slane %v921, 0
  %926 = vrot.lane.b32.xlu0 %v918, 112
  %v927 = vpop.permute.xlu0 %926
  %v928 = vsel %vm96, %v927, 0
  %930 = vmatpush.msra.mxu0 0.0
  %931 = vmatpush.msra.mxu0 0.0
  %932 = vmatpush.msra.mxu0 0.0
  %933 = vmatpush.msra.mxu0 0.0
  %934 = vmatpush.msra.mxu0 0.0
  %935 = vmatpush.msra.mxu0 0.0
  %936 = vmatpush.msra.mxu0 0.0
  %937 = vmatpush.msra.mxu0 0.0
  %938 = vmatpush.msra.mxu0 0.0
  %939 = vmatpush.msra.mxu0 0.0
  %940 = vmatpush.msra.mxu0 0.0
  %941 = vmatpush.msra.mxu0 0.0
  %942 = vmatpush.msra.mxu0 0.0
  %943 = vmatpush.msra.mxu0 0.0
  %944 = vmatpush.msra.mxu0 %v920
  %945 = vmatpush.msra.mxu0 %v919
  %946 = vmatmul.f32.gmra.mxu0 %v928
  %v947 = vpop.f32.mrf.mxu0
  %v948 = vadd.f32 %v923, %v947
  %949 = vdwg.mxu0
  %950 = vst [vmem:[%s16] sm:$0x3] %v948
  %v951 = vsel %vm637, %v948, -inf
  %952 = vmax.xlane.f32.xlu0 %v951
  %v953 = vpop.xlane.xlu0 %952
  %vm954 = vcmp.eq.f32.partialorder %v948, %v953
  %v955 = vsel %vm954, %v686, 128
  %v956 = vsel %vm637, %v955, 2147483647
  %v957 = vand.u32 %v956, 65535
  %v958 = vshra.s32 %v956, 16
  %v959 = vcvt.s32.f32 %v957
  %v960 = vcvt.s32.f32 %v958
  %961 = vmin.xlane.f32.xlu0 %v960
  %v962 = vpop.xlane.xlu0 %961
  %vm963 = vcmp.eq.f32.partialorder %v960, %v962
  %v964 = vsel %vm963, %v959, inf
  %965 = vmin.xlane.f32.xlu0 %v964
  %v966 = vpop.xlane.xlu0 %965
  %v967 = vcvt.f32.s32 %v966
  %v968 = vcvt.f32.s32 %v962
  %v969 = vshll.u32 %v968, 16
  %v970 = vadd.s32 %v969, %v967
  %vm971 = vcmp.eq.s32.totalorder %v686, %v970
  %v972 = vsel %vm971, 1, 0
  %v973 = vcvt.s32.f32 %v972
  %v974 = vld [vmem:[%s5] sm:$0xff]
  %v975 = vld [vmem:[%s5 + $0x8] sm:$0xff]
  %v976 = vld [vmem:[%s6] sm:$0x1]
  %v978 = vperm.slane %v976, 0
  %980 = vmatpush.msra.mxu0 0.0
  %981 = vmatpush.msra.mxu0 0.0
  %982 = vmatpush.msra.mxu0 0.0
  %983 = vmatpush.msra.mxu0 0.0
  %984 = vmatpush.msra.mxu0 0.0
  %985 = vmatpush.msra.mxu0 0.0
  %986 = vmatpush.msra.mxu0 0.0
  %987 = vmatpush.msra.mxu0 0.0
  %988 = vmatpush.msra.mxu0 0.0
  %989 = vmatpush.msra.mxu0 0.0
  %990 = vmatpush.msra.mxu0 0.0
  %991 = vmatpush.msra.mxu0 0.0
  %992 = vmatpush.msra.mxu0 0.0
  %993 = vmatpush.msra.mxu0 0.0
  %994 = vmatpush.msra.mxu0 %v975
  %995 = vmatpush.msra.mxu0 %v974
  %996 = vmatmul.f32.gmra.mxu0 %v928
  %v997 = vpop.f32.mrf.mxu0
  %v998 = vadd.f32 %v978, %v997
  %999 = vdwg.mxu0
  %v1001 = vsel %vm96, %v998, 0
  %1003 = vmatpush.xpose.msra.mxu0 0.0
  %1004 = vmatpush.xpose.msra.mxu0 0.0
  %1005 = vmatpush.xpose.msra.mxu0 0.0
  %1006 = vmatpush.xpose.msra.mxu0 0.0
  %1007 = vmatpush.xpose.msra.mxu0 0.0
  %1008 = vmatpush.xpose.msra.mxu0 0.0
  %1009 = vmatpush.xpose.msra.mxu0 0.0
  %1010 = vmatpush.xpose.msra.mxu0 0.0
  %1011 = vmatpush.xpose.msra.mxu0 0.0
  %1012 = vmatpush.xpose.msra.mxu0 0.0
  %1013 = vmatpush.xpose.msra.mxu0 0.0
  %1014 = vmatpush.xpose.msra.mxu0 0.0
  %1015 = vmatpush.xpose.msra.mxu0 0.0
  %1016 = vmatpush.xpose.msra.mxu0 0.0
  %1017 = vmatpush.xpose.msra.mxu0 %v730
  %1018 = vmatpush.xpose.msra.mxu0 %v727
  %1019 = vmatmul.f32.gmra.mxu0 %v1001
  %v1020 = vpop.f32.mrf.mxu0
  %v1021 = vadd.f32 0.0, %v1020
  %1022 = vdwg.mxu0
  %v1023 = vmul.f32 %v1021, 0.25
  %v1024 = vadd.f32 %v1023, %v690
  %v1025 = vsel %vm754, %v1024, -inf
  %1026 = vmax.xlane.f32.xlu0 %v1025
  %v1027 = vpop.xlane.xlu0 %1026
  %v1028 = vsub.f32 %v1024, %v1027
  %v1029 = vmul.f32 %v1028, 1.442695
  %v1030 = vpow.pop %v1029
  %v1031 = vsel %vm754, %v1030, 0.0
  %1032 = vadd.xlane.f32.xlu0 %v1031
  %v1033 = vpop.xlane.xlu0 %1032
  %v1034 = vrcp.pop %v1033
  %v1035 = vmul.f32 %v1033, %v1034
  %v1036 = vsub.f32 1.0, %v1035
  %v1037 = vmul.f32 %v1034, %v1036
  %v1038 = vadd.f32 %v1034, %v1037
  %vm1039 = vweird.f32 %v1033
  %vm1040 = vweird.f32 %v1034
  %vm1041 = vmor %vm1039, %vm1040
  %v1042 = vsel %vm1041, %v1034, %v1038
  %v1043 = vand.u32 2147483647, %v1033
  %vm1044 = vcmp.eq.f32.partialorder %v1043, 8.507059e+37
  %v1045 = vand.u32 %v1033, 2147483648
  %v1046 = vor.u32 1.1754944e-38, %v1045
  %v1047 = vsel %vm1044, %v1046, %v1042
  %v1048 = vmul.f32 %v1030, %v1047
  %v1050 = vsel %vm96, %v1048, 0
  %1052 = vmatpush.msra.mxu0 0.0
  %1053 = vmatpush.msra.mxu0 0.0
  %1054 = vmatpush.msra.mxu0 0.0
  %1055 = vmatpush.msra.mxu0 0.0
  %1056 = vmatpush.msra.mxu0 0.0
  %1057 = vmatpush.msra.mxu0 0.0
  %1058 = vmatpush.msra.mxu0 0.0
  %1059 = vmatpush.msra.mxu0 0.0
  %1060 = vmatpush.msra.mxu0 0.0
  %1061 = vmatpush.msra.mxu0 0.0
  %1062 = vmatpush.msra.mxu0 0.0
  %1063 = vmatpush.msra.mxu0 0.0
  %1064 = vmatpush.msra.mxu0 0.0
  %1065 = vmatpush.msra.mxu0 0.0
  %1066 = vmatpush.msra.mxu0 %v782
  %1067 = vmatpush.msra.mxu0 %v780
  %1068 = vmatmul.f32.gmra.mxu0 %v1050
  %v1069 = vpop.f32.mrf.mxu0
  %v1070 = vadd.f32 0.0, %v1069
  %1071 = vdwg.mxu0
  %v1072 = vld [vmem:[%s10] sm:$0xff]
  %v1073 = vld [vmem:[%s10 + $0x8] sm:$0xff]
  %v1074 = vld [vmem:[%s10 + $0x10] sm:$0xff]
  %v1075 = vld [vmem:[%s10 + $0x18] sm:$0xff]
  %v1076 = vld [vmem:[%s10 + $0x20] sm:$0xff]
  %v1077 = vld [vmem:[%s10 + $0x28] sm:$0xff]
  %v1078 = vld [vmem:[%s10 + $0x30] sm:$0xff]
  %v1079 = vld [vmem:[%s10 + $0x38] sm:$0xff]
  %v1080 = vld [vmem:[%s10 + $0x40] sm:$0xff]
  %v1081 = vld [vmem:[%s10 + $0x48] sm:$0xff]
  %v1082 = vld [vmem:[%s10 + $0x50] sm:$0xff]
  %v1083 = vld [vmem:[%s10 + $0x58] sm:$0xff]
  %v1084 = vld [vmem:[%s10 + $0x60] sm:$0xff]
  %v1085 = vld [vmem:[%s10 + $0x68] sm:$0xff]
  %v1086 = vld [vmem:[%s10 + $0x70] sm:$0xff]
  %v1087 = vld [vmem:[%s10 + $0x78] sm:$0xff]
  %v1088 = vld [vmem:[%s11] sm:$0x1]
  %v1090 = vperm.slane %v1088, 0
  %1092 = vmatpush.msra.mxu0 %v1087
  %1093 = vmatpush.msra.mxu0 %v1086
  %1094 = vmatpush.msra.mxu0 %v1085
  %1095 = vmatpush.msra.mxu0 %v1084
  %1096 = vmatpush.msra.mxu0 %v1083
  %1097 = vmatpush.msra.mxu0 %v1082
  %1098 = vmatpush.msra.mxu0 %v1081
  %1099 = vmatpush.msra.mxu0 %v1080
  %1100 = vmatpush.msra.mxu0 %v1079
  %1101 = vmatpush.msra.mxu0 %v1078
  %1102 = vmatpush.msra.mxu0 %v1077
  %1103 = vmatpush.msra.mxu0 %v1076
  %1104 = vmatpush.msra.mxu0 %v1075
  %1105 = vmatpush.msra.mxu0 %v1074
  %1106 = vmatpush.msra.mxu0 %v1073
  %1107 = vmatpush.msra.mxu0 %v1072
  %1108 = vmatmul.f32.gmra.mxu0 %v973
  %v1109 = vpop.f32.mrf.mxu0
  %v1110 = vadd.f32 %v1090, %v1109
  %1111 = vdwg.mxu0
  %v1112 = vld [vmem:[%s12] sm:$0xff]
  %v1113 = vld [vmem:[%s12 + $0x8] sm:$0xff]
  %v1114 = vld [vmem:[%s13] sm:$0x1]
  %v1116 = vperm.slane %v1114, 0
  %v1119 = vsel %vm96, %v1070, 0
  %1121 = vmatpush.msra.mxu0 0.0
  %1122 = vmatpush.msra.mxu0 0.0
  %1123 = vmatpush.msra.mxu0 0.0
  %1124 = vmatpush.msra.mxu0 0.0
  %1125 = vmatpush.msra.mxu0 0.0
  %1126 = vmatpush.msra.mxu0 0.0
  %1127 = vmatpush.msra.mxu0 0.0
  %1128 = vmatpush.msra.mxu0 0.0
  %1129 = vmatpush.msra.mxu0 0.0
  %1130 = vmatpush.msra.mxu0 0.0
  %1131 = vmatpush.msra.mxu0 0.0
  %1132 = vmatpush.msra.mxu0 0.0
  %1133 = vmatpush.msra.mxu0 0.0
  %1134 = vmatpush.msra.mxu0 0.0
  %1135 = vmatpush.msra.mxu0 %v1113
  %1136 = vmatpush.msra.mxu0 %v1112
  %1137 = vmatmul.f32.gmra.mxu0 %v1119
  %v1138 = vpop.f32.mrf.mxu0
  %v1139 = vadd.f32 %v1116, %v1138
  %1140 = vdwg.mxu0
  %v1141 = vadd.f32 %v1110, %v1139
  %v1142 = vxor.u32 %v1141, 2147483648
  %v1143 = vmul.f32 %v1142, 1.442695
  %v1144 = vpow.pop %v1143
  %v1145 = vadd.f32 %v1144, 1.0
  %v1146 = vrcp.pop %v1145
  %v1147 = vmul.f32 %v1145, %v1146
  %v1148 = vsub.f32 1.0, %v1147
  %v1149 = vmul.f32 %v1146, %v1148
  %v1150 = vadd.f32 %v1146, %v1149
  %vm1151 = vweird.f32 %v1145
  %vm1152 = vweird.f32 %v1146
  %vm1153 = vmor %vm1151, %vm1152
  %v1154 = vsel %vm1153, %v1146, %v1150
  %v1155 = vand.u32 2147483647, %v1145
  %vm1156 = vcmp.eq.f32.partialorder %v1155, 8.507059e+37
  %v1157 = vand.u32 %v1145, 2147483648
  %v1158 = vor.u32 1.1754944e-38, %v1157
  %v1159 = vsel %vm1156, %v1158, %v1154
  %v1160 = vmul.f32 1.0, %v1159
  %1162 = vrot.lane.b32.xlu0 %v1139, 96
  %v1163 = vpop.permute.xlu0 %1162
  %v1165 = vmul.f32 %v1160, %v1163
  %1167 = vrot.lane.b32.xlu0 %v1165, 32
  %v1168 = vpop.permute.xlu0 %1167
  %v1170 = vadd.f32 %v1110, %v1168
  %v1171 = vtanh.pop %v1170
  %v1172 = vsub.f32 1.0, %v1160
  %1174 = vrot.lane.b32.xlu0 %v1171, 112
  %v1175 = vpop.permute.xlu0 %1174
  %v1177 = vmul.f32 %v1172, %v1175
  %1178 = vrot.lane.b32.xlu0 %v1070, 16
  %v1179 = vpop.permute.xlu0 %1178
  %v1181 = vmul.f32 %v1160, %v1179
  %v1182 = vadd.f32 %v1177, %v1181
  %v1183 = vld [vmem:[%s14] sm:$0xff]
  %v1184 = vld [vmem:[%s14 + $0x8] sm:$0xff]
  %v1185 = vld [vmem:[%s15] sm:$0x1]
  %v1187 = vperm.slane %v1185, 0
  %1190 = vrot.lane.b32.xlu0 %v1182, 112
  %v1191 = vpop.permute.xlu0 %1190
  %v1192 = vsel %vm96, %v1191, 0
  %1194 = vmatpush.msra.mxu0 0.0
  %1195 = vmatpush.msra.mxu0 0.0
  %1196 = vmatpush.msra.mxu0 0.0
  %1197 = vmatpush.msra.mxu0 0.0
  %1198 = vmatpush.msra.mxu0 0.0
  %1199 = vmatpush.msra.mxu0 0.0
  %1200 = vmatpush.msra.mxu0 0.0
  %1201 = vmatpush.msra.mxu0 0.0
  %1202 = vmatpush.msra.mxu0 0.0
  %1203 = vmatpush.msra.mxu0 0.0
  %1204 = vmatpush.msra.mxu0 0.0
  %1205 = vmatpush.msra.mxu0 0.0
  %1206 = vmatpush.msra.mxu0 0.0
  %1207 = vmatpush.msra.mxu0 0.0
  %1208 = vmatpush.msra.mxu0 %v1184
  %1209 = vmatpush.msra.mxu0 %v1183
  %1210 = vmatmul.f32.gmra.mxu0 %v1192
  %v1211 = vpop.f32.mrf.mxu0
  %v1212 = vadd.f32 %v1187, %v1211
  %1213 = vdwg.mxu0
  %1214 = vst [vmem:[%s16 + $0x2] sm:$0x3] %v1212
  %v1215 = vsel %vm637, %v1212, -inf
  %1216 = vmax.xlane.f32.xlu0 %v1215
  %v1217 = vpop.xlane.xlu0 %1216
  %vm1218 = vcmp.eq.f32.partialorder %v1212, %v1217
  %v1219 = vsel %vm1218, %v686, 128
  %v1220 = vsel %vm637, %v1219, 2147483647
  %v1221 = vand.u32 %v1220, 65535
  %v1222 = vshra.s32 %v1220, 16
  %v1223 = vcvt.s32.f32 %v1221
  %v1224 = vcvt.s32.f32 %v1222
  %1225 = vmin.xlane.f32.xlu0 %v1224
  %v1226 = vpop.xlane.xlu0 %1225
  %vm1227 = vcmp.eq.f32.partialorder %v1224, %v1226
  %v1228 = vsel %vm1227, %v1223, inf
  %1229 = vmin.xlane.f32.xlu0 %v1228
  %v1230 = vpop.xlane.xlu0 %1229
  %v1231 = vcvt.f32.s32 %v1230
  %v1232 = vcvt.f32.s32 %v1226
  %v1233 = vshll.u32 %v1232, 16
  %v1234 = vadd.s32 %v1233, %v1231
  %vm1235 = vcmp.eq.s32.totalorder %v686, %v1234
  %v1236 = vsel %vm1235, 1, 0
  %v1237 = vcvt.s32.f32 %v1236
  %v1238 = vld [vmem:[%s5] sm:$0xff]
  %v1239 = vld [vmem:[%s5 + $0x8] sm:$0xff]
  %v1240 = vld [vmem:[%s6] sm:$0x1]
  %v1242 = vperm.slane %v1240, 0
  %1244 = vmatpush.msra.mxu0 0.0
  %1245 = vmatpush.msra.mxu0 0.0
  %1246 = vmatpush.msra.mxu0 0.0
  %1247 = vmatpush.msra.mxu0 0.0
  %1248 = vmatpush.msra.mxu0 0.0
  %1249 = vmatpush.msra.mxu0 0.0
  %1250 = vmatpush.msra.mxu0 0.0
  %1251 = vmatpush.msra.mxu0 0.0
  %1252 = vmatpush.msra.mxu0 0.0
  %1253 = vmatpush.msra.mxu0 0.0
  %1254 = vmatpush.msra.mxu0 0.0
  %1255 = vmatpush.msra.mxu0 0.0
  %1256 = vmatpush.msra.mxu0 0.0
  %1257 = vmatpush.msra.mxu0 0.0
  %1258 = vmatpush.msra.mxu0 %v1239
  %1259 = vmatpush.msra.mxu0 %v1238
  %1260 = vmatmul.f32.gmra.mxu0 %v1192
  %v1261 = vpop.f32.mrf.mxu0
  %v1262 = vadd.f32 %v1242, %v1261
  %1263 = vdwg.mxu0
  %v1265 = vsel %vm96, %v1262, 0
  %1267 = vmatpush.xpose.msra.mxu0 0.0
  %1268 = vmatpush.xpose.msra.mxu0 0.0
  %1269 = vmatpush.xpose.msra.mxu0 0.0
  %1270 = vmatpush.xpose.msra.mxu0 0.0
  %1271 = vmatpush.xpose.msra.mxu0 0.0
  %1272 = vmatpush.xpose.msra.mxu0 0.0
  %1273 = vmatpush.xpose.msra.mxu0 0.0
  %1274 = vmatpush.xpose.msra.mxu0 0.0
  %1275 = vmatpush.xpose.msra.mxu0 0.0
  %1276 = vmatpush.xpose.msra.mxu0 0.0
  %1277 = vmatpush.xpose.msra.mxu0 0.0
  %1278 = vmatpush.xpose.msra.mxu0 0.0
  %1279 = vmatpush.xpose.msra.mxu0 0.0
  %1280 = vmatpush.xpose.msra.mxu0 0.0
  %1281 = vmatpush.xpose.msra.mxu0 %v730
  %1282 = vmatpush.xpose.msra.mxu0 %v727
  %1283 = vmatmul.f32.gmra.mxu0 %v1265
  %v1284 = vpop.f32.mrf.mxu0
  %v1285 = vadd.f32 0.0, %v1284
  %1286 = vdwg.mxu0
  %v1287 = vmul.f32 %v1285, 0.25
  %v1288 = vadd.f32 %v1287, %v690
  %v1289 = vsel %vm754, %v1288, -inf
  %1290 = vmax.xlane.f32.xlu0 %v1289
  %v1291 = vpop.xlane.xlu0 %1290
  %v1292 = vsub.f32 %v1288, %v1291
  %v1293 = vmul.f32 %v1292, 1.442695
  %v1294 = vpow.pop %v1293
  %v1295 = vsel %vm754, %v1294, 0.0
  %1296 = vadd.xlane.f32.xlu0 %v1295
  %v1297 = vpop.xlane.xlu0 %1296
  %v1298 = vrcp.pop %v1297
  %v1299 = vmul.f32 %v1297, %v1298
  %v1300 = vsub.f32 1.0, %v1299
  %v1301 = vmul.f32 %v1298, %v1300
  %v1302 = vadd.f32 %v1298, %v1301
  %vm1303 = vweird.f32 %v1297
  %vm1304 = vweird.f32 %v1298
  %vm1305 = vmor %vm1303, %vm1304
  %v1306 = vsel %vm1305, %v1298, %v1302
  %v1307 = vand.u32 2147483647, %v1297
  %vm1308 = vcmp.eq.f32.partialorder %v1307, 8.507059e+37
  %v1309 = vand.u32 %v1297, 2147483648
  %v1310 = vor.u32 1.1754944e-38, %v1309
  %v1311 = vsel %vm1308, %v1310, %v1306
  %v1312 = vmul.f32 %v1294, %v1311
  %v1314 = vsel %vm96, %v1312, 0
  %1316 = vmatpush.msra.mxu0 0.0
  %1317 = vmatpush.msra.mxu0 0.0
  %1318 = vmatpush.msra.mxu0 0.0
  %1319 = vmatpush.msra.mxu0 0.0
  %1320 = vmatpush.msra.mxu0 0.0
  %1321 = vmatpush.msra.mxu0 0.0
  %1322 = vmatpush.msra.mxu0 0.0
  %1323 = vmatpush.msra.mxu0 0.0
  %1324 = vmatpush.msra.mxu0 0.0
  %1325 = vmatpush.msra.mxu0 0.0
  %1326 = vmatpush.msra.mxu0 0.0
  %1327 = vmatpush.msra.mxu0 0.0
  %1328 = vmatpush.msra.mxu0 0.0
  %1329 = vmatpush.msra.mxu0 0.0
  %1330 = vmatpush.msra.mxu0 %v782
  %1331 = vmatpush.msra.mxu0 %v780
  %1332 = vmatmul.f32.gmra.mxu0 %v1314
  %v1333 = vpop.f32.mrf.mxu0
  %v1334 = vadd.f32 0.0, %v1333
  %1335 = vdwg.mxu0
  %v1336 = vld [vmem:[%s10] sm:$0xff]
  %v1337 = vld [vmem:[%s10 + $0x8] sm:$0xff]
  %v1338 = vld [vmem:[%s10 + $0x10] sm:$0xff]
  %v1339 = vld [vmem:[%s10 + $0x18] sm:$0xff]
  %v1340 = vld [vmem:[%s10 + $0x20] sm:$0xff]
  %v1341 = vld [vmem:[%s10 + $0x28] sm:$0xff]
  %v1342 = vld [vmem:[%s10 + $0x30] sm:$0xff]
  %v1343 = vld [vmem:[%s10 + $0x38] sm:$0xff]
  %v1344 = vld [vmem:[%s10 + $0x40] sm:$0xff]
  %v1345 = vld [vmem:[%s10 + $0x48] sm:$0xff]
  %v1346 = vld [vmem:[%s10 + $0x50] sm:$0xff]
  %v1347 = vld [vmem:[%s10 + $0x58] sm:$0xff]
  %v1348 = vld [vmem:[%s10 + $0x60] sm:$0xff]
  %v1349 = vld [vmem:[%s10 + $0x68] sm:$0xff]
  %v1350 = vld [vmem:[%s10 + $0x70] sm:$0xff]
  %v1351 = vld [vmem:[%s10 + $0x78] sm:$0xff]
  %v1352 = vld [vmem:[%s11] sm:$0x1]
  %v1354 = vperm.slane %v1352, 0
  %1356 = vmatpush.msra.mxu0 %v1351
  %1357 = vmatpush.msra.mxu0 %v1350
  %1358 = vmatpush.msra.mxu0 %v1349
  %1359 = vmatpush.msra.mxu0 %v1348
  %1360 = vmatpush.msra.mxu0 %v1347
  %1361 = vmatpush.msra.mxu0 %v1346
  %1362 = vmatpush.msra.mxu0 %v1345
  %1363 = vmatpush.msra.mxu0 %v1344
  %1364 = vmatpush.msra.mxu0 %v1343
  %1365 = vmatpush.msra.mxu0 %v1342
  %1366 = vmatpush.msra.mxu0 %v1341
  %1367 = vmatpush.msra.mxu0 %v1340
  %1368 = vmatpush.msra.mxu0 %v1339
  %1369 = vmatpush.msra.mxu0 %v1338
  %1370 = vmatpush.msra.mxu0 %v1337
  %1371 = vmatpush.msra.mxu0 %v1336
  %1372 = vmatmul.f32.gmra.mxu0 %v1237
  %v1373 = vpop.f32.mrf.mxu0
  %v1374 = vadd.f32 %v1354, %v1373
  %1375 = vdwg.mxu0
  %v1376 = vld [vmem:[%s12] sm:$0xff]
  %v1377 = vld [vmem:[%s12 + $0x8] sm:$0xff]
  %v1378 = vld [vmem:[%s13] sm:$0x1]
  %v1380 = vperm.slane %v1378, 0
  %v1383 = vsel %vm96, %v1334, 0
  %1385 = vmatpush.msra.mxu0 0.0
  %1386 = vmatpush.msra.mxu0 0.0
  %1387 = vmatpush.msra.mxu0 0.0
  %1388 = vmatpush.msra.mxu0 0.0
  %1389 = vmatpush.msra.mxu0 0.0
  %1390 = vmatpush.msra.mxu0 0.0
  %1391 = vmatpush.msra.mxu0 0.0
  %1392 = vmatpush.msra.mxu0 0.0
  %1393 = vmatpush.msra.mxu0 0.0
  %1394 = vmatpush.msra.mxu0 0.0
  %1395 = vmatpush.msra.mxu0 0.0
  %1396 = vmatpush.msra.mxu0 0.0
  %1397 = vmatpush.msra.mxu0 0.0
  %1398 = vmatpush.msra.mxu0 0.0
  %1399 = vmatpush.msra.mxu0 %v1377
  %1400 = vmatpush.msra.mxu0 %v1376
  %1401 = vmatmul.f32.gmra.mxu0 %v1383
  %v1402 = vpop.f32.mrf.mxu0
  %v1403 = vadd.f32 %v1380, %v1402
  %1404 = vdwg.mxu0
  %v1405 = vadd.f32 %v1374, %v1403
  %v1406 = vxor.u32 %v1405, 2147483648
  %v1407 = vmul.f32 %v1406, 1.442695
  %v1408 = vpow.pop %v1407
  %v1409 = vadd.f32 %v1408, 1.0
  %v1410 = vrcp.pop %v1409
  %v1411 = vmul.f32 %v1409, %v1410
  %v1412 = vsub.f32 1.0, %v1411
  %v1413 = vmul.f32 %v1410, %v1412
  %v1414 = vadd.f32 %v1410, %v1413
  %vm1415 = vweird.f32 %v1409
  %vm1416 = vweird.f32 %v1410
  %vm1417 = vmor %vm1415, %vm1416
  %v1418 = vsel %vm1417, %v1410, %v1414
  %v1419 = vand.u32 2147483647, %v1409
  %vm1420 = vcmp.eq.f32.partialorder %v1419, 8.507059e+37
  %v1421 = vand.u32 %v1409, 2147483648
  %v1422 = vor.u32 1.1754944e-38, %v1421
  %v1423 = vsel %vm1420, %v1422, %v1418
  %v1424 = vmul.f32 1.0, %v1423
  %1426 = vrot.lane.b32.xlu0 %v1403, 96
  %v1427 = vpop.permute.xlu0 %1426
  %v1429 = vmul.f32 %v1424, %v1427
  %1431 = vrot.lane.b32.xlu0 %v1429, 32
  %v1432 = vpop.permute.xlu0 %1431
  %v1434 = vadd.f32 %v1374, %v1432
  %v1435 = vtanh.pop %v1434
  %v1436 = vsub.f32 1.0, %v1424
  %1438 = vrot.lane.b32.xlu0 %v1435, 112
  %v1439 = vpop.permute.xlu0 %1438
  %v1441 = vmul.f32 %v1436, %v1439
  %1442 = vrot.lane.b32.xlu0 %v1334, 16
  %v1443 = vpop.permute.xlu0 %1442
  %v1445 = vmul.f32 %v1424, %v1443
  %v1446 = vadd.f32 %v1441, %v1445
  %v1447 = vld [vmem:[%s14] sm:$0xff]
  %v1448 = vld [vmem:[%s14 + $0x8] sm:$0xff]
  %v1449 = vld [vmem:[%s15] sm:$0x1]
  %v1451 = vperm.slane %v1449, 0
  %1454 = vrot.lane.b32.xlu0 %v1446, 112
  %v1455 = vpop.permute.xlu0 %1454
  %v1456 = vsel %vm96, %v1455, 0
  %1458 = vmatpush.msra.mxu0 0.0
  %1459 = vmatpush.msra.mxu0 0.0
  %1460 = vmatpush.msra.mxu0 0.0
  %1461 = vmatpush.msra.mxu0 0.0
  %1462 = vmatpush.msra.mxu0 0.0
  %1463 = vmatpush.msra.mxu0 0.0
  %1464 = vmatpush.msra.mxu0 0.0
  %1465 = vmatpush.msra.mxu0 0.0
  %1466 = vmatpush.msra.mxu0 0.0
  %1467 = vmatpush.msra.mxu0 0.0
  %1468 = vmatpush.msra.mxu0 0.0
  %1469 = vmatpush.msra.mxu0 0.0
  %1470 = vmatpush.msra.mxu0 0.0
  %1471 = vmatpush.msra.mxu0 0.0
  %1472 = vmatpush.msra.mxu0 %v1448
  %1473 = vmatpush.msra.mxu0 %v1447
  %1474 = vmatmul.f32.gmra.mxu0 %v1456
  %v1475 = vpop.f32.mrf.mxu0
  %v1476 = vadd.f32 %v1451, %v1475
  %1477 = vdwg.mxu0
  %1478 = vst [vmem:[%s16 + $0x4] sm:$0x3] %v1476
  %v1479 = vsel %vm637, %v1476, -inf
  %1480 = vmax.xlane.f32.xlu0 %v1479
  %v1481 = vpop.xlane.xlu0 %1480
  %vm1482 = vcmp.eq.f32.partialorder %v1476, %v1481
  %v1483 = vsel %vm1482, %v686, 128
  %v1484 = vsel %vm637, %v1483, 2147483647
  %v1485 = vand.u32 %v1484, 65535
  %v1486 = vshra.s32 %v1484, 16
  %v1487 = vcvt.s32.f32 %v1485
  %v1488 = vcvt.s32.f32 %v1486
  %1489 = vmin.xlane.f32.xlu0 %v1488
  %v1490 = vpop.xlane.xlu0 %1489
  %vm1491 = vcmp.eq.f32.partialorder %v1488, %v1490
  %v1492 = vsel %vm1491, %v1487, inf
  %1493 = vmin.xlane.f32.xlu0 %v1492
  %v1494 = vpop.xlane.xlu0 %1493
  %v1495 = vcvt.f32.s32 %v1494
  %v1496 = vcvt.f32.s32 %v1490
  %v1497 = vshll.u32 %v1496, 16
  %v1498 = vadd.s32 %v1497, %v1495
  %vm1499 = vcmp.eq.s32.totalorder %v686, %v1498
  %v1500 = vsel %vm1499, 1, 0
  %v1501 = vcvt.s32.f32 %v1500
  %v1502 = vld [vmem:[%s5] sm:$0xff]
  %v1503 = vld [vmem:[%s5 + $0x8] sm:$0xff]
  %v1504 = vld [vmem:[%s6] sm:$0x1]
  %v1506 = vperm.slane %v1504, 0
  %1508 = vmatpush.msra.mxu0 0.0
  %1509 = vmatpush.msra.mxu0 0.0
  %1510 = vmatpush.msra.mxu0 0.0
  %1511 = vmatpush.msra.mxu0 0.0
  %1512 = vmatpush.msra.mxu0 0.0
  %1513 = vmatpush.msra.mxu0 0.0
  %1514 = vmatpush.msra.mxu0 0.0
  %1515 = vmatpush.msra.mxu0 0.0
  %1516 = vmatpush.msra.mxu0 0.0
  %1517 = vmatpush.msra.mxu0 0.0
  %1518 = vmatpush.msra.mxu0 0.0
  %1519 = vmatpush.msra.mxu0 0.0
  %1520 = vmatpush.msra.mxu0 0.0
  %1521 = vmatpush.msra.mxu0 0.0
  %1522 = vmatpush.msra.mxu0 %v1503
  %1523 = vmatpush.msra.mxu0 %v1502
  %1524 = vmatmul.f32.gmra.mxu0 %v1456
  %v1525 = vpop.f32.mrf.mxu0
  %v1526 = vadd.f32 %v1506, %v1525
  %1527 = vdwg.mxu0
  %v1529 = vsel %vm96, %v1526, 0
  %1531 = vmatpush.xpose.msra.mxu0 0.0
  %1532 = vmatpush.xpose.msra.mxu0 0.0
  %1533 = vmatpush.xpose.msra.mxu0 0.0
  %1534 = vmatpush.xpose.msra.mxu0 0.0
  %1535 = vmatpush.xpose.msra.mxu0 0.0
  %1536 = vmatpush.xpose.msra.mxu0 0.0
  %1537 = vmatpush.xpose.msra.mxu0 0.0
  %1538 = vmatpush.xpose.msra.mxu0 0.0
  %1539 = vmatpush.xpose.msra.mxu0 0.0
  %1540 = vmatpush.xpose.msra.mxu0 0.0
  %1541 = vmatpush.xpose.msra.mxu0 0.0
  %1542 = vmatpush.xpose.msra.mxu0 0.0
  %1543 = vmatpush.xpose.msra.mxu0 0.0
  %1544 = vmatpush.xpose.msra.mxu0 0.0
  %1545 = vmatpush.xpose.msra.mxu0 %v730
  %1546 = vmatpush.xpose.msra.mxu0 %v727
  %1547 = vmatmul.f32.gmra.mxu0 %v1529
  %v1548 = vpop.f32.mrf.mxu0
  %v1549 = vadd.f32 0.0, %v1548
  %1550 = vdwg.mxu0
  %v1551 = vmul.f32 %v1549, 0.25
  %v1552 = vadd.f32 %v1551, %v690
  %v1553 = vsel %vm754, %v1552, -inf
  %1554 = vmax.xlane.f32.xlu0 %v1553
  %v1555 = vpop.xlane.xlu0 %1554
  %v1556 = vsub.f32 %v1552, %v1555
  %v1557 = vmul.f32 %v1556, 1.442695
  %v1558 = vpow.pop %v1557
  %v1559 = vsel %vm754, %v1558, 0.0
  %1560 = vadd.xlane.f32.xlu0 %v1559
  %v1561 = vpop.xlane.xlu0 %1560
  %v1562 = vrcp.pop %v1561
  %v1563 = vmul.f32 %v1561, %v1562
  %v1564 = vsub.f32 1.0, %v1563
  %v1565 = vmul.f32 %v1562, %v1564
  %v1566 = vadd.f32 %v1562, %v1565
  %vm1567 = vweird.f32 %v1561
  %vm1568 = vweird.f32 %v1562
  %vm1569 = vmor %vm1567, %vm1568
  %v1570 = vsel %vm1569, %v1562, %v1566
  %v1571 = vand.u32 2147483647, %v1561
  %vm1572 = vcmp.eq.f32.partialorder %v1571, 8.507059e+37
  %v1573 = vand.u32 %v1561, 2147483648
  %v1574 = vor.u32 1.1754944e-38, %v1573
  %v1575 = vsel %vm1572, %v1574, %v1570
  %v1576 = vmul.f32 %v1558, %v1575
  %v1578 = vsel %vm96, %v1576, 0
  %1580 = vmatpush.msra.mxu0 0.0
  %1581 = vmatpush.msra.mxu0 0.0
  %1582 = vmatpush.msra.mxu0 0.0
  %1583 = vmatpush.msra.mxu0 0.0
  %1584 = vmatpush.msra.mxu0 0.0
  %1585 = vmatpush.msra.mxu0 0.0
  %1586 = vmatpush.msra.mxu0 0.0
  %1587 = vmatpush.msra.mxu0 0.0
  %1588 = vmatpush.msra.mxu0 0.0
  %1589 = vmatpush.msra.mxu0 0.0
  %1590 = vmatpush.msra.mxu0 0.0
  %1591 = vmatpush.msra.mxu0 0.0
  %1592 = vmatpush.msra.mxu0 0.0
  %1593 = vmatpush.msra.mxu0 0.0
  %1594 = vmatpush.msra.mxu0 %v782
  %1595 = vmatpush.msra.mxu0 %v780
  %1596 = vmatmul.f32.gmra.mxu0 %v1578
  %v1597 = vpop.f32.mrf.mxu0
  %v1598 = vadd.f32 0.0, %v1597
  %1599 = vdwg.mxu0
  %v1600 = vld [vmem:[%s10] sm:$0xff]
  %v1601 = vld [vmem:[%s10 + $0x8] sm:$0xff]
  %v1602 = vld [vmem:[%s10 + $0x10] sm:$0xff]
  %v1603 = vld [vmem:[%s10 + $0x18] sm:$0xff]
  %v1604 = vld [vmem:[%s10 + $0x20] sm:$0xff]
  %v1605 = vld [vmem:[%s10 + $0x28] sm:$0xff]
  %v1606 = vld [vmem:[%s10 + $0x30] sm:$0xff]
  %v1607 = vld [vmem:[%s10 + $0x38] sm:$0xff]
  %v1608 = vld [vmem:[%s10 + $0x40] sm:$0xff]
  %v1609 = vld [vmem:[%s10 + $0x48] sm:$0xff]
  %v1610 = vld [vmem:[%s10 + $0x50] sm:$0xff]
  %v1611 = vld [vmem:[%s10 + $0x58] sm:$0xff]
  %v1612 = vld [vmem:[%s10 + $0x60] sm:$0xff]
  %v1613 = vld [vmem:[%s10 + $0x68] sm:$0xff]
  %v1614 = vld [vmem:[%s10 + $0x70] sm:$0xff]
  %v1615 = vld [vmem:[%s10 + $0x78] sm:$0xff]
  %v1616 = vld [vmem:[%s11] sm:$0x1]
  %v1618 = vperm.slane %v1616, 0
  %1620 = vmatpush.msra.mxu0 %v1615
  %1621 = vmatpush.msra.mxu0 %v1614
  %1622 = vmatpush.msra.mxu0 %v1613
  %1623 = vmatpush.msra.mxu0 %v1612
  %1624 = vmatpush.msra.mxu0 %v1611
  %1625 = vmatpush.msra.mxu0 %v1610
  %1626 = vmatpush.msra.mxu0 %v1609
  %1627 = vmatpush.msra.mxu0 %v1608
  %1628 = vmatpush.msra.mxu0 %v1607
  %1629 = vmatpush.msra.mxu0 %v1606
  %1630 = vmatpush.msra.mxu0 %v1605
  %1631 = vmatpush.msra.mxu0 %v1604
  %1632 = vmatpush.msra.mxu0 %v1603
  %1633 = vmatpush.msra.mxu0 %v1602
  %1634 = vmatpush.msra.mxu0 %v1601
  %1635 = vmatpush.msra.mxu0 %v1600
  %1636 = vmatmul.f32.gmra.mxu0 %v1501
  %v1637 = vpop.f32.mrf.mxu0
  %v1638 = vadd.f32 %v1618, %v1637
  %1639 = vdwg.mxu0
  %v1640 = vld [vmem:[%s12] sm:$0xff]
  %v1641 = vld [vmem:[%s12 + $0x8] sm:$0xff]
  %v1642 = vld [vmem:[%s13] sm:$0x1]
  %v1644 = vperm.slane %v1642, 0
  %v1647 = vsel %vm96, %v1598, 0
  %1649 = vmatpush.msra.mxu0 0.0
  %1650 = vmatpush.msra.mxu0 0.0
  %1651 = vmatpush.msra.mxu0 0.0
  %1652 = vmatpush.msra.mxu0 0.0
  %1653 = vmatpush.msra.mxu0 0.0
  %1654 = vmatpush.msra.mxu0 0.0
  %1655 = vmatpush.msra.mxu0 0.0
  %1656 = vmatpush.msra.mxu0 0.0
  %1657 = vmatpush.msra.mxu0 0.0
  %1658 = vmatpush.msra.mxu0 0.0
  %1659 = vmatpush.msra.mxu0 0.0
  %1660 = vmatpush.msra.mxu0 0.0
  %1661 = vmatpush.msra.mxu0 0.0
  %1662 = vmatpush.msra.mxu0 0.0
  %1663 = vmatpush.msra.mxu0 %v1641
  %1664 = vmatpush.msra.mxu0 %v1640
  %1665 = vmatmul.f32.gmra.mxu0 %v1647
  %v1666 = vpop.f32.mrf.mxu0
  %v1667 = vadd.f32 %v1644, %v1666
  %1668 = vdwg.mxu0
  %v1669 = vadd.f32 %v1638, %v1667
  %v1670 = vxor.u32 %v1669, 2147483648
  %v1671 = vmul.f32 %v1670, 1.442695
  %v1672 = vpow.pop %v1671
  %v1673 = vadd.f32 %v1672, 1.0
  %v1674 = vrcp.pop %v1673
  %v1675 = vmul.f32 %v1673, %v1674
  %v1676 = vsub.f32 1.0, %v1675
  %v1677 = vmul.f32 %v1674, %v1676
  %v1678 = vadd.f32 %v1674, %v1677
  %vm1679 = vweird.f32 %v1673
  %vm1680 = vweird.f32 %v1674
  %vm1681 = vmor %vm1679, %vm1680
  %v1682 = vsel %vm1681, %v1674, %v1678
  %v1683 = vand.u32 2147483647, %v1673
  %vm1684 = vcmp.eq.f32.partialorder %v1683, 8.507059e+37
  %v1685 = vand.u32 %v1673, 2147483648
  %v1686 = vor.u32 1.1754944e-38, %v1685
  %v1687 = vsel %vm1684, %v1686, %v1682
  %v1688 = vmul.f32 1.0, %v1687
  %1690 = vrot.lane.b32.xlu0 %v1667, 96
  %v1691 = vpop.permute.xlu0 %1690
  %v1693 = vmul.f32 %v1688, %v1691
  %1695 = vrot.lane.b32.xlu0 %v1693, 32
  %v1696 = vpop.permute.xlu0 %1695
  %v1698 = vadd.f32 %v1638, %v1696
  %v1699 = vtanh.pop %v1698
  %v1700 = vsub.f32 1.0, %v1688
  %1702 = vrot.lane.b32.xlu0 %v1699, 112
  %v1703 = vpop.permute.xlu0 %1702
  %v1705 = vmul.f32 %v1700, %v1703
  %1706 = vrot.lane.b32.xlu0 %v1598, 16
  %v1707 = vpop.permute.xlu0 %1706
  %v1709 = vmul.f32 %v1688, %v1707
  %v1710 = vadd.f32 %v1705, %v1709
  %v1711 = vld [vmem:[%s14] sm:$0xff]
  %v1712 = vld [vmem:[%s14 + $0x8] sm:$0xff]
  %v1713 = vld [vmem:[%s15] sm:$0x1]
  %v1715 = vperm.slane %v1713, 0
  %1718 = vrot.lane.b32.xlu0 %v1710, 112
  %v1719 = vpop.permute.xlu0 %1718
  %v1720 = vsel %vm96, %v1719, 0
  %1722 = vmatpush.msra.mxu0 0.0
  %1723 = vmatpush.msra.mxu0 0.0
  %1724 = vmatpush.msra.mxu0 0.0
  %1725 = vmatpush.msra.mxu0 0.0
  %1726 = vmatpush.msra.mxu0 0.0
  %1727 = vmatpush.msra.mxu0 0.0
  %1728 = vmatpush.msra.mxu0 0.0
  %1729 = vmatpush.msra.mxu0 0.0
  %1730 = vmatpush.msra.mxu0 0.0
  %1731 = vmatpush.msra.mxu0 0.0
  %1732 = vmatpush.msra.mxu0 0.0
  %1733 = vmatpush.msra.mxu0 0.0
  %1734 = vmatpush.msra.mxu0 0.0
  %1735 = vmatpush.msra.mxu0 0.0
  %1736 = vmatpush.msra.mxu0 %v1712
  %1737 = vmatpush.msra.mxu0 %v1711
  %1738 = vmatmul.f32.gmra.mxu0 %v1720
  %v1739 = vpop.f32.mrf.mxu0
  %v1740 = vadd.f32 %v1715, %v1739
  %1741 = vdwg.mxu0
  %1742 = vst [vmem:[%s16 + $0x6] sm:$0x3] %v1740
  %v1743 = vsel %vm637, %v1740, -inf
  %1744 = vmax.xlane.f32.xlu0 %v1743
  %v1745 = vpop.xlane.xlu0 %1744
  %vm1746 = vcmp.eq.f32.partialorder %v1740, %v1745
  %v1747 = vsel %vm1746, %v686, 128
  %v1748 = vsel %vm637, %v1747, 2147483647
  %v1749 = vand.u32 %v1748, 65535
  %v1750 = vshra.s32 %v1748, 16
  %v1751 = vcvt.s32.f32 %v1749
  %v1752 = vcvt.s32.f32 %v1750
  %1753 = vmin.xlane.f32.xlu0 %v1752
  %v1754 = vpop.xlane.xlu0 %1753
  %vm1755 = vcmp.eq.f32.partialorder %v1752, %v1754
  %v1756 = vsel %vm1755, %v1751, inf
  %1757 = vmin.xlane.f32.xlu0 %v1756
  %v1758 = vpop.xlane.xlu0 %1757
  %v1759 = vcvt.f32.s32 %v1758
  %v1760 = vcvt.f32.s32 %v1754
  %v1761 = vshll.u32 %v1760, 16
  %v1762 = vadd.s32 %v1761, %v1759
  %vm1763 = vcmp.eq.s32.totalorder %v686, %v1762
  %v1764 = vsel %vm1763, 1, 0
  %v1765 = vcvt.s32.f32 %v1764
  %v1766 = vld [vmem:[%s5] sm:$0xff]
  %v1767 = vld [vmem:[%s5 + $0x8] sm:$0xff]
  %v1768 = vld [vmem:[%s6] sm:$0x1]
  %v1770 = vperm.slane %v1768, 0
  %1772 = vmatpush.msra.mxu0 0.0
  %1773 = vmatpush.msra.mxu0 0.0
  %1774 = vmatpush.msra.mxu0 0.0
  %1775 = vmatpush.msra.mxu0 0.0
  %1776 = vmatpush.msra.mxu0 0.0
  %1777 = vmatpush.msra.mxu0 0.0
  %1778 = vmatpush.msra.mxu0 0.0
  %1779 = vmatpush.msra.mxu0 0.0
  %1780 = vmatpush.msra.mxu0 0.0
  %1781 = vmatpush.msra.mxu0 0.0
  %1782 = vmatpush.msra.mxu0 0.0
  %1783 = vmatpush.msra.mxu0 0.0
  %1784 = vmatpush.msra.mxu0 0.0
  %1785 = vmatpush.msra.mxu0 0.0
  %1786 = vmatpush.msra.mxu0 %v1767
  %1787 = vmatpush.msra.mxu0 %v1766
  %1788 = vmatmul.f32.gmra.mxu0 %v1720
  %v1789 = vpop.f32.mrf.mxu0
  %v1790 = vadd.f32 %v1770, %v1789
  %1791 = vdwg.mxu0
  %v1793 = vsel %vm96, %v1790, 0
  %1795 = vmatpush.xpose.msra.mxu0 0.0
  %1796 = vmatpush.xpose.msra.mxu0 0.0
  %1797 = vmatpush.xpose.msra.mxu0 0.0
  %1798 = vmatpush.xpose.msra.mxu0 0.0
  %1799 = vmatpush.xpose.msra.mxu0 0.0
  %1800 = vmatpush.xpose.msra.mxu0 0.0
  %1801 = vmatpush.xpose.msra.mxu0 0.0
  %1802 = vmatpush.xpose.msra.mxu0 0.0
  %1803 = vmatpush.xpose.msra.mxu0 0.0
  %1804 = vmatpush.xpose.msra.mxu0 0.0
  %1805 = vmatpush.xpose.msra.mxu0 0.0
  %1806 = vmatpush.xpose.msra.mxu0 0.0
  %1807 = vmatpush.xpose.msra.mxu0 0.0
  %1808 = vmatpush.xpose.msra.mxu0 0.0
  %1809 = vmatpush.xpose.msra.mxu0 %v730
  %1810 = vmatpush.xpose.msra.mxu0 %v727
  %1811 = vmatmul.f32.gmra.mxu0 %v1793
  %v1812 = vpop.f32.mrf.mxu0
  %v1813 = vadd.f32 0.0, %v1812
  %1814 = vdwg.mxu0
  %v1815 = vmul.f32 %v1813, 0.25
  %v1816 = vadd.f32 %v1815, %v690
  %v1817 = vsel %vm754, %v1816, -inf
  %1818 = vmax.xlane.f32.xlu0 %v1817
  %v1819 = vpop.xlane.xlu0 %1818
  %v1820 = vsub.f32 %v1816, %v1819
  %v1821 = vmul.f32 %v1820, 1.442695
  %v1822 = vpow.pop %v1821
  %v1823 = vsel %vm754, %v1822, 0.0
  %1824 = vadd.xlane.f32.xlu0 %v1823
  %v1825 = vpop.xlane.xlu0 %1824
  %v1826 = vrcp.pop %v1825
  %v1827 = vmul.f32 %v1825, %v1826
  %v1828 = vsub.f32 1.0, %v1827
  %v1829 = vmul.f32 %v1826, %v1828
  %v1830 = vadd.f32 %v1826, %v1829
  %vm1831 = vweird.f32 %v1825
  %vm1832 = vweird.f32 %v1826
  %vm1833 = vmor %vm1831, %vm1832
  %v1834 = vsel %vm1833, %v1826, %v1830
  %v1835 = vand.u32 2147483647, %v1825
  %vm1836 = vcmp.eq.f32.partialorder %v1835, 8.507059e+37
  %v1837 = vand.u32 %v1825, 2147483648
  %v1838 = vor.u32 1.1754944e-38, %v1837
  %v1839 = vsel %vm1836, %v1838, %v1834
  %v1840 = vmul.f32 %v1822, %v1839
  %v1842 = vsel %vm96, %v1840, 0
  %1844 = vmatpush.msra.mxu0 0.0
  %1845 = vmatpush.msra.mxu0 0.0
  %1846 = vmatpush.msra.mxu0 0.0
  %1847 = vmatpush.msra.mxu0 0.0
  %1848 = vmatpush.msra.mxu0 0.0
  %1849 = vmatpush.msra.mxu0 0.0
  %1850 = vmatpush.msra.mxu0 0.0
  %1851 = vmatpush.msra.mxu0 0.0
  %1852 = vmatpush.msra.mxu0 0.0
  %1853 = vmatpush.msra.mxu0 0.0
  %1854 = vmatpush.msra.mxu0 0.0
  %1855 = vmatpush.msra.mxu0 0.0
  %1856 = vmatpush.msra.mxu0 0.0
  %1857 = vmatpush.msra.mxu0 0.0
  %1858 = vmatpush.msra.mxu0 %v782
  %1859 = vmatpush.msra.mxu0 %v780
  %1860 = vmatmul.f32.gmra.mxu0 %v1842
  %v1861 = vpop.f32.mrf.mxu0
  %v1862 = vadd.f32 0.0, %v1861
  %1863 = vdwg.mxu0
  %v1864 = vld [vmem:[%s10] sm:$0xff]
  %v1865 = vld [vmem:[%s10 + $0x8] sm:$0xff]
  %v1866 = vld [vmem:[%s10 + $0x10] sm:$0xff]
  %v1867 = vld [vmem:[%s10 + $0x18] sm:$0xff]
  %v1868 = vld [vmem:[%s10 + $0x20] sm:$0xff]
  %v1869 = vld [vmem:[%s10 + $0x28] sm:$0xff]
  %v1870 = vld [vmem:[%s10 + $0x30] sm:$0xff]
  %v1871 = vld [vmem:[%s10 + $0x38] sm:$0xff]
  %v1872 = vld [vmem:[%s10 + $0x40] sm:$0xff]
  %v1873 = vld [vmem:[%s10 + $0x48] sm:$0xff]
  %v1874 = vld [vmem:[%s10 + $0x50] sm:$0xff]
  %v1875 = vld [vmem:[%s10 + $0x58] sm:$0xff]
  %v1876 = vld [vmem:[%s10 + $0x60] sm:$0xff]
  %v1877 = vld [vmem:[%s10 + $0x68] sm:$0xff]
  %v1878 = vld [vmem:[%s10 + $0x70] sm:$0xff]
  %v1879 = vld [vmem:[%s10 + $0x78] sm:$0xff]
  %v1880 = vld [vmem:[%s11] sm:$0x1]
  %v1882 = vperm.slane %v1880, 0
  %1884 = vmatpush.msra.mxu0 %v1879
  %1885 = vmatpush.msra.mxu0 %v1878
  %1886 = vmatpush.msra.mxu0 %v1877
  %1887 = vmatpush.msra.mxu0 %v1876
  %1888 = vmatpush.msra.mxu0 %v1875
  %1889 = vmatpush.msra.mxu0 %v1874
  %1890 = vmatpush.msra.mxu0 %v1873
  %1891 = vmatpush.msra.mxu0 %v1872
  %1892 = vmatpush.msra.mxu0 %v1871
  %1893 = vmatpush.msra.mxu0 %v1870
  %1894 = vmatpush.msra.mxu0 %v1869
  %1895 = vmatpush.msra.mxu0 %v1868
  %1896 = vmatpush.msra.mxu0 %v1867
  %1897 = vmatpush.msra.mxu0 %v1866
  %1898 = vmatpush.msra.mxu0 %v1865
  %1899 = vmatpush.msra.mxu0 %v1864
  %1900 = vmatmul.f32.gmra.mxu0 %v1765
  %v1901 = vpop.f32.mrf.mxu0
  %v1902 = vadd.f32 %v1882, %v1901
  %1903 = vdwg.mxu0
  %v1904 = vld [vmem:[%s12] sm:$0xff]
  %v1905 = vld [vmem:[%s12 + $0x8] sm:$0xff]
  %v1906 = vld [vmem:[%s13] sm:$0x1]
  %v1908 = vperm.slane %v1906, 0
  %v1911 = vsel %vm96, %v1862, 0
  %1913 = vmatpush.msra.mxu0 0.0
  %1914 = vmatpush.msra.mxu0 0.0
  %1915 = vmatpush.msra.mxu0 0.0
  %1916 = vmatpush.msra.mxu0 0.0
  %1917 = vmatpush.msra.mxu0 0.0
  %1918 = vmatpush.msra.mxu0 0.0
  %1919 = vmatpush.msra.mxu0 0.0
  %1920 = vmatpush.msra.mxu0 0.0
  %1921 = vmatpush.msra.mxu0 0.0
  %1922 = vmatpush.msra.mxu0 0.0
  %1923 = vmatpush.msra.mxu0 0.0
  %1924 = vmatpush.msra.mxu0 0.0
  %1925 = vmatpush.msra.mxu0 0.0
  %1926 = vmatpush.msra.mxu0 0.0
  %1927 = vmatpush.msra.mxu0 %v1905
  %1928 = vmatpush.msra.mxu0 %v1904
  %1929 = vmatmul.f32.gmra.mxu0 %v1911
  %v1930 = vpop.f32.mrf.mxu0
  %v1931 = vadd.f32 %v1908, %v1930
  %1932 = vdwg.mxu0
  %v1933 = vadd.f32 %v1902, %v1931
  %v1934 = vxor.u32 %v1933, 2147483648
  %v1935 = vmul.f32 %v1934, 1.442695
  %v1936 = vpow.pop %v1935
  %v1937 = vadd.f32 %v1936, 1.0
  %v1938 = vrcp.pop %v1937
  %v1939 = vmul.f32 %v1937, %v1938
  %v1940 = vsub.f32 1.0, %v1939
  %v1941 = vmul.f32 %v1938, %v1940
  %v1942 = vadd.f32 %v1938, %v1941
  %vm1943 = vweird.f32 %v1937
  %vm1944 = vweird.f32 %v1938
  %vm1945 = vmor %vm1943, %vm1944
  %v1946 = vsel %vm1945, %v1938, %v1942
  %v1947 = vand.u32 2147483647, %v1937
  %vm1948 = vcmp.eq.f32.partialorder %v1947, 8.507059e+37
  %v1949 = vand.u32 %v1937, 2147483648
  %v1950 = vor.u32 1.1754944e-38, %v1949
  %v1951 = vsel %vm1948, %v1950, %v1946
  %v1952 = vmul.f32 1.0, %v1951
  %1954 = vrot.lane.b32.xlu0 %v1931, 96
  %v1955 = vpop.permute.xlu0 %1954
  %v1957 = vmul.f32 %v1952, %v1955
  %1959 = vrot.lane.b32.xlu0 %v1957, 32
  %v1960 = vpop.permute.xlu0 %1959
  %v1962 = vadd.f32 %v1902, %v1960
  %v1963 = vtanh.pop %v1962
  %v1964 = vsub.f32 1.0, %v1952
  %1966 = vrot.lane.b32.xlu0 %v1963, 112
  %v1967 = vpop.permute.xlu0 %1966
  %v1969 = vmul.f32 %v1964, %v1967
  %1970 = vrot.lane.b32.xlu0 %v1862, 16
  %v1971 = vpop.permute.xlu0 %1970
  %v1973 = vmul.f32 %v1952, %v1971
  %v1974 = vadd.f32 %v1969, %v1973
  %v1975 = vld [vmem:[%s14] sm:$0xff]
  %v1976 = vld [vmem:[%s14 + $0x8] sm:$0xff]
  %v1977 = vld [vmem:[%s15] sm:$0x1]
  %v1979 = vperm.slane %v1977, 0
  %1982 = vrot.lane.b32.xlu0 %v1974, 112
  %v1983 = vpop.permute.xlu0 %1982
  %v1984 = vsel %vm96, %v1983, 0
  %1986 = vmatpush.msra.mxu0 0.0
  %1987 = vmatpush.msra.mxu0 0.0
  %1988 = vmatpush.msra.mxu0 0.0
  %1989 = vmatpush.msra.mxu0 0.0
  %1990 = vmatpush.msra.mxu0 0.0
  %1991 = vmatpush.msra.mxu0 0.0
  %1992 = vmatpush.msra.mxu0 0.0
  %1993 = vmatpush.msra.mxu0 0.0
  %1994 = vmatpush.msra.mxu0 0.0
  %1995 = vmatpush.msra.mxu0 0.0
  %1996 = vmatpush.msra.mxu0 0.0
  %1997 = vmatpush.msra.mxu0 0.0
  %1998 = vmatpush.msra.mxu0 0.0
  %1999 = vmatpush.msra.mxu0 0.0
  %2000 = vmatpush.msra.mxu0 %v1976
  %2001 = vmatpush.msra.mxu0 %v1975
  %2002 = vmatmul.f32.gmra.mxu0 %v1984
  %v2003 = vpop.f32.mrf.mxu0
  %v2004 = vadd.f32 %v1979, %v2003
  %2005 = vdwg.mxu0
  %2006 = vst [vmem:[%s16 + $0x8] sm:$0x3] %v2004
  %v2007 = vsel %vm637, %v2004, -inf
  %2008 = vmax.xlane.f32.xlu0 %v2007
  %v2009 = vpop.xlane.xlu0 %2008
  %vm2010 = vcmp.eq.f32.partialorder %v2004, %v2009
  %v2011 = vsel %vm2010, %v686, 128
  %v2012 = vsel %vm637, %v2011, 2147483647
  %v2013 = vand.u32 %v2012, 65535
  %v2014 = vshra.s32 %v2012, 16
  %v2015 = vcvt.s32.f32 %v2013
  %v2016 = vcvt.s32.f32 %v2014
  %2017 = vmin.xlane.f32.xlu0 %v2016
  %v2018 = vpop.xlane.xlu0 %2017
  %vm2019 = vcmp.eq.f32.partialorder %v2016, %v2018
  %v2020 = vsel %vm2019, %v2015, inf
  %2021 = vmin.xlane.f32.xlu0 %v2020
  %v2022 = vpop.xlane.xlu0 %2021
  %v2023 = vcvt.f32.s32 %v2022
  %v2024 = vcvt.f32.s32 %v2018
  %v2025 = vshll.u32 %v2024, 16
  %v2026 = vadd.s32 %v2025, %v2023
  %vm2027 = vcmp.eq.s32.totalorder %v686, %v2026
  %v2028 = vsel %vm2027, 1, 0
  %v2029 = vcvt.s32.f32 %v2028
  %v2030 = vld [vmem:[%s5] sm:$0xff]
  %v2031 = vld [vmem:[%s5 + $0x8] sm:$0xff]
  %v2032 = vld [vmem:[%s6] sm:$0x1]
  %v2034 = vperm.slane %v2032, 0
  %2036 = vmatpush.msra.mxu0 0.0
  %2037 = vmatpush.msra.mxu0 0.0
  %2038 = vmatpush.msra.mxu0 0.0
  %2039 = vmatpush.msra.mxu0 0.0
  %2040 = vmatpush.msra.mxu0 0.0
  %2041 = vmatpush.msra.mxu0 0.0
  %2042 = vmatpush.msra.mxu0 0.0
  %2043 = vmatpush.msra.mxu0 0.0
  %2044 = vmatpush.msra.mxu0 0.0
  %2045 = vmatpush.msra.mxu0 0.0
  %2046 = vmatpush.msra.mxu0 0.0
  %2047 = vmatpush.msra.mxu0 0.0
  %2048 = vmatpush.msra.mxu0 0.0
  %2049 = vmatpush.msra.mxu0 0.0
  %2050 = vmatpush.msra.mxu0 %v2031
  %2051 = vmatpush.msra.mxu0 %v2030
  %2052 = vmatmul.f32.gmra.mxu0 %v1984
  %v2053 = vpop.f32.mrf.mxu0
  %v2054 = vadd.f32 %v2034, %v2053
  %2055 = vdwg.mxu0
  %v2057 = vsel %vm96, %v2054, 0
  %2059 = vmatpush.xpose.msra.mxu0 0.0
  %2060 = vmatpush.xpose.msra.mxu0 0.0
  %2061 = vmatpush.xpose.msra.mxu0 0.0
  %2062 = vmatpush.xpose.msra.mxu0 0.0
  %2063 = vmatpush.xpose.msra.mxu0 0.0
  %2064 = vmatpush.xpose.msra.mxu0 0.0
  %2065 = vmatpush.xpose.msra.mxu0 0.0
  %2066 = vmatpush.xpose.msra.mxu0 0.0
  %2067 = vmatpush.xpose.msra.mxu0 0.0
  %2068 = vmatpush.xpose.msra.mxu0 0.0
  %2069 = vmatpush.xpose.msra.mxu0 0.0
  %2070 = vmatpush.xpose.msra.mxu0 0.0
  %2071 = vmatpush.xpose.msra.mxu0 0.0
  %2072 = vmatpush.xpose.msra.mxu0 0.0
  %2073 = vmatpush.xpose.msra.mxu0 %v730
  %2074 = vmatpush.xpose.msra.mxu0 %v727
  %2075 = vmatmul.f32.gmra.mxu0 %v2057
  %v2076 = vpop.f32.mrf.mxu0
  %v2077 = vadd.f32 0.0, %v2076
  %2078 = vdwg.mxu0
  %v2079 = vmul.f32 %v2077, 0.25
  %v2080 = vadd.f32 %v2079, %v690
  %v2081 = vsel %vm754, %v2080, -inf
  %2082 = vmax.xlane.f32.xlu0 %v2081
  %v2083 = vpop.xlane.xlu0 %2082
  %v2084 = vsub.f32 %v2080, %v2083
  %v2085 = vmul.f32 %v2084, 1.442695
  %v2086 = vpow.pop %v2085
  %v2087 = vsel %vm754, %v2086, 0.0
  %2088 = vadd.xlane.f32.xlu0 %v2087
  %v2089 = vpop.xlane.xlu0 %2088
  %v2090 = vrcp.pop %v2089
  %v2091 = vmul.f32 %v2089, %v2090
  %v2092 = vsub.f32 1.0, %v2091
  %v2093 = vmul.f32 %v2090, %v2092
  %v2094 = vadd.f32 %v2090, %v2093
  %vm2095 = vweird.f32 %v2089
  %vm2096 = vweird.f32 %v2090
  %vm2097 = vmor %vm2095, %vm2096
  %v2098 = vsel %vm2097, %v2090, %v2094
  %v2099 = vand.u32 2147483647, %v2089
  %vm2100 = vcmp.eq.f32.partialorder %v2099, 8.507059e+37
  %v2101 = vand.u32 %v2089, 2147483648
  %v2102 = vor.u32 1.1754944e-38, %v2101
  %v2103 = vsel %vm2100, %v2102, %v2098
  %v2104 = vmul.f32 %v2086, %v2103
  %v2106 = vsel %vm96, %v2104, 0
  %2108 = vmatpush.msra.mxu0 0.0
  %2109 = vmatpush.msra.mxu0 0.0
  %2110 = vmatpush.msra.mxu0 0.0
  %2111 = vmatpush.msra.mxu0 0.0
  %2112 = vmatpush.msra.mxu0 0.0
  %2113 = vmatpush.msra.mxu0 0.0
  %2114 = vmatpush.msra.mxu0 0.0
  %2115 = vmatpush.msra.mxu0 0.0
  %2116 = vmatpush.msra.mxu0 0.0
  %2117 = vmatpush.msra.mxu0 0.0
  %2118 = vmatpush.msra.mxu0 0.0
  %2119 = vmatpush.msra.mxu0 0.0
  %2120 = vmatpush.msra.mxu0 0.0
  %2121 = vmatpush.msra.mxu0 0.0
  %2122 = vmatpush.msra.mxu0 %v782
  %2123 = vmatpush.msra.mxu0 %v780
  %2124 = vmatmul.f32.gmra.mxu0 %v2106
  %v2125 = vpop.f32.mrf.mxu0
  %v2126 = vadd.f32 0.0, %v2125
  %2127 = vdwg.mxu0
  %v2128 = vld [vmem:[%s10] sm:$0xff]
  %v2129 = vld [vmem:[%s10 + $0x8] sm:$0xff]
  %v2130 = vld [vmem:[%s10 + $0x10] sm:$0xff]
  %v2131 = vld [vmem:[%s10 + $0x18] sm:$0xff]
  %v2132 = vld [vmem:[%s10 + $0x20] sm:$0xff]
  %v2133 = vld [vmem:[%s10 + $0x28] sm:$0xff]
  %v2134 = vld [vmem:[%s10 + $0x30] sm:$0xff]
  %v2135 = vld [vmem:[%s10 + $0x38] sm:$0xff]
  %v2136 = vld [vmem:[%s10 + $0x40] sm:$0xff]
  %v2137 = vld [vmem:[%s10 + $0x48] sm:$0xff]
  %v2138 = vld [vmem:[%s10 + $0x50] sm:$0xff]
  %v2139 = vld [vmem:[%s10 + $0x58] sm:$0xff]
  %v2140 = vld [vmem:[%s10 + $0x60] sm:$0xff]
  %v2141 = vld [vmem:[%s10 + $0x68] sm:$0xff]
  %v2142 = vld [vmem:[%s10 + $0x70] sm:$0xff]
  %v2143 = vld [vmem:[%s10 + $0x78] sm:$0xff]
  %v2144 = vld [vmem:[%s11] sm:$0x1]
  %v2146 = vperm.slane %v2144, 0
  %2148 = vmatpush.msra.mxu0 %v2143
  %2149 = vmatpush.msra.mxu0 %v2142
  %2150 = vmatpush.msra.mxu0 %v2141
  %2151 = vmatpush.msra.mxu0 %v2140
  %2152 = vmatpush.msra.mxu0 %v2139
  %2153 = vmatpush.msra.mxu0 %v2138
  %2154 = vmatpush.msra.mxu0 %v2137
  %2155 = vmatpush.msra.mxu0 %v2136
  %2156 = vmatpush.msra.mxu0 %v2135
  %2157 = vmatpush.msra.mxu0 %v2134
  %2158 = vmatpush.msra.mxu0 %v2133
  %2159 = vmatpush.msra.mxu0 %v2132
  %2160 = vmatpush.msra.mxu0 %v2131
  %2161 = vmatpush.msra.mxu0 %v2130
  %2162 = vmatpush.msra.mxu0 %v2129
  %2163 = vmatpush.msra.mxu0 %v2128
  %2164 = vmatmul.f32.gmra.mxu0 %v2029
  %v2165 = vpop.f32.mrf.mxu0
  %v2166 = vadd.f32 %v2146, %v2165
  %2167 = vdwg.mxu0
  %v2168 = vld [vmem:[%s12] sm:$0xff]
  %v2169 = vld [vmem:[%s12 + $0x8] sm:$0xff]
  %v2170 = vld [vmem:[%s13] sm:$0x1]
  %v2172 = vperm.slane %v2170, 0
  %v2175 = vsel %vm96, %v2126, 0
  %2177 = vmatpush.msra.mxu0 0.0
  %2178 = vmatpush.msra.mxu0 0.0
  %2179 = vmatpush.msra.mxu0 0.0
  %2180 = vmatpush.msra.mxu0 0.0
  %2181 = vmatpush.msra.mxu0 0.0
  %2182 = vmatpush.msra.mxu0 0.0
  %2183 = vmatpush.msra.mxu0 0.0
  %2184 = vmatpush.msra.mxu0 0.0
  %2185 = vmatpush.msra.mxu0 0.0
  %2186 = vmatpush.msra.mxu0 0.0
  %2187 = vmatpush.msra.mxu0 0.0
  %2188 = vmatpush.msra.mxu0 0.0
  %2189 = vmatpush.msra.mxu0 0.0
  %2190 = vmatpush.msra.mxu0 0.0
  %2191 = vmatpush.msra.mxu0 %v2169
  %2192 = vmatpush.msra.mxu0 %v2168
  %2193 = vmatmul.f32.gmra.mxu0 %v2175
  %v2194 = vpop.f32.mrf.mxu0
  %v2195 = vadd.f32 %v2172, %v2194
  %2196 = vdwg.mxu0
  %v2197 = vadd.f32 %v2166, %v2195
  %v2198 = vxor.u32 %v2197, 2147483648
  %v2199 = vmul.f32 %v2198, 1.442695
  %v2200 = vpow.pop %v2199
  %v2201 = vadd.f32 %v2200, 1.0
  %v2202 = vrcp.pop %v2201
  %v2203 = vmul.f32 %v2201, %v2202
  %v2204 = vsub.f32 1.0, %v2203
  %v2205 = vmul.f32 %v2202, %v2204
  %v2206 = vadd.f32 %v2202, %v2205
  %vm2207 = vweird.f32 %v2201
  %vm2208 = vweird.f32 %v2202
  %vm2209 = vmor %vm2207, %vm2208
  %v2210 = vsel %vm2209, %v2202, %v2206
  %v2211 = vand.u32 2147483647, %v2201
  %vm2212 = vcmp.eq.f32.partialorder %v2211, 8.507059e+37
  %v2213 = vand.u32 %v2201, 2147483648
  %v2214 = vor.u32 1.1754944e-38, %v2213
  %v2215 = vsel %vm2212, %v2214, %v2210
  %v2216 = vmul.f32 1.0, %v2215
  %2218 = vrot.lane.b32.xlu0 %v2195, 96
  %v2219 = vpop.permute.xlu0 %2218
  %v2221 = vmul.f32 %v2216, %v2219
  %2223 = vrot.lane.b32.xlu0 %v2221, 32
  %v2224 = vpop.permute.xlu0 %2223
  %v2226 = vadd.f32 %v2166, %v2224
  %v2227 = vtanh.pop %v2226
  %v2228 = vsub.f32 1.0, %v2216
  %2230 = vrot.lane.b32.xlu0 %v2227, 112
  %v2231 = vpop.permute.xlu0 %2230
  %v2233 = vmul.f32 %v2228, %v2231
  %2234 = vrot.lane.b32.xlu0 %v2126, 16
  %v2235 = vpop.permute.xlu0 %2234
  %v2237 = vmul.f32 %v2216, %v2235
  %v2238 = vadd.f32 %v2233, %v2237
  %v2239 = vld [vmem:[%s14] sm:$0xff]
  %v2240 = vld [vmem:[%s14 + $0x8] sm:$0xff]
  %v2241 = vld [vmem:[%s15] sm:$0x1]
  %v2243 = vperm.slane %v2241, 0
  %2246 = vrot.lane.b32.xlu0 %v2238, 112
  %v2247 = vpop.permute.xlu0 %2246
  %v2248 = vsel %vm96, %v2247, 0
  %2250 = vmatpush.msra.mxu0 0.0
  %2251 = vmatpush.msra.mxu0 0.0
  %2252 = vmatpush.msra.mxu0 0.0
  %2253 = vmatpush.msra.mxu0 0.0
  %2254 = vmatpush.msra.mxu0 0.0
  %2255 = vmatpush.msra.mxu0 0.0
  %2256 = vmatpush.msra.mxu0 0.0
  %2257 = vmatpush.msra.mxu0 0.0
  %2258 = vmatpush.msra.mxu0 0.0
  %2259 = vmatpush.msra.mxu0 0.0
  %2260 = vmatpush.msra.mxu0 0.0
  %2261 = vmatpush.msra.mxu0 0.0
  %2262 = vmatpush.msra.mxu0 0.0
  %2263 = vmatpush.msra.mxu0 0.0
  %2264 = vmatpush.msra.mxu0 %v2240
  %2265 = vmatpush.msra.mxu0 %v2239
  %2266 = vmatmul.f32.gmra.mxu0 %v2248
  %v2267 = vpop.f32.mrf.mxu0
  %v2268 = vadd.f32 %v2243, %v2267
  %2269 = vdwg.mxu0
  %2270 = vst [vmem:[%s16 + $0xa] sm:$0x3] %v2268
  // Predicated region
  $region66: #{seq2seq_forward.1} parent=0 // pred_check
    _
  $region67: #{seq2seq_forward.1} parent=0 // pred_check_branch
    %2272 = sbr.rel (0) target = $region69
  $region68: #{seq2seq_forward.1} parent=0 // pred_region
    _
  $region69: #{seq2seq_forward.1} parent=0 // pred_fallthru
    _
  // Predicated region
  $region70: #{seq2seq_forward.1} parent=0 // pred_check
    _
  $region71: #{seq2seq_forward.1} parent=0 // pred_check_branch
    %2274 = sbr.rel (0) target = $region73
  $region72: #{seq2seq_forward.1} parent=0 // pred_region
    _
  $region73: #{seq2seq_forward.1} parent=0 // pred_fallthru
    _

</llo_original>
